<compile_context>
chip_gen: v6e
topology: v6e:2x2x1
jax: 0.10.0
libtpu: 0.0.40
codegen_flags: <defaults>
</compile_context>

<pallas_src>
import jax
import jax.numpy as jnp
from jax.experimental import pallas as pl
from jax.experimental.pallas import tpu as pltpu

LANE = 128
SUBLANE = 8
OUTP = 128                  # lane-dense output slab width (logit in column 0)
GATE_PERM = (0, 1, 3, 2)    # packed gate slot -> PyTorch gate index (i,f,g,o)


def _round_up(x, m):
    return ((x + m - 1) // m) * m


# ----------------------------------------------------------------------------
# Fused kernel: [all LSTM layers over all T] + FC head, one invocation.
# ----------------------------------------------------------------------------
def _make_fused_kernel(num_layers, T, HP, unroll):
    def kernel(*refs):
        # refs: x, (Wih_0, Whh_0, b_0), ..., xs, wfc1h, wfc1s, bfc1, wfc2,
        #       bfc2, out, proj_scratch[, h_seq_scratch]
        x_ref = refs[0]
        wih_refs = [refs[1 + 3 * l] for l in range(num_layers)]
        whh_refs = [refs[2 + 3 * l] for l in range(num_layers)]
        b_refs = [refs[3 + 3 * l] for l in range(num_layers)]
        base = 1 + 3 * num_layers
        xs_ref = refs[base + 0]
        wfc1h_ref = refs[base + 1]
        wfc1s_ref = refs[base + 2]
        bfc1_ref = refs[base + 3]
        wfc2_ref = refs[base + 4]
        bfc2_ref = refs[base + 5]
        out_ref = refs[base + 6]
        proj_ref = refs[base + 7]                       # (T, Bt, 4*HP) f32
        h_seq_ref = refs[base + 8] if num_layers > 1 else None

        Bt = x_ref.shape[1]

        h_last = None
        for l in range(num_layers):                     # static layer unroll
            # ---- Precompute X @ W_ih + b for ALL time steps: one big MXU
            #      matmul with M = T*Bt, off the serial recurrence. ----------
            if l == 0:
                in_seq = x_ref[...]                     # (T, Bt, DP) bf16
            else:
                in_seq = h_seq_ref[...]                 # (T, Bt, HP) bf16
            in_dim = in_seq.shape[-1]
            proj = jnp.dot(in_seq.reshape(T * Bt, in_dim), wih_refs[l][...],
                           preferred_element_type=jnp.float32)
            proj_ref[...] = (proj + b_refs[l][...]).reshape(T, Bt, 4 * HP)

            w_hh = whh_refs[l][...]                     # hoisted, loop-invariant
            write_seq = l < num_layers - 1

            def step(t, carry, w_hh=w_hh, write_seq=write_seq):
                h_prev, c_prev = carry
                # Only the recurrent matmul stays on the serial chain.
                gates = proj_ref[t] + jnp.dot(
                    h_prev.astype(jnp.bfloat16), w_hh,
                    preferred_element_type=jnp.float32)
                # Packed gate layout [i | f | o | g]: one sigmoid, one tanh.
                sg = jax.nn.sigmoid(gates[:, :3 * HP])
                i = sg[:, 0 * HP:1 * HP]
                f = sg[:, 1 * HP:2 * HP]
                o = sg[:, 2 * HP:3 * HP]
                g = jnp.tanh(gates[:, 3 * HP:4 * HP])
                c_new = f * c_prev + i * g              # f32 state math
                h_new = o * jnp.tanh(c_new)
                if write_seq:                           # feeds next layer
                    h_seq_ref[t] = h_new.astype(jnp.bfloat16)
                return h_new, c_new

            init = (jnp.zeros((Bt, HP), jnp.float32),
                    jnp.zeros((Bt, HP), jnp.float32))
            h_last, _ = jax.lax.fori_loop(0, T, step, init, unroll=unroll)

        # FC head fused in-kernel: Linear -> ReLU -> (Dropout=id) -> Linear.
        # No concat: wfc1 is pre-split into h / static parts, dots summed.
        hidden = (jnp.dot(h_last.astype(jnp.bfloat16), wfc1h_ref[...],
                          preferred_element_type=jnp.float32)
                  + jnp.dot(xs_ref[...], wfc1s_ref[...],
                            preferred_element_type=jnp.float32)
                  + bfc1_ref[...])
        hidden = jnp.maximum(hidden, 0.0)
        out = jnp.dot(hidden.astype(jnp.bfloat16), wfc2_ref[...],
                      preferred_element_type=jnp.float32) + bfc2_ref[...]
        out_ref[...] = out.astype(out_ref.dtype)        # (Bt, 128) lane-dense

    return kernel


def _spec(shape, index_map, single_buffer=False):
    """BlockSpec helper: single-buffer grid-invariant operands."""
    if single_buffer:
        return pl.BlockSpec(shape, index_map, pipeline_mode=pl.Buffered(1))
    return pl.BlockSpec(shape, index_map)


def _fused_forward_call(xp, lstm_wih, lstm_whh, lstm_b, xsp,
                        wfc1h, wfc1s, bfc1, wfc2, bfc2, *,
                        num_layers, T, BP, b_tile, DP, HP, SP, FCMP, unroll):
    nbt = BP // b_tile
    inv = True      # grid-invariant operand -> single-buffered

    in_specs = [_spec((T, b_tile, DP), lambda b: (0, b, 0),
                      single_buffer=(nbt == 1))]
    operands = [xp]
    for l in range(num_layers):
        in_pad = DP if l == 0 else HP
        in_specs += [
            _spec((in_pad, 4 * HP), lambda b: (0, 0), inv),
            _spec((HP, 4 * HP), lambda b: (0, 0), inv),
            _spec((1, 4 * HP), lambda b: (0, 0), inv),
        ]
        operands += [lstm_wih[l], lstm_whh[l], lstm_b[l]]
    in_specs += [
        _spec((b_tile, SP), lambda b: (b, 0), single_buffer=(nbt == 1)),
        _spec((HP, FCMP), lambda b: (0, 0), inv),
        _spec((SP, FCMP), lambda b: (0, 0), inv),
        _spec((1, FCMP), lambda b: (0, 0), inv),
        _spec((FCMP, OUTP), lambda b: (0, 0), inv),
        _spec((1, OUTP), lambda b: (0, 0), inv),
    ]
    operands += [xsp, wfc1h, wfc1s, bfc1, wfc2, bfc2]

    scratch_shapes = [pltpu.VMEM((T, b_tile, 4 * HP), jnp.float32)]  # proj
    if num_layers > 1:
        scratch_shapes.append(pltpu.VMEM((T, b_tile, HP), jnp.bfloat16))

    return pl.pallas_call(
        _make_fused_kernel(num_layers, T, HP, unroll),
        out_shape=jax.ShapeDtypeStruct((BP, OUTP), jnp.float32),
        grid_spec=pltpu.PrefetchScalarGridSpec(
            num_scalar_prefetch=0,
            grid=(nbt,),                     # batch tiles only; T is in-kernel
            in_specs=in_specs,
            out_specs=pl.BlockSpec((b_tile, OUTP), lambda b: (b, 0)),
            scratch_shapes=scratch_shapes,
        ),
        compiler_params=pltpu.CompilerParams(
            dimension_semantics=("parallel",),   # batch tiles shard across TCs
            vmem_limit_bytes=48 * 1024 * 1024,   # stays under v7x's 64 MiB
        ),
    )(*operands)


# ----------------------------------------------------------------------------
# Parameter init (PyTorch-like semantics: weights stored as (in, 4H), gate
# order i,f,g,o; b = b_ih + b_hh folded).  NOTE: real nn.LSTM weights are
# (4H, in) and must be transposed / biases summed to match this layout.
# ----------------------------------------------------------------------------
def init_params(key, input_size, hidden_size, static_size, num_layers):
    params = {"lstm": [], "fc": {}}
    k = 1.0 / jnp.sqrt(hidden_size)
    for layer in range(num_layers):
        d_in = input_size if layer == 0 else hidden_size
        key, k1, k2, k3 = jax.random.split(key, 4)
        params["lstm"].append({
            "w_ih": jax.random.uniform(k1, (d_in, 4 * hidden_size),
                                       jnp.float32, -k, k),
            "w_hh": jax.random.uniform(k2, (hidden_size, 4 * hidden_size),
                                       jnp.float32, -k, k),
            "b": jax.random.uniform(k3, (1, 4 * hidden_size),
                                    jnp.float32, -k, k),
        })
    key, k1, k2, k3, k4 = jax.random.split(key, 5)
    f_in = hidden_size + static_size
    kf = 1.0 / jnp.sqrt(f_in)
    k2s = 1.0 / jnp.sqrt(128.0)
    params["fc"] = {
        "w1": jax.random.uniform(k1, (f_in, 128), jnp.float32, -kf, kf),
        "b1": jax.random.uniform(k2, (1, 128), jnp.float32, -kf, kf),
        "w2": jax.random.uniform(k3, (128, 1), jnp.float32, -k2s, k2s),
        "b2": jax.random.uniform(k4, (1, 1), jnp.float32, -k2s, k2s),
    }
    return params


# ----------------------------------------------------------------------------
# Wrapper: pack/pad operands into lane-aligned bf16 layout and call the kernel.
# ----------------------------------------------------------------------------
def lstm_classifier_v2_forward(params, x_dynamic, x_static):
    """x_dynamic: (B, T, input_size); x_static: (B, static_size) -> (B, 1)."""
    B, T, D = x_dynamic.shape
    S = x_static.shape[1]
    H = params["lstm"][0]["w_hh"].shape[0]
    num_layers = len(params["lstm"])
    FCM = params["fc"]["w1"].shape[1]

    DP = _round_up(max(D, 1), LANE)
    HP = _round_up(H, LANE)
    SP = _round_up(max(S, 1), LANE)
    FCMP = _round_up(FCM, LANE)

    # Batch tiling: >=2 tiles whenever B > 8 so the "parallel" grid axis can
    # shard across v7x's two TensorCores; tiles stay multiples of 8 sublanes.
    if B <= 8:
        BP, b_tile = 8, 8
    elif B <= 256:
        BP = _round_up(B, 16)
        b_tile = BP // 2
    else:
        BP = _round_up(B, 128)
        b_tile = 128

    unroll = T if T <= 8 else 8          # partial unroll for long sequences

    # Time-major, batch/lane-padded bf16 input (pad + transpose fuse into the
    # single relayout copy that lane-padding requires anyway).
    x_tm = jnp.transpose(x_dynamic.astype(jnp.bfloat16), (1, 0, 2))   # (T,B,D)
    xp = jnp.zeros((T, BP, DP), jnp.bfloat16).at[:, :B, :D].set(x_tm)

    # Separate, gate-padded W_ih / W_hh in packed gate order [i | f | o | g]:
    # packed slot s holds lanes [s*HP : s*HP+H] of PyTorch gate GATE_PERM[s].
    lstm_wih, lstm_whh, lstm_b = [], [], []
    for l, lp in enumerate(params["lstm"]):
        d_in = lp["w_ih"].shape[0]
        in_pad = DP if l == 0 else HP
        Wih = jnp.zeros((in_pad, 4 * HP), jnp.float32)
        Whh = jnp.zeros((HP, 4 * HP), jnp.float32)
        bv = jnp.zeros((1, 4 * HP), jnp.float32)
        for s, g in enumerate(GATE_PERM):
            Wih = Wih.at[:d_in, s * HP:s * HP + H].set(
                lp["w_ih"][:, g * H:(g + 1) * H])
            Whh = Whh.at[:H, s * HP:s * HP + H].set(
                lp["w_hh"][:, g * H:(g + 1) * H])
            bv = bv.at[:, s * HP:s * HP + H].set(lp["b"][:, g * H:(g + 1) * H])
        lstm_wih.append(Wih.astype(jnp.bfloat16))
        lstm_whh.append(Whh.astype(jnp.bfloat16))
        lstm_b.append(bv)                                   # bias stays f32

    # FC head, padded and pre-split so the kernel never concatenates.
    fc = params["fc"]
    wfc1h = jnp.zeros((HP, FCMP), jnp.float32).at[:H, :FCM].set(fc["w1"][:H])
    wfc1s = jnp.zeros((SP, FCMP), jnp.float32).at[:S, :FCM].set(
        fc["w1"][H:H + S])
    bfc1 = jnp.zeros((1, FCMP), jnp.float32).at[:, :FCM].set(fc["b1"])
    wfc2 = jnp.zeros((FCMP, OUTP), jnp.float32).at[:FCM, :1].set(fc["w2"])
    bfc2 = jnp.zeros((1, OUTP), jnp.float32).at[:, :1].set(fc["b2"])

    xsp = jnp.zeros((BP, SP), jnp.bfloat16).at[:B, :S].set(
        x_static.astype(jnp.bfloat16))

    out = _fused_forward_call(
        xp, lstm_wih, lstm_whh, lstm_b, xsp,
        wfc1h.astype(jnp.bfloat16), wfc1s.astype(jnp.bfloat16), bfc1,
        wfc2.astype(jnp.bfloat16), bfc2,
        num_layers=num_layers, T=T, BP=BP, b_tile=b_tile,
        DP=DP, HP=HP, SP=SP, FCMP=FCMP, unroll=unroll)
    return out[:B, :1]


# ----------------------------------------------------------------------------
# Pure-JAX reference.  matmul_dtype=bf16 mirrors the kernel's MXU math
# (bf16 operands, f32 accumulation); matmul_dtype=f32 is the exact PyTorch
# semantics for a looser sanity check.
# ----------------------------------------------------------------------------
def _reference_forward(params, x_dynamic, x_static, matmul_dtype=jnp.float32):
    def mm(a, b):
        return jnp.dot(a.astype(matmul_dtype), b.astype(matmul_dtype),
                       preferred_element_type=jnp.float32)

    B = x_dynamic.shape[0]
    x = jnp.transpose(x_dynamic.astype(jnp.float32), (1, 0, 2))
    for lp in params["lstm"]:
        H = lp["w_hh"].shape[0]

        def step(carry, x_t, lp=lp, H=H):
            h, c = carry
            gates = mm(x_t, lp["w_ih"]) + mm(h, lp["w_hh"]) + lp["b"]
            i = jax.nn.sigmoid(gates[:, 0 * H:1 * H])
            f = jax.nn.sigmoid(gates[:, 1 * H:2 * H])
            g = jnp.tanh(gates[:, 2 * H:3 * H])
            o = jax.nn.sigmoid(gates[:, 3 * H:4 * H])
            c = f * c + i * g
            h = o * jnp.tanh(c)
            return (h, c), h

        init = (jnp.zeros((B, H), jnp.float32), jnp.zeros((B, H), jnp.float32))
        _, x = jax.lax.scan(step, init, x)
    lstm_out = x[-1]
    combined = jnp.concatenate([lstm_out, x_static.astype(jnp.float32)], axis=1)
    fc = params["fc"]
    hdn = jnp.maximum(mm(combined, fc["w1"]) + fc["b1"], 0.0)
    return mm(hdn, fc["w2"]) + fc["b2"]


if __name__ == "__main__":
    B, T, INPUT, HIDDEN, STATIC, LAYERS = 2, 8, 4, 32, 4, 2

    key = jax.random.PRNGKey(0)
    kp, kd, ks = jax.random.split(key, 3)
    params = init_params(kp, INPUT, HIDDEN, STATIC, LAYERS)
    x_dynamic = jax.random.normal(kd, (B, T, INPUT), jnp.float32)
    x_static = jax.random.normal(ks, (B, STATIC), jnp.float32)

    fwd = jax.jit(lstm_classifier_v2_forward)
    logits = jax.block_until_ready(fwd(params, x_dynamic, x_static))
    assert logits.shape == (B, 1)

    # Tight check vs. a reference that mirrors the kernel's bf16-operand /
    # f32-accumulate math; loose check vs. the exact f32 PyTorch semantics
    # (difference is just bf16 MXU-input rounding).
    ref_bf16 = jax.block_until_ready(
        _reference_forward(params, x_dynamic, x_static,
                           matmul_dtype=jnp.bfloat16))
    ref_f32 = jax.block_until_ready(
        _reference_forward(params, x_dynamic, x_static,
                           matmul_dtype=jnp.float32))
    assert jnp.allclose(logits, ref_bf16, atol=2e-3, rtol=2e-3), (
        float(jnp.max(jnp.abs(logits - ref_bf16))))
    assert jnp.allclose(logits, ref_f32, atol=1.5e-1, rtol=1.5e-1), (
        float(jnp.max(jnp.abs(logits - ref_f32))))

    print("KERNEL_OK")
</pallas_src>

<mosaic_0001>
module attributes {stable_mosaic.version = 11 : i64} {
  func.func @kernel(%arg0: i32, %arg1: memref<8x8x128xbf16, #tpu.memory_space<vmem>>, %arg2: memref<128x512xbf16, #tpu.memory_space<vmem>>, %arg3: memref<128x512xbf16, #tpu.memory_space<vmem>>, %arg4: memref<1x512xf32, #tpu.memory_space<vmem>>, %arg5: memref<128x512xbf16, #tpu.memory_space<vmem>>, %arg6: memref<128x512xbf16, #tpu.memory_space<vmem>>, %arg7: memref<1x512xf32, #tpu.memory_space<vmem>>, %arg8: memref<8x128xbf16, #tpu.memory_space<vmem>>, %arg9: memref<128x128xbf16, #tpu.memory_space<vmem>>, %arg10: memref<128x128xbf16, #tpu.memory_space<vmem>>, %arg11: memref<1x128xf32, #tpu.memory_space<vmem>>, %arg12: memref<128x128xbf16, #tpu.memory_space<vmem>>, %arg13: memref<1x128xf32, #tpu.memory_space<vmem>>, %arg14: memref<8x128xf32, #tpu.memory_space<vmem>>, %arg15: memref<8x8x512xf32, #tpu.memory_space<vmem>>, %arg16: memref<8x8x128xbf16, #tpu.memory_space<vmem>>) attributes {dimension_semantics = [#tpu.dimension_semantics<parallel>], iteration_bounds = array<i64: 1>, scalar_prefetch = 0 : i64, scratch_operands = 2 : i64, tpu.core_type = #tpu.core_type<tc>, window_params = [{pipeline_mode = #tpu.pipeline_mode<synchronous>, transform_indices = @transform_0, window_bounds = array<i64: 8, 8, 128>}, {pipeline_mode = #tpu.pipeline_mode<synchronous>, transform_indices = @transform_1, window_bounds = array<i64: 128, 512>}, {pipeline_mode = #tpu.pipeline_mode<synchronous>, transform_indices = @transform_2, window_bounds = array<i64: 128, 512>}, {pipeline_mode = #tpu.pipeline_mode<synchronous>, transform_indices = @transform_3, window_bounds = array<i64: 1, 512>}, {pipeline_mode = #tpu.pipeline_mode<synchronous>, transform_indices = @transform_4, window_bounds = array<i64: 128, 512>}, {pipeline_mode = #tpu.pipeline_mode<synchronous>, transform_indices = @transform_5, window_bounds = array<i64: 128, 512>}, {pipeline_mode = #tpu.pipeline_mode<synchronous>, transform_indices = @transform_6, window_bounds = array<i64: 1, 512>}, {pipeline_mode = #tpu.pipeline_mode<synchronous>, transform_indices = @transform_7, window_bounds = array<i64: 8, 128>}, {pipeline_mode = #tpu.pipeline_mode<synchronous>, transform_indices = @transform_8, window_bounds = array<i64: 128, 128>}, {pipeline_mode = #tpu.pipeline_mode<synchronous>, transform_indices = @transform_9, window_bounds = array<i64: 128, 128>}, {pipeline_mode = #tpu.pipeline_mode<synchronous>, transform_indices = @transform_10, window_bounds = array<i64: 1, 128>}, {pipeline_mode = #tpu.pipeline_mode<synchronous>, transform_indices = @transform_11, window_bounds = array<i64: 128, 128>}, {pipeline_mode = #tpu.pipeline_mode<synchronous>, transform_indices = @transform_12, window_bounds = array<i64: 1, 128>}, {transform_indices = @transform_13, window_bounds = array<i64: 8, 128>}]} {
    %c0 = arith.constant 0 : index
    %c0_0 = arith.constant 0 : index
    %c0_1 = arith.constant 0 : index
    %0 = vector.load %arg1[%c0, %c0_0, %c0_1] : memref<8x8x128xbf16, #tpu.memory_space<vmem>>, vector<8x8x128xbf16>
    %1 = vector.shape_cast %0 : vector<8x8x128xbf16> to vector<64x128xbf16>
    %c0_2 = arith.constant 0 : index
    %c0_3 = arith.constant 0 : index
    %2 = vector.load %arg2[%c0_2, %c0_3] : memref<128x512xbf16, #tpu.memory_space<vmem>>, vector<128x512xbf16>
    %cst = arith.constant dense<0.000000e+00> : vector<64x512xf32>
    %3 = tpu.matmul %1, %2, %cst {dimension_numbers = #tpu.dot_dimension_numbers<[1], [0], [0], [1], [0, 0, 1, 1], [], []>} : vector<64x128xbf16>, vector<128x512xbf16>, vector<64x512xf32> -> vector<64x512xf32>
    %c0_4 = arith.constant 0 : index
    %c0_5 = arith.constant 0 : index
    %4 = vector.load %arg4[%c0_4, %c0_5] : memref<1x512xf32, #tpu.memory_space<vmem>>, vector<1x512xf32>
    %5 = vector.broadcast %4 : vector<1x512xf32> to vector<64x512xf32>
    %6 = arith.addf %3, %5 : vector<64x512xf32>
    %7 = vector.shape_cast %6 : vector<64x512xf32> to vector<8x8x512xf32>
    %c0_6 = arith.constant 0 : index
    %c0_7 = arith.constant 0 : index
    %c0_8 = arith.constant 0 : index
    %8 = vector.load %arg15[%c0_6, %c0_7, %c0_8] : memref<8x8x512xf32, #tpu.memory_space<vmem>>, vector<8x8x512xf32>
    tpu.vector_store %arg15[%c0_6, %c0_7, %c0_8], %7 {strides = array<i32>} : memref<8x8x512xf32, #tpu.memory_space<vmem>>, vector<8x8x512xf32>,
    %c0_9 = arith.constant 0 : index
    %c0_10 = arith.constant 0 : index
    %9 = vector.load %arg3[%c0_9, %c0_10] : memref<128x512xbf16, #tpu.memory_space<vmem>>, vector<128x512xbf16>
    %cst_11 = arith.constant 0.000000e+00 : f32
    %10 = vector.broadcast %cst_11 : f32 to vector<8x128xf32>
    %cst_12 = arith.constant 0.000000e+00 : f32
    %11 = vector.broadcast %cst_12 : f32 to vector<8x128xf32>
    %c0_i32 = arith.constant 0 : i32
    %12 = arith.index_cast %c0_i32 : i32 to index
    %c0_13 = arith.constant 0 : index
    %c0_14 = arith.constant 0 : index
    %13 = vector.load %arg15[%12, %c0_13, %c0_14] : memref<8x8x512xf32, #tpu.memory_space<vmem>>, vector<1x8x512xf32>
    %14 = vector.shape_cast %13 : vector<1x8x512xf32> to vector<8x512xf32>
    %15 = arith.truncf %10 : vector<8x128xf32> to vector<8x128xbf16>
    %cst_15 = arith.constant dense<0.000000e+00> : vector<8x512xf32>
    %16 = tpu.matmul %15, %9, %cst_15 {dimension_numbers = #tpu.dot_dimension_numbers<[1], [0], [0], [1], [0, 0, 1, 1], [], []>} : vector<8x128xbf16>, vector<128x512xbf16>, vector<8x512xf32> -> vector<8x512xf32>
    %17 = arith.addf %14, %16 : vector<8x512xf32>
    %18 = vector.extract_strided_slice %17 {offsets = [0, 0], sizes = [8, 384], strides = [1, 1]} : vector<8x512xf32> to vector<8x384xf32>
    %19 = arith.negf %18 : vector<8x384xf32>
    %20 = math.exp %19 : vector<8x384xf32>
    %cst_16 = arith.constant 1.000000e+00 : f32
    %21 = vector.broadcast %cst_16 : f32 to vector<8x384xf32>
    %22 = arith.addf %21, %20 : vector<8x384xf32>
    %23 = arith.divf %21, %22 : vector<8x384xf32>
    %24 = vector.extract_strided_slice %23 {offsets = [0, 0], sizes = [8, 128], strides = [1, 1]} : vector<8x384xf32> to vector<8x128xf32>
    %25 = vector.extract_strided_slice %23 {offsets = [0, 128], sizes = [8, 128], strides = [1, 1]} : vector<8x384xf32> to vector<8x128xf32>
    %26 = vector.extract_strided_slice %23 {offsets = [0, 256], sizes = [8, 128], strides = [1, 1]} : vector<8x384xf32> to vector<8x128xf32>
    %27 = vector.extract_strided_slice %17 {offsets = [0, 384], sizes = [8, 128], strides = [1, 1]} : vector<8x512xf32> to vector<8x128xf32>
    %28 = math.tanh %27 : vector<8x128xf32>
    %29 = arith.mulf %25, %11 : vector<8x128xf32>
    %30 = arith.mulf %24, %28 : vector<8x128xf32>
    %31 = arith.addf %29, %30 : vector<8x128xf32>
    %32 = math.tanh %31 : vector<8x128xf32>
    %33 = arith.mulf %26, %32 : vector<8x128xf32>
    %34 = arith.truncf %33 : vector<8x128xf32> to vector<8x128xbf16>
    %35 = arith.index_cast %c0_i32 : i32 to index
    %c0_17 = arith.constant 0 : index
    %c0_18 = arith.constant 0 : index
    %36 = vector.load %arg16[%35, %c0_17, %c0_18] : memref<8x8x128xbf16, #tpu.memory_space<vmem>>, vector<1x8x128xbf16>
    %37 = vector.shape_cast %36 : vector<1x8x128xbf16> to vector<8x128xbf16>
    %38 = vector.shape_cast %34 : vector<8x128xbf16> to vector<1x8x128xbf16>
    tpu.vector_store %arg16[%35, %c0_17, %c0_18], %38 {strides = array<i32>} : memref<8x8x128xbf16, #tpu.memory_space<vmem>>, vector<1x8x128xbf16>,
    %c1_i32 = arith.constant 1 : i32
    %39 = arith.index_cast %c1_i32 : i32 to index
    %c0_19 = arith.constant 0 : index
    %c0_20 = arith.constant 0 : index
    %40 = vector.load %arg15[%39, %c0_19, %c0_20] : memref<8x8x512xf32, #tpu.memory_space<vmem>>, vector<1x8x512xf32>
    %41 = vector.shape_cast %40 : vector<1x8x512xf32> to vector<8x512xf32>
    %42 = arith.truncf %33 : vector<8x128xf32> to vector<8x128xbf16>
    %cst_21 = arith.constant dense<0.000000e+00> : vector<8x512xf32>
    %43 = tpu.matmul %42, %9, %cst_21 {dimension_numbers = #tpu.dot_dimension_numbers<[1], [0], [0], [1], [0, 0, 1, 1], [], []>} : vector<8x128xbf16>, vector<128x512xbf16>, vector<8x512xf32> -> vector<8x512xf32>
    %44 = arith.addf %41, %43 : vector<8x512xf32>
    %45 = vector.extract_strided_slice %44 {offsets = [0, 0], sizes = [8, 384], strides = [1, 1]} : vector<8x512xf32> to vector<8x384xf32>
    %46 = arith.negf %45 : vector<8x384xf32>
    %47 = math.exp %46 : vector<8x384xf32>
    %cst_22 = arith.constant 1.000000e+00 : f32
    %48 = vector.broadcast %cst_22 : f32 to vector<8x384xf32>
    %49 = arith.addf %48, %47 : vector<8x384xf32>
    %50 = arith.divf %48, %49 : vector<8x384xf32>
    %51 = vector.extract_strided_slice %50 {offsets = [0, 0], sizes = [8, 128], strides = [1, 1]} : vector<8x384xf32> to vector<8x128xf32>
    %52 = vector.extract_strided_slice %50 {offsets = [0, 128], sizes = [8, 128], strides = [1, 1]} : vector<8x384xf32> to vector<8x128xf32>
    %53 = vector.extract_strided_slice %50 {offsets = [0, 256], sizes = [8, 128], strides = [1, 1]} : vector<8x384xf32> to vector<8x128xf32>
    %54 = vector.extract_strided_slice %44 {offsets = [0, 384], sizes = [8, 128], strides = [1, 1]} : vector<8x512xf32> to vector<8x128xf32>
    %55 = math.tanh %54 : vector<8x128xf32>
    %56 = arith.mulf %52, %31 : vector<8x128xf32>
    %57 = arith.mulf %51, %55 : vector<8x128xf32>
    %58 = arith.addf %56, %57 : vector<8x128xf32>
    %59 = math.tanh %58 : vector<8x128xf32>
    %60 = arith.mulf %53, %59 : vector<8x128xf32>
    %61 = arith.truncf %60 : vector<8x128xf32> to vector<8x128xbf16>
    %62 = arith.index_cast %c1_i32 : i32 to index
    %c0_23 = arith.constant 0 : index
    %c0_24 = arith.constant 0 : index
    %63 = vector.load %arg16[%62, %c0_23, %c0_24] : memref<8x8x128xbf16, #tpu.memory_space<vmem>>, vector<1x8x128xbf16>
    %64 = vector.shape_cast %63 : vector<1x8x128xbf16> to vector<8x128xbf16>
    %65 = vector.shape_cast %61 : vector<8x128xbf16> to vector<1x8x128xbf16>
    tpu.vector_store %arg16[%62, %c0_23, %c0_24], %65 {strides = array<i32>} : memref<8x8x128xbf16, #tpu.memory_space<vmem>>, vector<1x8x128xbf16>,
    %c2_i32 = arith.constant 2 : i32
    %66 = arith.index_cast %c2_i32 : i32 to index
    %c0_25 = arith.constant 0 : index
    %c0_26 = arith.constant 0 : index
    %67 = vector.load %arg15[%66, %c0_25, %c0_26] : memref<8x8x512xf32, #tpu.memory_space<vmem>>, vector<1x8x512xf32>
    %68 = vector.shape_cast %67 : vector<1x8x512xf32> to vector<8x512xf32>
    %69 = arith.truncf %60 : vector<8x128xf32> to vector<8x128xbf16>
    %cst_27 = arith.constant dense<0.000000e+00> : vector<8x512xf32>
    %70 = tpu.matmul %69, %9, %cst_27 {dimension_numbers = #tpu.dot_dimension_numbers<[1], [0], [0], [1], [0, 0, 1, 1], [], []>} : vector<8x128xbf16>, vector<128x512xbf16>, vector<8x512xf32> -> vector<8x512xf32>
    %71 = arith.addf %68, %70 : vector<8x512xf32>
    %72 = vector.extract_strided_slice %71 {offsets = [0, 0], sizes = [8, 384], strides = [1, 1]} : vector<8x512xf32> to vector<8x384xf32>
    %73 = arith.negf %72 : vector<8x384xf32>
    %74 = math.exp %73 : vector<8x384xf32>
    %cst_28 = arith.constant 1.000000e+00 : f32
    %75 = vector.broadcast %cst_28 : f32 to vector<8x384xf32>
    %76 = arith.addf %75, %74 : vector<8x384xf32>
    %77 = arith.divf %75, %76 : vector<8x384xf32>
    %78 = vector.extract_strided_slice %77 {offsets = [0, 0], sizes = [8, 128], strides = [1, 1]} : vector<8x384xf32> to vector<8x128xf32>
    %79 = vector.extract_strided_slice %77 {offsets = [0, 128], sizes = [8, 128], strides = [1, 1]} : vector<8x384xf32> to vector<8x128xf32>
    %80 = vector.extract_strided_slice %77 {offsets = [0, 256], sizes = [8, 128], strides = [1, 1]} : vector<8x384xf32> to vector<8x128xf32>
    %81 = vector.extract_strided_slice %71 {offsets = [0, 384], sizes = [8, 128], strides = [1, 1]} : vector<8x512xf32> to vector<8x128xf32>
    %82 = math.tanh %81 : vector<8x128xf32>
    %83 = arith.mulf %79, %58 : vector<8x128xf32>
    %84 = arith.mulf %78, %82 : vector<8x128xf32>
    %85 = arith.addf %83, %84 : vector<8x128xf32>
    %86 = math.tanh %85 : vector<8x128xf32>
    %87 = arith.mulf %80, %86 : vector<8x128xf32>
    %88 = arith.truncf %87 : vector<8x128xf32> to vector<8x128xbf16>
    %89 = arith.index_cast %c2_i32 : i32 to index
    %c0_29 = arith.constant 0 : index
    %c0_30 = arith.constant 0 : index
    %90 = vector.load %arg16[%89, %c0_29, %c0_30] : memref<8x8x128xbf16, #tpu.memory_space<vmem>>, vector<1x8x128xbf16>
    %91 = vector.shape_cast %90 : vector<1x8x128xbf16> to vector<8x128xbf16>
    %92 = vector.shape_cast %88 : vector<8x128xbf16> to vector<1x8x128xbf16>
    tpu.vector_store %arg16[%89, %c0_29, %c0_30], %92 {strides = array<i32>} : memref<8x8x128xbf16, #tpu.memory_space<vmem>>, vector<1x8x128xbf16>,
    %c3_i32 = arith.constant 3 : i32
    %93 = arith.index_cast %c3_i32 : i32 to index
    %c0_31 = arith.constant 0 : index
    %c0_32 = arith.constant 0 : index
    %94 = vector.load %arg15[%93, %c0_31, %c0_32] : memref<8x8x512xf32, #tpu.memory_space<vmem>>, vector<1x8x512xf32>
    %95 = vector.shape_cast %94 : vector<1x8x512xf32> to vector<8x512xf32>
    %96 = arith.truncf %87 : vector<8x128xf32> to vector<8x128xbf16>
    %cst_33 = arith.constant dense<0.000000e+00> : vector<8x512xf32>
    %97 = tpu.matmul %96, %9, %cst_33 {dimension_numbers = #tpu.dot_dimension_numbers<[1], [0], [0], [1], [0, 0, 1, 1], [], []>} : vector<8x128xbf16>, vector<128x512xbf16>, vector<8x512xf32> -> vector<8x512xf32>
    %98 = arith.addf %95, %97 : vector<8x512xf32>
    %99 = vector.extract_strided_slice %98 {offsets = [0, 0], sizes = [8, 384], strides = [1, 1]} : vector<8x512xf32> to vector<8x384xf32>
    %100 = arith.negf %99 : vector<8x384xf32>
    %101 = math.exp %100 : vector<8x384xf32>
    %cst_34 = arith.constant 1.000000e+00 : f32
    %102 = vector.broadcast %cst_34 : f32 to vector<8x384xf32>
    %103 = arith.addf %102, %101 : vector<8x384xf32>
    %104 = arith.divf %102, %103 : vector<8x384xf32>
    %105 = vector.extract_strided_slice %104 {offsets = [0, 0], sizes = [8, 128], strides = [1, 1]} : vector<8x384xf32> to vector<8x128xf32>
    %106 = vector.extract_strided_slice %104 {offsets = [0, 128], sizes = [8, 128], strides = [1, 1]} : vector<8x384xf32> to vector<8x128xf32>
    %107 = vector.extract_strided_slice %104 {offsets = [0, 256], sizes = [8, 128], strides = [1, 1]} : vector<8x384xf32> to vector<8x128xf32>
    %108 = vector.extract_strided_slice %98 {offsets = [0, 384], sizes = [8, 128], strides = [1, 1]} : vector<8x512xf32> to vector<8x128xf32>
    %109 = math.tanh %108 : vector<8x128xf32>
    %110 = arith.mulf %106, %85 : vector<8x128xf32>
    %111 = arith.mulf %105, %109 : vector<8x128xf32>
    %112 = arith.addf %110, %111 : vector<8x128xf32>
    %113 = math.tanh %112 : vector<8x128xf32>
    %114 = arith.mulf %107, %113 : vector<8x128xf32>
    %115 = arith.truncf %114 : vector<8x128xf32> to vector<8x128xbf16>
    %116 = arith.index_cast %c3_i32 : i32 to index
    %c0_35 = arith.constant 0 : index
    %c0_36 = arith.constant 0 : index
    %117 = vector.load %arg16[%116, %c0_35, %c0_36] : memref<8x8x128xbf16, #tpu.memory_space<vmem>>, vector<1x8x128xbf16>
    %118 = vector.shape_cast %117 : vector<1x8x128xbf16> to vector<8x128xbf16>
    %119 = vector.shape_cast %115 : vector<8x128xbf16> to vector<1x8x128xbf16>
    tpu.vector_store %arg16[%116, %c0_35, %c0_36], %119 {strides = array<i32>} : memref<8x8x128xbf16, #tpu.memory_space<vmem>>, vector<1x8x128xbf16>,
    %c4_i32 = arith.constant 4 : i32
    %120 = arith.index_cast %c4_i32 : i32 to index
    %c0_37 = arith.constant 0 : index
    %c0_38 = arith.constant 0 : index
    %121 = vector.load %arg15[%120, %c0_37, %c0_38] : memref<8x8x512xf32, #tpu.memory_space<vmem>>, vector<1x8x512xf32>
    %122 = vector.shape_cast %121 : vector<1x8x512xf32> to vector<8x512xf32>
    %123 = arith.truncf %114 : vector<8x128xf32> to vector<8x128xbf16>
    %cst_39 = arith.constant dense<0.000000e+00> : vector<8x512xf32>
    %124 = tpu.matmul %123, %9, %cst_39 {dimension_numbers = #tpu.dot_dimension_numbers<[1], [0], [0], [1], [0, 0, 1, 1], [], []>} : vector<8x128xbf16>, vector<128x512xbf16>, vector<8x512xf32> -> vector<8x512xf32>
    %125 = arith.addf %122, %124 : vector<8x512xf32>
    %126 = vector.extract_strided_slice %125 {offsets = [0, 0], sizes = [8, 384], strides = [1, 1]} : vector<8x512xf32> to vector<8x384xf32>
    %127 = arith.negf %126 : vector<8x384xf32>
    %128 = math.exp %127 : vector<8x384xf32>
    %cst_40 = arith.constant 1.000000e+00 : f32
    %129 = vector.broadcast %cst_40 : f32 to vector<8x384xf32>
    %130 = arith.addf %129, %128 : vector<8x384xf32>
    %131 = arith.divf %129, %130 : vector<8x384xf32>
    %132 = vector.extract_strided_slice %131 {offsets = [0, 0], sizes = [8, 128], strides = [1, 1]} : vector<8x384xf32> to vector<8x128xf32>
    %133 = vector.extract_strided_slice %131 {offsets = [0, 128], sizes = [8, 128], strides = [1, 1]} : vector<8x384xf32> to vector<8x128xf32>
    %134 = vector.extract_strided_slice %131 {offsets = [0, 256], sizes = [8, 128], strides = [1, 1]} : vector<8x384xf32> to vector<8x128xf32>
    %135 = vector.extract_strided_slice %125 {offsets = [0, 384], sizes = [8, 128], strides = [1, 1]} : vector<8x512xf32> to vector<8x128xf32>
    %136 = math.tanh %135 : vector<8x128xf32>
    %137 = arith.mulf %133, %112 : vector<8x128xf32>
    %138 = arith.mulf %132, %136 : vector<8x128xf32>
    %139 = arith.addf %137, %138 : vector<8x128xf32>
    %140 = math.tanh %139 : vector<8x128xf32>
    %141 = arith.mulf %134, %140 : vector<8x128xf32>
    %142 = arith.truncf %141 : vector<8x128xf32> to vector<8x128xbf16>
    %143 = arith.index_cast %c4_i32 : i32 to index
    %c0_41 = arith.constant 0 : index
    %c0_42 = arith.constant 0 : index
    %144 = vector.load %arg16[%143, %c0_41, %c0_42] : memref<8x8x128xbf16, #tpu.memory_space<vmem>>, vector<1x8x128xbf16>
    %145 = vector.shape_cast %144 : vector<1x8x128xbf16> to vector<8x128xbf16>
    %146 = vector.shape_cast %142 : vector<8x128xbf16> to vector<1x8x128xbf16>
    tpu.vector_store %arg16[%143, %c0_41, %c0_42], %146 {strides = array<i32>} : memref<8x8x128xbf16, #tpu.memory_space<vmem>>, vector<1x8x128xbf16>,
    %c5_i32 = arith.constant 5 : i32
    %147 = arith.index_cast %c5_i32 : i32 to index
    %c0_43 = arith.constant 0 : index
    %c0_44 = arith.constant 0 : index
    %148 = vector.load %arg15[%147, %c0_43, %c0_44] : memref<8x8x512xf32, #tpu.memory_space<vmem>>, vector<1x8x512xf32>
    %149 = vector.shape_cast %148 : vector<1x8x512xf32> to vector<8x512xf32>
    %150 = arith.truncf %141 : vector<8x128xf32> to vector<8x128xbf16>
    %cst_45 = arith.constant dense<0.000000e+00> : vector<8x512xf32>
    %151 = tpu.matmul %150, %9, %cst_45 {dimension_numbers = #tpu.dot_dimension_numbers<[1], [0], [0], [1], [0, 0, 1, 1], [], []>} : vector<8x128xbf16>, vector<128x512xbf16>, vector<8x512xf32> -> vector<8x512xf32>
    %152 = arith.addf %149, %151 : vector<8x512xf32>
    %153 = vector.extract_strided_slice %152 {offsets = [0, 0], sizes = [8, 384], strides = [1, 1]} : vector<8x512xf32> to vector<8x384xf32>
    %154 = arith.negf %153 : vector<8x384xf32>
    %155 = math.exp %154 : vector<8x384xf32>
    %cst_46 = arith.constant 1.000000e+00 : f32
    %156 = vector.broadcast %cst_46 : f32 to vector<8x384xf32>
    %157 = arith.addf %156, %155 : vector<8x384xf32>
    %158 = arith.divf %156, %157 : vector<8x384xf32>
    %159 = vector.extract_strided_slice %158 {offsets = [0, 0], sizes = [8, 128], strides = [1, 1]} : vector<8x384xf32> to vector<8x128xf32>
    %160 = vector.extract_strided_slice %158 {offsets = [0, 128], sizes = [8, 128], strides = [1, 1]} : vector<8x384xf32> to vector<8x128xf32>
    %161 = vector.extract_strided_slice %158 {offsets = [0, 256], sizes = [8, 128], strides = [1, 1]} : vector<8x384xf32> to vector<8x128xf32>
    %162 = vector.extract_strided_slice %152 {offsets = [0, 384], sizes = [8, 128], strides = [1, 1]} : vector<8x512xf32> to vector<8x128xf32>
    %163 = math.tanh %162 : vector<8x128xf32>
    %164 = arith.mulf %160, %139 : vector<8x128xf32>
    %165 = arith.mulf %159, %163 : vector<8x128xf32>
    %166 = arith.addf %164, %165 : vector<8x128xf32>
    %167 = math.tanh %166 : vector<8x128xf32>
    %168 = arith.mulf %161, %167 : vector<8x128xf32>
    %169 = arith.truncf %168 : vector<8x128xf32> to vector<8x128xbf16>
    %170 = arith.index_cast %c5_i32 : i32 to index
    %c0_47 = arith.constant 0 : index
    %c0_48 = arith.constant 0 : index
    %171 = vector.load %arg16[%170, %c0_47, %c0_48] : memref<8x8x128xbf16, #tpu.memory_space<vmem>>, vector<1x8x128xbf16>
    %172 = vector.shape_cast %171 : vector<1x8x128xbf16> to vector<8x128xbf16>
    %173 = vector.shape_cast %169 : vector<8x128xbf16> to vector<1x8x128xbf16>
    tpu.vector_store %arg16[%170, %c0_47, %c0_48], %173 {strides = array<i32>} : memref<8x8x128xbf16, #tpu.memory_space<vmem>>, vector<1x8x128xbf16>,
    %c6_i32 = arith.constant 6 : i32
    %174 = arith.index_cast %c6_i32 : i32 to index
    %c0_49 = arith.constant 0 : index
    %c0_50 = arith.constant 0 : index
    %175 = vector.load %arg15[%174, %c0_49, %c0_50] : memref<8x8x512xf32, #tpu.memory_space<vmem>>, vector<1x8x512xf32>
    %176 = vector.shape_cast %175 : vector<1x8x512xf32> to vector<8x512xf32>
    %177 = arith.truncf %168 : vector<8x128xf32> to vector<8x128xbf16>
    %cst_51 = arith.constant dense<0.000000e+00> : vector<8x512xf32>
    %178 = tpu.matmul %177, %9, %cst_51 {dimension_numbers = #tpu.dot_dimension_numbers<[1], [0], [0], [1], [0, 0, 1, 1], [], []>} : vector<8x128xbf16>, vector<128x512xbf16>, vector<8x512xf32> -> vector<8x512xf32>
    %179 = arith.addf %176, %178 : vector<8x512xf32>
    %180 = vector.extract_strided_slice %179 {offsets = [0, 0], sizes = [8, 384], strides = [1, 1]} : vector<8x512xf32> to vector<8x384xf32>
    %181 = arith.negf %180 : vector<8x384xf32>
    %182 = math.exp %181 : vector<8x384xf32>
    %cst_52 = arith.constant 1.000000e+00 : f32
    %183 = vector.broadcast %cst_52 : f32 to vector<8x384xf32>
    %184 = arith.addf %183, %182 : vector<8x384xf32>
    %185 = arith.divf %183, %184 : vector<8x384xf32>
    %186 = vector.extract_strided_slice %185 {offsets = [0, 0], sizes = [8, 128], strides = [1, 1]} : vector<8x384xf32> to vector<8x128xf32>
    %187 = vector.extract_strided_slice %185 {offsets = [0, 128], sizes = [8, 128], strides = [1, 1]} : vector<8x384xf32> to vector<8x128xf32>
    %188 = vector.extract_strided_slice %185 {offsets = [0, 256], sizes = [8, 128], strides = [1, 1]} : vector<8x384xf32> to vector<8x128xf32>
    %189 = vector.extract_strided_slice %179 {offsets = [0, 384], sizes = [8, 128], strides = [1, 1]} : vector<8x512xf32> to vector<8x128xf32>
    %190 = math.tanh %189 : vector<8x128xf32>
    %191 = arith.mulf %187, %166 : vector<8x128xf32>
    %192 = arith.mulf %186, %190 : vector<8x128xf32>
    %193 = arith.addf %191, %192 : vector<8x128xf32>
    %194 = math.tanh %193 : vector<8x128xf32>
    %195 = arith.mulf %188, %194 : vector<8x128xf32>
    %196 = arith.truncf %195 : vector<8x128xf32> to vector<8x128xbf16>
    %197 = arith.index_cast %c6_i32 : i32 to index
    %c0_53 = arith.constant 0 : index
    %c0_54 = arith.constant 0 : index
    %198 = vector.load %arg16[%197, %c0_53, %c0_54] : memref<8x8x128xbf16, #tpu.memory_space<vmem>>, vector<1x8x128xbf16>
    %199 = vector.shape_cast %198 : vector<1x8x128xbf16> to vector<8x128xbf16>
    %200 = vector.shape_cast %196 : vector<8x128xbf16> to vector<1x8x128xbf16>
    tpu.vector_store %arg16[%197, %c0_53, %c0_54], %200 {strides = array<i32>} : memref<8x8x128xbf16, #tpu.memory_space<vmem>>, vector<1x8x128xbf16>,
    %c7_i32 = arith.constant 7 : i32
    %201 = arith.index_cast %c7_i32 : i32 to index
    %c0_55 = arith.constant 0 : index
    %c0_56 = arith.constant 0 : index
    %202 = vector.load %arg15[%201, %c0_55, %c0_56] : memref<8x8x512xf32, #tpu.memory_space<vmem>>, vector<1x8x512xf32>
    %203 = vector.shape_cast %202 : vector<1x8x512xf32> to vector<8x512xf32>
    %204 = arith.truncf %195 : vector<8x128xf32> to vector<8x128xbf16>
    %cst_57 = arith.constant dense<0.000000e+00> : vector<8x512xf32>
    %205 = tpu.matmul %204, %9, %cst_57 {dimension_numbers = #tpu.dot_dimension_numbers<[1], [0], [0], [1], [0, 0, 1, 1], [], []>} : vector<8x128xbf16>, vector<128x512xbf16>, vector<8x512xf32> -> vector<8x512xf32>
    %206 = arith.addf %203, %205 : vector<8x512xf32>
    %207 = vector.extract_strided_slice %206 {offsets = [0, 0], sizes = [8, 384], strides = [1, 1]} : vector<8x512xf32> to vector<8x384xf32>
    %208 = arith.negf %207 : vector<8x384xf32>
    %209 = math.exp %208 : vector<8x384xf32>
    %cst_58 = arith.constant 1.000000e+00 : f32
    %210 = vector.broadcast %cst_58 : f32 to vector<8x384xf32>
    %211 = arith.addf %210, %209 : vector<8x384xf32>
    %212 = arith.divf %210, %211 : vector<8x384xf32>
    %213 = vector.extract_strided_slice %212 {offsets = [0, 0], sizes = [8, 128], strides = [1, 1]} : vector<8x384xf32> to vector<8x128xf32>
    %214 = vector.extract_strided_slice %212 {offsets = [0, 128], sizes = [8, 128], strides = [1, 1]} : vector<8x384xf32> to vector<8x128xf32>
    %215 = vector.extract_strided_slice %212 {offsets = [0, 256], sizes = [8, 128], strides = [1, 1]} : vector<8x384xf32> to vector<8x128xf32>
    %216 = vector.extract_strided_slice %206 {offsets = [0, 384], sizes = [8, 128], strides = [1, 1]} : vector<8x512xf32> to vector<8x128xf32>
    %217 = math.tanh %216 : vector<8x128xf32>
    %218 = arith.mulf %214, %193 : vector<8x128xf32>
    %219 = arith.mulf %213, %217 : vector<8x128xf32>
    %220 = arith.addf %218, %219 : vector<8x128xf32>
    %221 = math.tanh %220 : vector<8x128xf32>
    %222 = arith.mulf %215, %221 : vector<8x128xf32>
    %223 = arith.truncf %222 : vector<8x128xf32> to vector<8x128xbf16>
    %224 = arith.index_cast %c7_i32 : i32 to index
    %c0_59 = arith.constant 0 : index
    %c0_60 = arith.constant 0 : index
    %225 = vector.load %arg16[%224, %c0_59, %c0_60] : memref<8x8x128xbf16, #tpu.memory_space<vmem>>, vector<1x8x128xbf16>
    %226 = vector.shape_cast %225 : vector<1x8x128xbf16> to vector<8x128xbf16>
    %227 = vector.shape_cast %223 : vector<8x128xbf16> to vector<1x8x128xbf16>
    tpu.vector_store %arg16[%224, %c0_59, %c0_60], %227 {strides = array<i32>} : memref<8x8x128xbf16, #tpu.memory_space<vmem>>, vector<1x8x128xbf16>,
    %c8_i32 = arith.constant 8 : i32
    %c0_61 = arith.constant 0 : index
    %c0_62 = arith.constant 0 : index
    %c0_63 = arith.constant 0 : index
    %228 = vector.load %arg16[%c0_61, %c0_62, %c0_63] : memref<8x8x128xbf16, #tpu.memory_space<vmem>>, vector<8x8x128xbf16>
    %229 = vector.shape_cast %228 : vector<8x8x128xbf16> to vector<64x128xbf16>
    %c0_64 = arith.constant 0 : index
    %c0_65 = arith.constant 0 : index
    %230 = vector.load %arg5[%c0_64, %c0_65] : memref<128x512xbf16, #tpu.memory_space<vmem>>, vector<128x512xbf16>
    %cst_66 = arith.constant dense<0.000000e+00> : vector<64x512xf32>
    %231 = tpu.matmul %229, %230, %cst_66 {dimension_numbers = #tpu.dot_dimension_numbers<[1], [0], [0], [1], [0, 0, 1, 1], [], []>} : vector<64x128xbf16>, vector<128x512xbf16>, vector<64x512xf32> -> vector<64x512xf32>
    %c0_67 = arith.constant 0 : index
    %c0_68 = arith.constant 0 : index
    %232 = vector.load %arg7[%c0_67, %c0_68] : memref<1x512xf32, #tpu.memory_space<vmem>>, vector<1x512xf32>
    %233 = vector.broadcast %232 : vector<1x512xf32> to vector<64x512xf32>
    %234 = arith.addf %231, %233 : vector<64x512xf32>
    %235 = vector.shape_cast %234 : vector<64x512xf32> to vector<8x8x512xf32>
    %c0_69 = arith.constant 0 : index
    %c0_70 = arith.constant 0 : index
    %c0_71 = arith.constant 0 : index
    %236 = vector.load %arg15[%c0_69, %c0_70, %c0_71] : memref<8x8x512xf32, #tpu.memory_space<vmem>>, vector<8x8x512xf32>
    tpu.vector_store %arg15[%c0_69, %c0_70, %c0_71], %235 {strides = array<i32>} : memref<8x8x512xf32, #tpu.memory_space<vmem>>, vector<8x8x512xf32>,
    %c0_72 = arith.constant 0 : index
    %c0_73 = arith.constant 0 : index
    %237 = vector.load %arg6[%c0_72, %c0_73] : memref<128x512xbf16, #tpu.memory_space<vmem>>, vector<128x512xbf16>
    %cst_74 = arith.constant 0.000000e+00 : f32
    %238 = vector.broadcast %cst_74 : f32 to vector<8x128xf32>
    %cst_75 = arith.constant 0.000000e+00 : f32
    %239 = vector.broadcast %cst_75 : f32 to vector<8x128xf32>
    %c0_i32_76 = arith.constant 0 : i32
    %240 = arith.index_cast %c0_i32_76 : i32 to index
    %c0_77 = arith.constant 0 : index
    %c0_78 = arith.constant 0 : index
    %241 = vector.load %arg15[%240, %c0_77, %c0_78] : memref<8x8x512xf32, #tpu.memory_space<vmem>>, vector<1x8x512xf32>
    %242 = vector.shape_cast %241 : vector<1x8x512xf32> to vector<8x512xf32>
    %243 = arith.truncf %238 : vector<8x128xf32> to vector<8x128xbf16>
    %cst_79 = arith.constant dense<0.000000e+00> : vector<8x512xf32>
    %244 = tpu.matmul %243, %237, %cst_79 {dimension_numbers = #tpu.dot_dimension_numbers<[1], [0], [0], [1], [0, 0, 1, 1], [], []>} : vector<8x128xbf16>, vector<128x512xbf16>, vector<8x512xf32> -> vector<8x512xf32>
    %245 = arith.addf %242, %244 : vector<8x512xf32>
    %246 = vector.extract_strided_slice %245 {offsets = [0, 0], sizes = [8, 384], strides = [1, 1]} : vector<8x512xf32> to vector<8x384xf32>
    %247 = arith.negf %246 : vector<8x384xf32>
    %248 = math.exp %247 : vector<8x384xf32>
    %cst_80 = arith.constant 1.000000e+00 : f32
    %249 = vector.broadcast %cst_80 : f32 to vector<8x384xf32>
    %250 = arith.addf %249, %248 : vector<8x384xf32>
    %251 = arith.divf %249, %250 : vector<8x384xf32>
    %252 = vector.extract_strided_slice %251 {offsets = [0, 0], sizes = [8, 128], strides = [1, 1]} : vector<8x384xf32> to vector<8x128xf32>
    %253 = vector.extract_strided_slice %251 {offsets = [0, 128], sizes = [8, 128], strides = [1, 1]} : vector<8x384xf32> to vector<8x128xf32>
    %254 = vector.extract_strided_slice %251 {offsets = [0, 256], sizes = [8, 128], strides = [1, 1]} : vector<8x384xf32> to vector<8x128xf32>
    %255 = vector.extract_strided_slice %245 {offsets = [0, 384], sizes = [8, 128], strides = [1, 1]} : vector<8x512xf32> to vector<8x128xf32>
    %256 = math.tanh %255 : vector<8x128xf32>
    %257 = arith.mulf %253, %239 : vector<8x128xf32>
    %258 = arith.mulf %252, %256 : vector<8x128xf32>
    %259 = arith.addf %257, %258 : vector<8x128xf32>
    %260 = math.tanh %259 : vector<8x128xf32>
    %261 = arith.mulf %254, %260 : vector<8x128xf32>
    %c1_i32_81 = arith.constant 1 : i32
    %262 = arith.index_cast %c1_i32_81 : i32 to index
    %c0_82 = arith.constant 0 : index
    %c0_83 = arith.constant 0 : index
    %263 = vector.load %arg15[%262, %c0_82, %c0_83] : memref<8x8x512xf32, #tpu.memory_space<vmem>>, vector<1x8x512xf32>
    %264 = vector.shape_cast %263 : vector<1x8x512xf32> to vector<8x512xf32>
    %265 = arith.truncf %261 : vector<8x128xf32> to vector<8x128xbf16>
    %cst_84 = arith.constant dense<0.000000e+00> : vector<8x512xf32>
    %266 = tpu.matmul %265, %237, %cst_84 {dimension_numbers = #tpu.dot_dimension_numbers<[1], [0], [0], [1], [0, 0, 1, 1], [], []>} : vector<8x128xbf16>, vector<128x512xbf16>, vector<8x512xf32> -> vector<8x512xf32>
    %267 = arith.addf %264, %266 : vector<8x512xf32>
    %268 = vector.extract_strided_slice %267 {offsets = [0, 0], sizes = [8, 384], strides = [1, 1]} : vector<8x512xf32> to vector<8x384xf32>
    %269 = arith.negf %268 : vector<8x384xf32>
    %270 = math.exp %269 : vector<8x384xf32>
    %cst_85 = arith.constant 1.000000e+00 : f32
    %271 = vector.broadcast %cst_85 : f32 to vector<8x384xf32>
    %272 = arith.addf %271, %270 : vector<8x384xf32>
    %273 = arith.divf %271, %272 : vector<8x384xf32>
    %274 = vector.extract_strided_slice %273 {offsets = [0, 0], sizes = [8, 128], strides = [1, 1]} : vector<8x384xf32> to vector<8x128xf32>
    %275 = vector.extract_strided_slice %273 {offsets = [0, 128], sizes = [8, 128], strides = [1, 1]} : vector<8x384xf32> to vector<8x128xf32>
    %276 = vector.extract_strided_slice %273 {offsets = [0, 256], sizes = [8, 128], strides = [1, 1]} : vector<8x384xf32> to vector<8x128xf32>
    %277 = vector.extract_strided_slice %267 {offsets = [0, 384], sizes = [8, 128], strides = [1, 1]} : vector<8x512xf32> to vector<8x128xf32>
    %278 = math.tanh %277 : vector<8x128xf32>
    %279 = arith.mulf %275, %259 : vector<8x128xf32>
    %280 = arith.mulf %274, %278 : vector<8x128xf32>
    %281 = arith.addf %279, %280 : vector<8x128xf32>
    %282 = math.tanh %281 : vector<8x128xf32>
    %283 = arith.mulf %276, %282 : vector<8x128xf32>
    %c2_i32_86 = arith.constant 2 : i32
    %284 = arith.index_cast %c2_i32_86 : i32 to index
    %c0_87 = arith.constant 0 : index
    %c0_88 = arith.constant 0 : index
    %285 = vector.load %arg15[%284, %c0_87, %c0_88] : memref<8x8x512xf32, #tpu.memory_space<vmem>>, vector<1x8x512xf32>
    %286 = vector.shape_cast %285 : vector<1x8x512xf32> to vector<8x512xf32>
    %287 = arith.truncf %283 : vector<8x128xf32> to vector<8x128xbf16>
    %cst_89 = arith.constant dense<0.000000e+00> : vector<8x512xf32>
    %288 = tpu.matmul %287, %237, %cst_89 {dimension_numbers = #tpu.dot_dimension_numbers<[1], [0], [0], [1], [0, 0, 1, 1], [], []>} : vector<8x128xbf16>, vector<128x512xbf16>, vector<8x512xf32> -> vector<8x512xf32>
    %289 = arith.addf %286, %288 : vector<8x512xf32>
    %290 = vector.extract_strided_slice %289 {offsets = [0, 0], sizes = [8, 384], strides = [1, 1]} : vector<8x512xf32> to vector<8x384xf32>
    %291 = arith.negf %290 : vector<8x384xf32>
    %292 = math.exp %291 : vector<8x384xf32>
    %cst_90 = arith.constant 1.000000e+00 : f32
    %293 = vector.broadcast %cst_90 : f32 to vector<8x384xf32>
    %294 = arith.addf %293, %292 : vector<8x384xf32>
    %295 = arith.divf %293, %294 : vector<8x384xf32>
    %296 = vector.extract_strided_slice %295 {offsets = [0, 0], sizes = [8, 128], strides = [1, 1]} : vector<8x384xf32> to vector<8x128xf32>
    %297 = vector.extract_strided_slice %295 {offsets = [0, 128], sizes = [8, 128], strides = [1, 1]} : vector<8x384xf32> to vector<8x128xf32>
    %298 = vector.extract_strided_slice %295 {offsets = [0, 256], sizes = [8, 128], strides = [1, 1]} : vector<8x384xf32> to vector<8x128xf32>
    %299 = vector.extract_strided_slice %289 {offsets = [0, 384], sizes = [8, 128], strides = [1, 1]} : vector<8x512xf32> to vector<8x128xf32>
    %300 = math.tanh %299 : vector<8x128xf32>
    %301 = arith.mulf %297, %281 : vector<8x128xf32>
    %302 = arith.mulf %296, %300 : vector<8x128xf32>
    %303 = arith.addf %301, %302 : vector<8x128xf32>
    %304 = math.tanh %303 : vector<8x128xf32>
    %305 = arith.mulf %298, %304 : vector<8x128xf32>
    %c3_i32_91 = arith.constant 3 : i32
    %306 = arith.index_cast %c3_i32_91 : i32 to index
    %c0_92 = arith.constant 0 : index
    %c0_93 = arith.constant 0 : index
    %307 = vector.load %arg15[%306, %c0_92, %c0_93] : memref<8x8x512xf32, #tpu.memory_space<vmem>>, vector<1x8x512xf32>
    %308 = vector.shape_cast %307 : vector<1x8x512xf32> to vector<8x512xf32>
    %309 = arith.truncf %305 : vector<8x128xf32> to vector<8x128xbf16>
    %cst_94 = arith.constant dense<0.000000e+00> : vector<8x512xf32>
    %310 = tpu.matmul %309, %237, %cst_94 {dimension_numbers = #tpu.dot_dimension_numbers<[1], [0], [0], [1], [0, 0, 1, 1], [], []>} : vector<8x128xbf16>, vector<128x512xbf16>, vector<8x512xf32> -> vector<8x512xf32>
    %311 = arith.addf %308, %310 : vector<8x512xf32>
    %312 = vector.extract_strided_slice %311 {offsets = [0, 0], sizes = [8, 384], strides = [1, 1]} : vector<8x512xf32> to vector<8x384xf32>
    %313 = arith.negf %312 : vector<8x384xf32>
    %314 = math.exp %313 : vector<8x384xf32>
    %cst_95 = arith.constant 1.000000e+00 : f32
    %315 = vector.broadcast %cst_95 : f32 to vector<8x384xf32>
    %316 = arith.addf %315, %314 : vector<8x384xf32>
    %317 = arith.divf %315, %316 : vector<8x384xf32>
    %318 = vector.extract_strided_slice %317 {offsets = [0, 0], sizes = [8, 128], strides = [1, 1]} : vector<8x384xf32> to vector<8x128xf32>
    %319 = vector.extract_strided_slice %317 {offsets = [0, 128], sizes = [8, 128], strides = [1, 1]} : vector<8x384xf32> to vector<8x128xf32>
    %320 = vector.extract_strided_slice %317 {offsets = [0, 256], sizes = [8, 128], strides = [1, 1]} : vector<8x384xf32> to vector<8x128xf32>
    %321 = vector.extract_strided_slice %311 {offsets = [0, 384], sizes = [8, 128], strides = [1, 1]} : vector<8x512xf32> to vector<8x128xf32>
    %322 = math.tanh %321 : vector<8x128xf32>
    %323 = arith.mulf %319, %303 : vector<8x128xf32>
    %324 = arith.mulf %318, %322 : vector<8x128xf32>
    %325 = arith.addf %323, %324 : vector<8x128xf32>
    %326 = math.tanh %325 : vector<8x128xf32>
    %327 = arith.mulf %320, %326 : vector<8x128xf32>
    %c4_i32_96 = arith.constant 4 : i32
    %328 = arith.index_cast %c4_i32_96 : i32 to index
    %c0_97 = arith.constant 0 : index
    %c0_98 = arith.constant 0 : index
    %329 = vector.load %arg15[%328, %c0_97, %c0_98] : memref<8x8x512xf32, #tpu.memory_space<vmem>>, vector<1x8x512xf32>
    %330 = vector.shape_cast %329 : vector<1x8x512xf32> to vector<8x512xf32>
    %331 = arith.truncf %327 : vector<8x128xf32> to vector<8x128xbf16>
    %cst_99 = arith.constant dense<0.000000e+00> : vector<8x512xf32>
    %332 = tpu.matmul %331, %237, %cst_99 {dimension_numbers = #tpu.dot_dimension_numbers<[1], [0], [0], [1], [0, 0, 1, 1], [], []>} : vector<8x128xbf16>, vector<128x512xbf16>, vector<8x512xf32> -> vector<8x512xf32>
    %333 = arith.addf %330, %332 : vector<8x512xf32>
    %334 = vector.extract_strided_slice %333 {offsets = [0, 0], sizes = [8, 384], strides = [1, 1]} : vector<8x512xf32> to vector<8x384xf32>
    %335 = arith.negf %334 : vector<8x384xf32>
    %336 = math.exp %335 : vector<8x384xf32>
    %cst_100 = arith.constant 1.000000e+00 : f32
    %337 = vector.broadcast %cst_100 : f32 to vector<8x384xf32>
    %338 = arith.addf %337, %336 : vector<8x384xf32>
    %339 = arith.divf %337, %338 : vector<8x384xf32>
    %340 = vector.extract_strided_slice %339 {offsets = [0, 0], sizes = [8, 128], strides = [1, 1]} : vector<8x384xf32> to vector<8x128xf32>
    %341 = vector.extract_strided_slice %339 {offsets = [0, 128], sizes = [8, 128], strides = [1, 1]} : vector<8x384xf32> to vector<8x128xf32>
    %342 = vector.extract_strided_slice %339 {offsets = [0, 256], sizes = [8, 128], strides = [1, 1]} : vector<8x384xf32> to vector<8x128xf32>
    %343 = vector.extract_strided_slice %333 {offsets = [0, 384], sizes = [8, 128], strides = [1, 1]} : vector<8x512xf32> to vector<8x128xf32>
    %344 = math.tanh %343 : vector<8x128xf32>
    %345 = arith.mulf %341, %325 : vector<8x128xf32>
    %346 = arith.mulf %340, %344 : vector<8x128xf32>
    %347 = arith.addf %345, %346 : vector<8x128xf32>
    %348 = math.tanh %347 : vector<8x128xf32>
    %349 = arith.mulf %342, %348 : vector<8x128xf32>
    %c5_i32_101 = arith.constant 5 : i32
    %350 = arith.index_cast %c5_i32_101 : i32 to index
    %c0_102 = arith.constant 0 : index
    %c0_103 = arith.constant 0 : index
    %351 = vector.load %arg15[%350, %c0_102, %c0_103] : memref<8x8x512xf32, #tpu.memory_space<vmem>>, vector<1x8x512xf32>
    %352 = vector.shape_cast %351 : vector<1x8x512xf32> to vector<8x512xf32>
    %353 = arith.truncf %349 : vector<8x128xf32> to vector<8x128xbf16>
    %cst_104 = arith.constant dense<0.000000e+00> : vector<8x512xf32>
    %354 = tpu.matmul %353, %237, %cst_104 {dimension_numbers = #tpu.dot_dimension_numbers<[1], [0], [0], [1], [0, 0, 1, 1], [], []>} : vector<8x128xbf16>, vector<128x512xbf16>, vector<8x512xf32> -> vector<8x512xf32>
    %355 = arith.addf %352, %354 : vector<8x512xf32>
    %356 = vector.extract_strided_slice %355 {offsets = [0, 0], sizes = [8, 384], strides = [1, 1]} : vector<8x512xf32> to vector<8x384xf32>
    %357 = arith.negf %356 : vector<8x384xf32>
    %358 = math.exp %357 : vector<8x384xf32>
    %cst_105 = arith.constant 1.000000e+00 : f32
    %359 = vector.broadcast %cst_105 : f32 to vector<8x384xf32>
    %360 = arith.addf %359, %358 : vector<8x384xf32>
    %361 = arith.divf %359, %360 : vector<8x384xf32>
    %362 = vector.extract_strided_slice %361 {offsets = [0, 0], sizes = [8, 128], strides = [1, 1]} : vector<8x384xf32> to vector<8x128xf32>
    %363 = vector.extract_strided_slice %361 {offsets = [0, 128], sizes = [8, 128], strides = [1, 1]} : vector<8x384xf32> to vector<8x128xf32>
    %364 = vector.extract_strided_slice %361 {offsets = [0, 256], sizes = [8, 128], strides = [1, 1]} : vector<8x384xf32> to vector<8x128xf32>
    %365 = vector.extract_strided_slice %355 {offsets = [0, 384], sizes = [8, 128], strides = [1, 1]} : vector<8x512xf32> to vector<8x128xf32>
    %366 = math.tanh %365 : vector<8x128xf32>
    %367 = arith.mulf %363, %347 : vector<8x128xf32>
    %368 = arith.mulf %362, %366 : vector<8x128xf32>
    %369 = arith.addf %367, %368 : vector<8x128xf32>
    %370 = math.tanh %369 : vector<8x128xf32>
    %371 = arith.mulf %364, %370 : vector<8x128xf32>
    %c6_i32_106 = arith.constant 6 : i32
    %372 = arith.index_cast %c6_i32_106 : i32 to index
    %c0_107 = arith.constant 0 : index
    %c0_108 = arith.constant 0 : index
    %373 = vector.load %arg15[%372, %c0_107, %c0_108] : memref<8x8x512xf32, #tpu.memory_space<vmem>>, vector<1x8x512xf32>
    %374 = vector.shape_cast %373 : vector<1x8x512xf32> to vector<8x512xf32>
    %375 = arith.truncf %371 : vector<8x128xf32> to vector<8x128xbf16>
    %cst_109 = arith.constant dense<0.000000e+00> : vector<8x512xf32>
    %376 = tpu.matmul %375, %237, %cst_109 {dimension_numbers = #tpu.dot_dimension_numbers<[1], [0], [0], [1], [0, 0, 1, 1], [], []>} : vector<8x128xbf16>, vector<128x512xbf16>, vector<8x512xf32> -> vector<8x512xf32>
    %377 = arith.addf %374, %376 : vector<8x512xf32>
    %378 = vector.extract_strided_slice %377 {offsets = [0, 0], sizes = [8, 384], strides = [1, 1]} : vector<8x512xf32> to vector<8x384xf32>
    %379 = arith.negf %378 : vector<8x384xf32>
    %380 = math.exp %379 : vector<8x384xf32>
    %cst_110 = arith.constant 1.000000e+00 : f32
    %381 = vector.broadcast %cst_110 : f32 to vector<8x384xf32>
    %382 = arith.addf %381, %380 : vector<8x384xf32>
    %383 = arith.divf %381, %382 : vector<8x384xf32>
    %384 = vector.extract_strided_slice %383 {offsets = [0, 0], sizes = [8, 128], strides = [1, 1]} : vector<8x384xf32> to vector<8x128xf32>
    %385 = vector.extract_strided_slice %383 {offsets = [0, 128], sizes = [8, 128], strides = [1, 1]} : vector<8x384xf32> to vector<8x128xf32>
    %386 = vector.extract_strided_slice %383 {offsets = [0, 256], sizes = [8, 128], strides = [1, 1]} : vector<8x384xf32> to vector<8x128xf32>
    %387 = vector.extract_strided_slice %377 {offsets = [0, 384], sizes = [8, 128], strides = [1, 1]} : vector<8x512xf32> to vector<8x128xf32>
    %388 = math.tanh %387 : vector<8x128xf32>
    %389 = arith.mulf %385, %369 : vector<8x128xf32>
    %390 = arith.mulf %384, %388 : vector<8x128xf32>
    %391 = arith.addf %389, %390 : vector<8x128xf32>
    %392 = math.tanh %391 : vector<8x128xf32>
    %393 = arith.mulf %386, %392 : vector<8x128xf32>
    %c7_i32_111 = arith.constant 7 : i32
    %394 = arith.index_cast %c7_i32_111 : i32 to index
    %c0_112 = arith.constant 0 : index
    %c0_113 = arith.constant 0 : index
    %395 = vector.load %arg15[%394, %c0_112, %c0_113] : memref<8x8x512xf32, #tpu.memory_space<vmem>>, vector<1x8x512xf32>
    %396 = vector.shape_cast %395 : vector<1x8x512xf32> to vector<8x512xf32>
    %397 = arith.truncf %393 : vector<8x128xf32> to vector<8x128xbf16>
    %cst_114 = arith.constant dense<0.000000e+00> : vector<8x512xf32>
    %398 = tpu.matmul %397, %237, %cst_114 {dimension_numbers = #tpu.dot_dimension_numbers<[1], [0], [0], [1], [0, 0, 1, 1], [], []>} : vector<8x128xbf16>, vector<128x512xbf16>, vector<8x512xf32> -> vector<8x512xf32>
    %399 = arith.addf %396, %398 : vector<8x512xf32>
    %400 = vector.extract_strided_slice %399 {offsets = [0, 0], sizes = [8, 384], strides = [1, 1]} : vector<8x512xf32> to vector<8x384xf32>
    %401 = arith.negf %400 : vector<8x384xf32>
    %402 = math.exp %401 : vector<8x384xf32>
    %cst_115 = arith.constant 1.000000e+00 : f32
    %403 = vector.broadcast %cst_115 : f32 to vector<8x384xf32>
    %404 = arith.addf %403, %402 : vector<8x384xf32>
    %405 = arith.divf %403, %404 : vector<8x384xf32>
    %406 = vector.extract_strided_slice %405 {offsets = [0, 0], sizes = [8, 128], strides = [1, 1]} : vector<8x384xf32> to vector<8x128xf32>
    %407 = vector.extract_strided_slice %405 {offsets = [0, 128], sizes = [8, 128], strides = [1, 1]} : vector<8x384xf32> to vector<8x128xf32>
    %408 = vector.extract_strided_slice %405 {offsets = [0, 256], sizes = [8, 128], strides = [1, 1]} : vector<8x384xf32> to vector<8x128xf32>
    %409 = vector.extract_strided_slice %399 {offsets = [0, 384], sizes = [8, 128], strides = [1, 1]} : vector<8x512xf32> to vector<8x128xf32>
    %410 = math.tanh %409 : vector<8x128xf32>
    %411 = arith.mulf %407, %391 : vector<8x128xf32>
    %412 = arith.mulf %406, %410 : vector<8x128xf32>
    %413 = arith.addf %411, %412 : vector<8x128xf32>
    %414 = math.tanh %413 : vector<8x128xf32>
    %415 = arith.mulf %408, %414 : vector<8x128xf32>
    %c8_i32_116 = arith.constant 8 : i32
    %416 = arith.truncf %415 : vector<8x128xf32> to vector<8x128xbf16>
    %c0_117 = arith.constant 0 : index
    %c0_118 = arith.constant 0 : index
    %417 = vector.load %arg9[%c0_117, %c0_118] : memref<128x128xbf16, #tpu.memory_space<vmem>>, vector<128x128xbf16>
    %cst_119 = arith.constant dense<0.000000e+00> : vector<8x128xf32>
    %418 = tpu.matmul %416, %417, %cst_119 {dimension_numbers = #tpu.dot_dimension_numbers<[1], [0], [0], [1], [0, 0, 1, 1], [], []>} : vector<8x128xbf16>, vector<128x128xbf16>, vector<8x128xf32> -> vector<8x128xf32>
    %c0_120 = arith.constant 0 : index
    %c0_121 = arith.constant 0 : index
    %419 = vector.load %arg8[%c0_120, %c0_121] : memref<8x128xbf16, #tpu.memory_space<vmem>>, vector<8x128xbf16>
    %c0_122 = arith.constant 0 : index
    %c0_123 = arith.constant 0 : index
    %420 = vector.load %arg10[%c0_122, %c0_123] : memref<128x128xbf16, #tpu.memory_space<vmem>>, vector<128x128xbf16>
    %cst_124 = arith.constant dense<0.000000e+00> : vector<8x128xf32>
    %421 = tpu.matmul %419, %420, %cst_124 {dimension_numbers = #tpu.dot_dimension_numbers<[1], [0], [0], [1], [0, 0, 1, 1], [], []>} : vector<8x128xbf16>, vector<128x128xbf16>, vector<8x128xf32> -> vector<8x128xf32>
    %422 = arith.addf %418, %421 : vector<8x128xf32>
    %c0_125 = arith.constant 0 : index
    %c0_126 = arith.constant 0 : index
    %423 = vector.load %arg11[%c0_125, %c0_126] : memref<1x128xf32, #tpu.memory_space<vmem>>, vector<1x128xf32>
    %424 = vector.broadcast %423 : vector<1x128xf32> to vector<8x128xf32>
    %425 = arith.addf %422, %424 : vector<8x128xf32>
    %cst_127 = arith.constant 0.000000e+00 : f32
    %426 = vector.broadcast %cst_127 : f32 to vector<8x128xf32>
    %427 = arith.maximumf %425, %426 : vector<8x128xf32>
    %428 = arith.truncf %427 : vector<8x128xf32> to vector<8x128xbf16>
    %c0_128 = arith.constant 0 : index
    %c0_129 = arith.constant 0 : index
    %429 = vector.load %arg12[%c0_128, %c0_129] : memref<128x128xbf16, #tpu.memory_space<vmem>>, vector<128x128xbf16>
    %cst_130 = arith.constant dense<0.000000e+00> : vector<8x128xf32>
    %430 = tpu.matmul %428, %429, %cst_130 {dimension_numbers = #tpu.dot_dimension_numbers<[1], [0], [0], [1], [0, 0, 1, 1], [], []>} : vector<8x128xbf16>, vector<128x128xbf16>, vector<8x128xf32> -> vector<8x128xf32>
    %c0_131 = arith.constant 0 : index
    %c0_132 = arith.constant 0 : index
    %431 = vector.load %arg13[%c0_131, %c0_132] : memref<1x128xf32, #tpu.memory_space<vmem>>, vector<1x128xf32>
    %432 = vector.broadcast %431 : vector<1x128xf32> to vector<8x128xf32>
    %433 = arith.addf %430, %432 : vector<8x128xf32>
    %c0_133 = arith.constant 0 : index
    %c0_134 = arith.constant 0 : index
    %434 = vector.load %arg14[%c0_133, %c0_134] : memref<8x128xf32, #tpu.memory_space<vmem>>, vector<8x128xf32>
    tpu.vector_store %arg14[%c0_133, %c0_134], %433 {strides = array<i32>} : memref<8x128xf32, #tpu.memory_space<vmem>>, vector<8x128xf32>,
    return
  }
  func.func @transform_0(%arg0: i32) -> (i32, i32, i32) {
    %c0_i32 = arith.constant 0 : i32
    %c0_i32_0 = arith.constant 0 : i32
    %c0_i32_1 = arith.constant 0 : i32
    return %c0_i32, %arg0, %c0_i32_0 : i32, i32, i32
  }
  func.func @transform_1(%arg0: i32) -> (i32, i32) {
    %c0_i32 = arith.constant 0 : i32
    %c0_i32_0 = arith.constant 0 : i32
    %c0_i32_1 = arith.constant 0 : i32
    return %c0_i32, %c0_i32_0 : i32, i32
  }
  func.func @transform_2(%arg0: i32) -> (i32, i32) {
    %c0_i32 = arith.constant 0 : i32
    %c0_i32_0 = arith.constant 0 : i32
    %c0_i32_1 = arith.constant 0 : i32
    return %c0_i32, %c0_i32_0 : i32, i32
  }
  func.func @transform_3(%arg0: i32) -> (i32, i32) {
    %c0_i32 = arith.constant 0 : i32
    %c0_i32_0 = arith.constant 0 : i32
    %c0_i32_1 = arith.constant 0 : i32
    return %c0_i32, %c0_i32_0 : i32, i32
  }
  func.func @transform_4(%arg0: i32) -> (i32, i32) {
    %c0_i32 = arith.constant 0 : i32
    %c0_i32_0 = arith.constant 0 : i32
    %c0_i32_1 = arith.constant 0 : i32
    return %c0_i32, %c0_i32_0 : i32, i32
  }
  func.func @transform_5(%arg0: i32) -> (i32, i32) {
    %c0_i32 = arith.constant 0 : i32
    %c0_i32_0 = arith.constant 0 : i32
    %c0_i32_1 = arith.constant 0 : i32
    return %c0_i32, %c0_i32_0 : i32, i32
  }
  func.func @transform_6(%arg0: i32) -> (i32, i32) {
    %c0_i32 = arith.constant 0 : i32
    %c0_i32_0 = arith.constant 0 : i32
    %c0_i32_1 = arith.constant 0 : i32
    return %c0_i32, %c0_i32_0 : i32, i32
  }
  func.func @transform_7(%arg0: i32) -> (i32, i32) {
    %c0_i32 = arith.constant 0 : i32
    %c0_i32_0 = arith.constant 0 : i32
    return %arg0, %c0_i32 : i32, i32
  }
  func.func @transform_8(%arg0: i32) -> (i32, i32) {
    %c0_i32 = arith.constant 0 : i32
    %c0_i32_0 = arith.constant 0 : i32
    %c0_i32_1 = arith.constant 0 : i32
    return %c0_i32, %c0_i32_0 : i32, i32
  }
  func.func @transform_9(%arg0: i32) -> (i32, i32) {
    %c0_i32 = arith.constant 0 : i32
    %c0_i32_0 = arith.constant 0 : i32
    %c0_i32_1 = arith.constant 0 : i32
    return %c0_i32, %c0_i32_0 : i32, i32
  }
  func.func @transform_10(%arg0: i32) -> (i32, i32) {
    %c0_i32 = arith.constant 0 : i32
    %c0_i32_0 = arith.constant 0 : i32
    %c0_i32_1 = arith.constant 0 : i32
    return %c0_i32, %c0_i32_0 : i32, i32
  }
  func.func @transform_11(%arg0: i32) -> (i32, i32) {
    %c0_i32 = arith.constant 0 : i32
    %c0_i32_0 = arith.constant 0 : i32
    %c0_i32_1 = arith.constant 0 : i32
    return %c0_i32, %c0_i32_0 : i32, i32
  }
  func.func @transform_12(%arg0: i32) -> (i32, i32) {
    %c0_i32 = arith.constant 0 : i32
    %c0_i32_0 = arith.constant 0 : i32
    %c0_i32_1 = arith.constant 0 : i32
    return %c0_i32, %c0_i32_0 : i32, i32
  }
  func.func @transform_13(%arg0: i32) -> (i32, i32) {
    %c0_i32 = arith.constant 0 : i32
    %c0_i32_0 = arith.constant 0 : i32
    return %arg0, %c0_i32 : i32, i32
  }
}

</mosaic_0001>

<llo_original>
// kernel: lstm_classifier_v2_forward.1
$region0: #{lstm_classifier_v2_forward.1}
  #allocation0 [shape = 'u32[]', space=smem, size = 0x4, offset = 0x4, fixed_abs, tag = 'smem constant byte address 0x4 - core index']
  #allocation1 [shape = 'u32[144,128]{1,0:T(1,128)}', space=vmem, size = 0x12000, scoped, tag = 'internal scratch']
  #allocation2 [shape = 'f32[8,8,512]{2,1,0:T(8,128)}', space=vmem, size = 0x20000, scoped, tag = 'scratch operand']
  #allocation3 [shape = 'bf16[8,8,128]{2,1,0:T(8,128)(2,1)}', space=vmem, size = 0x4000, scoped, tag = 'scratch operand']
  %s0 = inlined_call_operand.vmem [shape: bf16[8,8,128], index: 0, kind: input, shape index: {}]
  %s1 = inlined_call_operand.vmem [shape: bf16[128,512], index: 1, kind: input, shape index: {}]
  %s2 = inlined_call_operand.vmem [shape: bf16[128,512], index: 2, kind: input, shape index: {}]
  %s3 = inlined_call_operand.vmem [shape: f32[1,512], index: 3, kind: input, shape index: {}]
  %s4 = inlined_call_operand.vmem [shape: bf16[128,512], index: 4, kind: input, shape index: {}]
  %s5 = inlined_call_operand.vmem [shape: bf16[128,512], index: 5, kind: input, shape index: {}]
  %s6 = inlined_call_operand.vmem [shape: f32[1,512], index: 6, kind: input, shape index: {}]
  %s7 = inlined_call_operand.vmem [shape: bf16[8,128], index: 7, kind: input, shape index: {}]
  %s8 = inlined_call_operand.vmem [shape: bf16[128,128], index: 8, kind: input, shape index: {}]
  %s9 = inlined_call_operand.vmem [shape: bf16[128,128], index: 9, kind: input, shape index: {}]
  %s10 = inlined_call_operand.vmem [shape: f32[1,128], index: 10, kind: input, shape index: {}]
  %s11 = inlined_call_operand.vmem [shape: bf16[128,128], index: 11, kind: input, shape index: {}]
  %s12 = inlined_call_operand.vmem [shape: f32[1,128], index: 12, kind: input, shape index: {}]
  %s13 = inlined_call_operand.vmem [shape: f32[8,128], index: 13, kind: output, shape index: {}]
  %s14 = sld [smem:[#allocation0]]
  $region62: #{lstm_classifier_v2_forward.1} parent=0
    _
  %s16 = ssub.s32 1, %s14
  %s17 = scalar_select 0, %s16, %s14
  // Predicated region
  $region2: #{lstm_classifier_v2_forward.1} parent=0 // pred_check
    _
  $region3: #{lstm_classifier_v2_forward.1} parent=0 // pred_check_branch
    %19 = sbr.rel (0) target = $region5
  $region4: #{lstm_classifier_v2_forward.1} parent=0 // pred_region
    _
  $region5: #{lstm_classifier_v2_forward.1} parent=0 // pred_fallthru
    _
  // Predicated region
  $region6: #{lstm_classifier_v2_forward.1} parent=0 // pred_check
    _
  $region7: #{lstm_classifier_v2_forward.1} parent=0 // pred_check_branch
    %21 = sbr.rel (0) target = $region9
  $region8: #{lstm_classifier_v2_forward.1} parent=0 // pred_region
    _
  $region9: #{lstm_classifier_v2_forward.1} parent=0 // pred_fallthru
    _
  // Predicated region
  $region10: #{lstm_classifier_v2_forward.1} parent=0 // pred_check
    _
  $region11: #{lstm_classifier_v2_forward.1} parent=0 // pred_check_branch
    %23 = sbr.rel (0) target = $region13
  $region12: #{lstm_classifier_v2_forward.1} parent=0 // pred_region
    _
  $region13: #{lstm_classifier_v2_forward.1} parent=0 // pred_fallthru
    _
  // Predicated region
  $region14: #{lstm_classifier_v2_forward.1} parent=0 // pred_check
    _
  $region15: #{lstm_classifier_v2_forward.1} parent=0 // pred_check_branch
    %25 = sbr.rel (0) target = $region17
  $region16: #{lstm_classifier_v2_forward.1} parent=0 // pred_region
    _
  $region17: #{lstm_classifier_v2_forward.1} parent=0 // pred_fallthru
    _
  // Predicated region
  $region18: #{lstm_classifier_v2_forward.1} parent=0 // pred_check
    _
  $region19: #{lstm_classifier_v2_forward.1} parent=0 // pred_check_branch
    %27 = sbr.rel (0) target = $region21
  $region20: #{lstm_classifier_v2_forward.1} parent=0 // pred_region
    _
  $region21: #{lstm_classifier_v2_forward.1} parent=0 // pred_fallthru
    _
  // Predicated region
  $region22: #{lstm_classifier_v2_forward.1} parent=0 // pred_check
    _
  $region23: #{lstm_classifier_v2_forward.1} parent=0 // pred_check_branch
    %29 = sbr.rel (0) target = $region25
  $region24: #{lstm_classifier_v2_forward.1} parent=0 // pred_region
    _
  $region25: #{lstm_classifier_v2_forward.1} parent=0 // pred_fallthru
    _
  // Predicated region
  $region26: #{lstm_classifier_v2_forward.1} parent=0 // pred_check
    _
  $region27: #{lstm_classifier_v2_forward.1} parent=0 // pred_check_branch
    %31 = sbr.rel (0) target = $region29
  $region28: #{lstm_classifier_v2_forward.1} parent=0 // pred_region
    _
  $region29: #{lstm_classifier_v2_forward.1} parent=0 // pred_fallthru
    _
  // Predicated region
  $region30: #{lstm_classifier_v2_forward.1} parent=0 // pred_check
    _
  $region31: #{lstm_classifier_v2_forward.1} parent=0 // pred_check_branch
    %33 = sbr.rel (0) target = $region33
  $region32: #{lstm_classifier_v2_forward.1} parent=0 // pred_region
    _
  $region33: #{lstm_classifier_v2_forward.1} parent=0 // pred_fallthru
    _
  // Predicated region
  $region34: #{lstm_classifier_v2_forward.1} parent=0 // pred_check
    _
  $region35: #{lstm_classifier_v2_forward.1} parent=0 // pred_check_branch
    %35 = sbr.rel (0) target = $region37
  $region36: #{lstm_classifier_v2_forward.1} parent=0 // pred_region
    _
  $region37: #{lstm_classifier_v2_forward.1} parent=0 // pred_fallthru
    _
  // Predicated region
  $region38: #{lstm_classifier_v2_forward.1} parent=0 // pred_check
    _
  $region39: #{lstm_classifier_v2_forward.1} parent=0 // pred_check_branch
    %37 = sbr.rel (0) target = $region41
  $region40: #{lstm_classifier_v2_forward.1} parent=0 // pred_region
    _
  $region41: #{lstm_classifier_v2_forward.1} parent=0 // pred_fallthru
    _
  // Predicated region
  $region42: #{lstm_classifier_v2_forward.1} parent=0 // pred_check
    _
  $region43: #{lstm_classifier_v2_forward.1} parent=0 // pred_check_branch
    %39 = sbr.rel (0) target = $region45
  $region44: #{lstm_classifier_v2_forward.1} parent=0 // pred_region
    _
  $region45: #{lstm_classifier_v2_forward.1} parent=0 // pred_fallthru
    _
  // Predicated region
  $region46: #{lstm_classifier_v2_forward.1} parent=0 // pred_check
    _
  $region47: #{lstm_classifier_v2_forward.1} parent=0 // pred_check_branch
    %41 = sbr.rel (0) target = $region49
  $region48: #{lstm_classifier_v2_forward.1} parent=0 // pred_region
    _
  $region49: #{lstm_classifier_v2_forward.1} parent=0 // pred_fallthru
    _
  // Predicated region
  $region50: #{lstm_classifier_v2_forward.1} parent=0 // pred_check
    _
  $region51: #{lstm_classifier_v2_forward.1} parent=0 // pred_check_branch
    %43 = sbr.rel (0) target = $region53
  $region52: #{lstm_classifier_v2_forward.1} parent=0 // pred_region
    _
  $region53: #{lstm_classifier_v2_forward.1} parent=0 // pred_fallthru
    _
  %v45 = vld [vmem:[%s0] sm:$0xf]
  %v46 = vld [vmem:[%s0 + $0x4] sm:$0xf]
  %v47 = vld [vmem:[%s0 + $0x8] sm:$0xf]
  %v48 = vld [vmem:[%s0 + $0xc] sm:$0xf]
  %v49 = vld [vmem:[%s0 + $0x10] sm:$0xf]
  %v50 = vld [vmem:[%s0 + $0x14] sm:$0xf]
  %v51 = vld [vmem:[%s0 + $0x18] sm:$0xf]
  %v52 = vld [vmem:[%s0 + $0x1c] sm:$0xf]
  %v53 = vld [vmem:[%s1] sm:$0xff]
  %v54 = vld [vmem:[%s1 + $0x8] sm:$0xff]
  %v55 = vld [vmem:[%s1 + $0x10] sm:$0xff]
  %v56 = vld [vmem:[%s1 + $0x18] sm:$0xff]
  %v57 = vld [vmem:[%s1 + $0x20] sm:$0xff]
  %v58 = vld [vmem:[%s1 + $0x28] sm:$0xff]
  %v59 = vld [vmem:[%s1 + $0x30] sm:$0xff]
  %v60 = vld [vmem:[%s1 + $0x38] sm:$0xff]
  %v61 = vld [vmem:[%s1 + $0x40] sm:$0xff]
  %v62 = vld [vmem:[%s1 + $0x48] sm:$0xff]
  %v63 = vld [vmem:[%s1 + $0x50] sm:$0xff]
  %v64 = vld [vmem:[%s1 + $0x58] sm:$0xff]
  %v65 = vld [vmem:[%s1 + $0x60] sm:$0xff]
  %v66 = vld [vmem:[%s1 + $0x68] sm:$0xff]
  %v67 = vld [vmem:[%s1 + $0x70] sm:$0xff]
  %v68 = vld [vmem:[%s1 + $0x78] sm:$0xff]
  %v69 = vld [vmem:[%s1 + $0x80] sm:$0xff]
  %v70 = vld [vmem:[%s1 + $0x88] sm:$0xff]
  %v71 = vld [vmem:[%s1 + $0x90] sm:$0xff]
  %v72 = vld [vmem:[%s1 + $0x98] sm:$0xff]
  %v73 = vld [vmem:[%s1 + $0xa0] sm:$0xff]
  %v74 = vld [vmem:[%s1 + $0xa8] sm:$0xff]
  %v75 = vld [vmem:[%s1 + $0xb0] sm:$0xff]
  %v76 = vld [vmem:[%s1 + $0xb8] sm:$0xff]
  %v77 = vld [vmem:[%s1 + $0xc0] sm:$0xff]
  %v78 = vld [vmem:[%s1 + $0xc8] sm:$0xff]
  %v79 = vld [vmem:[%s1 + $0xd0] sm:$0xff]
  %v80 = vld [vmem:[%s1 + $0xd8] sm:$0xff]
  %v81 = vld [vmem:[%s1 + $0xe0] sm:$0xff]
  %v82 = vld [vmem:[%s1 + $0xe8] sm:$0xff]
  %v83 = vld [vmem:[%s1 + $0xf0] sm:$0xff]
  %v84 = vld [vmem:[%s1 + $0xf8] sm:$0xff]
  %v85 = vld [vmem:[%s3] sm:$0xf]
  %v87 = vlaneseq
  %v88 = vshrl.u32 %v87, 7
  %v89 = vsub.s32 0, %v88
  %v90 = vrot.slane %v85, %v89
  %v91 = vlaneseq
  %v92 = vshrl.u32 %v91, 7
  %v93 = vsub.s32 1, %v92
  %v94 = vrot.slane %v85, %v93
  %v95 = vlaneseq
  %v96 = vshrl.u32 %v95, 7
  %v97 = vsub.s32 2, %v96
  %v98 = vrot.slane %v85, %v97
  %v99 = vlaneseq
  %v100 = vshrl.u32 %v99, 7
  %v101 = vsub.s32 3, %v100
  %v102 = vrot.slane %v85, %v101
  %v115 = vunpack.c.l.b16 %v45
  %v116 = vunpack.c.l.b16 %v46
  %v117 = vunpack.c.l.b16 %v47
  %v118 = vunpack.c.l.b16 %v48
  %v119 = vunpack.c.l.b16 %v49
  %v120 = vunpack.c.l.b16 %v50
  %v121 = vunpack.c.l.b16 %v51
  %v122 = vunpack.c.l.b16 %v52
  %v123 = vpack.c.b16 %v116, %v115
  %v124 = vpack.c.b16 %v118, %v117
  %v125 = vpack.c.b16 %v120, %v119
  %v126 = vpack.c.b16 %v122, %v121
  %v163 = vunpack.c.l.b16 %v53
  %v164 = vunpack.c.h.b16 %v53
  %v165 = vunpack.c.l.b16 %v54
  %v166 = vunpack.c.h.b16 %v54
  %v167 = vunpack.c.l.b16 %v55
  %v168 = vunpack.c.h.b16 %v55
  %v169 = vunpack.c.l.b16 %v56
  %v170 = vunpack.c.h.b16 %v56
  %v171 = vunpack.c.l.b16 %v57
  %v172 = vunpack.c.h.b16 %v57
  %v173 = vunpack.c.l.b16 %v58
  %v174 = vunpack.c.h.b16 %v58
  %v175 = vunpack.c.l.b16 %v59
  %v176 = vunpack.c.h.b16 %v59
  %v177 = vunpack.c.l.b16 %v60
  %v178 = vunpack.c.h.b16 %v60
  %v179 = vunpack.c.l.b16 %v61
  %v180 = vunpack.c.h.b16 %v61
  %v181 = vunpack.c.l.b16 %v62
  %v182 = vunpack.c.h.b16 %v62
  %v183 = vunpack.c.l.b16 %v63
  %v184 = vunpack.c.h.b16 %v63
  %v185 = vunpack.c.l.b16 %v64
  %v186 = vunpack.c.h.b16 %v64
  %v187 = vunpack.c.l.b16 %v65
  %v188 = vunpack.c.h.b16 %v65
  %v189 = vunpack.c.l.b16 %v66
  %v190 = vunpack.c.h.b16 %v66
  %v191 = vunpack.c.l.b16 %v67
  %v192 = vunpack.c.h.b16 %v67
  %v193 = vunpack.c.l.b16 %v68
  %v194 = vunpack.c.h.b16 %v68
  %v195 = vunpack.c.l.b16 %v69
  %v196 = vunpack.c.h.b16 %v69
  %v197 = vunpack.c.l.b16 %v70
  %v198 = vunpack.c.h.b16 %v70
  %v199 = vunpack.c.l.b16 %v71
  %v200 = vunpack.c.h.b16 %v71
  %v201 = vunpack.c.l.b16 %v72
  %v202 = vunpack.c.h.b16 %v72
  %v203 = vunpack.c.l.b16 %v73
  %v204 = vunpack.c.h.b16 %v73
  %v205 = vunpack.c.l.b16 %v74
  %v206 = vunpack.c.h.b16 %v74
  %v207 = vunpack.c.l.b16 %v75
  %v208 = vunpack.c.h.b16 %v75
  %v209 = vunpack.c.l.b16 %v76
  %v210 = vunpack.c.h.b16 %v76
  %v211 = vunpack.c.l.b16 %v77
  %v212 = vunpack.c.h.b16 %v77
  %v213 = vunpack.c.l.b16 %v78
  %v214 = vunpack.c.h.b16 %v78
  %v215 = vunpack.c.l.b16 %v79
  %v216 = vunpack.c.h.b16 %v79
  %v217 = vunpack.c.l.b16 %v80
  %v218 = vunpack.c.h.b16 %v80
  %v219 = vunpack.c.l.b16 %v81
  %v220 = vunpack.c.h.b16 %v81
  %v221 = vunpack.c.l.b16 %v82
  %v222 = vunpack.c.h.b16 %v82
  %v223 = vunpack.c.l.b16 %v83
  %v224 = vunpack.c.h.b16 %v83
  %v225 = vunpack.c.l.b16 %v84
  %v226 = vunpack.c.h.b16 %v84
  %v227 = vpack.c.b16 %v167, %v163
  %v228 = vpack.c.b16 %v168, %v164
  %v229 = vpack.c.b16 %v169, %v165
  %v230 = vpack.c.b16 %v170, %v166
  %v231 = vpack.c.b16 %v175, %v171
  %v232 = vpack.c.b16 %v176, %v172
  %v233 = vpack.c.b16 %v177, %v173
  %v234 = vpack.c.b16 %v178, %v174
  %v235 = vpack.c.b16 %v183, %v179
  %v236 = vpack.c.b16 %v184, %v180
  %v237 = vpack.c.b16 %v185, %v181
  %v238 = vpack.c.b16 %v186, %v182
  %v239 = vpack.c.b16 %v191, %v187
  %v240 = vpack.c.b16 %v192, %v188
  %v241 = vpack.c.b16 %v193, %v189
  %v242 = vpack.c.b16 %v194, %v190
  %v243 = vpack.c.b16 %v199, %v195
  %v244 = vpack.c.b16 %v200, %v196
  %v245 = vpack.c.b16 %v201, %v197
  %v246 = vpack.c.b16 %v202, %v198
  %v247 = vpack.c.b16 %v207, %v203
  %v248 = vpack.c.b16 %v208, %v204
  %v249 = vpack.c.b16 %v209, %v205
  %v250 = vpack.c.b16 %v210, %v206
  %v251 = vpack.c.b16 %v215, %v211
  %v252 = vpack.c.b16 %v216, %v212
  %v253 = vpack.c.b16 %v217, %v213
  %v254 = vpack.c.b16 %v218, %v214
  %v255 = vpack.c.b16 %v223, %v219
  %v256 = vpack.c.b16 %v224, %v220
  %v257 = vpack.c.b16 %v225, %v221
  %v258 = vpack.c.b16 %v226, %v222
  %291 = vmatprep.subr.bf16.mxu0 %v256
  %292 = vmatpush1.bf16.msra.mxu0 %v255
  %293 = vmatprep.subr.bf16.mxu0 %v252
  %294 = vmatpush1.bf16.msra.mxu0 %v251
  %295 = vmatprep.subr.bf16.mxu0 %v248
  %296 = vmatpush1.bf16.msra.mxu0 %v247
  %297 = vmatprep.subr.bf16.mxu0 %v244
  %298 = vmatpush1.bf16.msra.mxu0 %v243
  %299 = vmatprep.subr.bf16.mxu0 %v240
  %300 = vmatpush1.bf16.msra.mxu0 %v239
  %301 = vmatprep.subr.bf16.mxu0 %v236
  %302 = vmatpush1.bf16.msra.mxu0 %v235
  %303 = vmatprep.subr.bf16.mxu0 %v232
  %304 = vmatpush1.bf16.msra.mxu0 %v231
  %305 = vmatprep.subr.bf16.mxu0 %v228
  %306 = vmatpush1.bf16.msra.mxu0 %v227
  %307 = vmatprep.subr.bf16.mxu0 0
  %308 = vmatpush2.bf16.msra.mxu0 0
  %309 = vmatprep.subr.bf16.mxu0 0
  %310 = vmatpush2.bf16.msra.mxu0 0
  %311 = vmatprep.subr.bf16.mxu0 0
  %312 = vmatpush2.bf16.msra.mxu0 0
  %313 = vmatprep.subr.bf16.mxu0 0
  %314 = vmatpush2.bf16.msra.mxu0 0
  %315 = vmatprep.subr.bf16.mxu0 0
  %316 = vmatpush2.bf16.msra.mxu0 0
  %317 = vmatprep.subr.bf16.mxu0 0
  %318 = vmatpush2.bf16.msra.mxu0 0
  %319 = vmatprep.subr.bf16.mxu0 0
  %320 = vmatpush2.bf16.msra.mxu0 0
  %321 = vmatprep.subr.bf16.mxu0 0
  %322 = vmatpush2.bf16.msra.mxu0 0
  %323 = vmatprep.mubr.bf16.mxu0 0
  %324 = vmatmul.mubr.bf16.gmra.mxu0 %v123
  %v325 = vpop.f32.mrf.mxu0
  %v326 = vadd.f32 %v90, %v325
  %v327 = vpop.f32.mrf.mxu0
  %v328 = vadd.f32 %v94, %v327
  %v329 = vpop.f32.mrf.mxu0
  %v330 = vadd.f32 %v90, %v329
  %v331 = vpop.f32.mrf.mxu0
  %v332 = vadd.f32 %v94, %v331
  %333 = vmatprep.mubr.bf16.mxu0 0
  %334 = vmatmul.mubr.bf16.gmra.mxu0 %v124
  %v335 = vpop.f32.mrf.mxu0
  %v336 = vadd.f32 %v90, %v335
  %v337 = vpop.f32.mrf.mxu0
  %v338 = vadd.f32 %v94, %v337
  %v339 = vpop.f32.mrf.mxu0
  %v340 = vadd.f32 %v90, %v339
  %v341 = vpop.f32.mrf.mxu0
  %v342 = vadd.f32 %v94, %v341
  %343 = vmatprep.mubr.bf16.mxu0 0
  %344 = vmatmul.mubr.bf16.gmra.mxu0 %v125
  %v345 = vpop.f32.mrf.mxu0
  %v346 = vadd.f32 %v90, %v345
  %v347 = vpop.f32.mrf.mxu0
  %v348 = vadd.f32 %v94, %v347
  %v349 = vpop.f32.mrf.mxu0
  %v350 = vadd.f32 %v90, %v349
  %v351 = vpop.f32.mrf.mxu0
  %v352 = vadd.f32 %v94, %v351
  %353 = vmatprep.mubr.bf16.mxu0 0
  %354 = vmatmul.mubr.bf16.gmra.mxu0 %v126
  %v355 = vpop.f32.mrf.mxu0
  %v356 = vadd.f32 %v90, %v355
  %v357 = vpop.f32.mrf.mxu0
  %v358 = vadd.f32 %v94, %v357
  %v359 = vpop.f32.mrf.mxu0
  %v360 = vadd.f32 %v90, %v359
  %v361 = vpop.f32.mrf.mxu0
  %v362 = vadd.f32 %v94, %v361
  %363 = vdwg.mxu0
  %364 = vmatprep.subr.bf16.mxu0 %v258
  %365 = vmatpush1.bf16.msra.mxu0 %v257
  %366 = vmatprep.subr.bf16.mxu0 %v254
  %367 = vmatpush1.bf16.msra.mxu0 %v253
  %368 = vmatprep.subr.bf16.mxu0 %v250
  %369 = vmatpush1.bf16.msra.mxu0 %v249
  %370 = vmatprep.subr.bf16.mxu0 %v246
  %371 = vmatpush1.bf16.msra.mxu0 %v245
  %372 = vmatprep.subr.bf16.mxu0 %v242
  %373 = vmatpush1.bf16.msra.mxu0 %v241
  %374 = vmatprep.subr.bf16.mxu0 %v238
  %375 = vmatpush1.bf16.msra.mxu0 %v237
  %376 = vmatprep.subr.bf16.mxu0 %v234
  %377 = vmatpush1.bf16.msra.mxu0 %v233
  %378 = vmatprep.subr.bf16.mxu0 %v230
  %379 = vmatpush1.bf16.msra.mxu0 %v229
  %380 = vmatprep.subr.bf16.mxu0 0
  %381 = vmatpush2.bf16.msra.mxu0 0
  %382 = vmatprep.subr.bf16.mxu0 0
  %383 = vmatpush2.bf16.msra.mxu0 0
  %384 = vmatprep.subr.bf16.mxu0 0
  %385 = vmatpush2.bf16.msra.mxu0 0
  %386 = vmatprep.subr.bf16.mxu0 0
  %387 = vmatpush2.bf16.msra.mxu0 0
  %388 = vmatprep.subr.bf16.mxu0 0
  %389 = vmatpush2.bf16.msra.mxu0 0
  %390 = vmatprep.subr.bf16.mxu0 0
  %391 = vmatpush2.bf16.msra.mxu0 0
  %392 = vmatprep.subr.bf16.mxu0 0
  %393 = vmatpush2.bf16.msra.mxu0 0
  %394 = vmatprep.subr.bf16.mxu0 0
  %395 = vmatpush2.bf16.msra.mxu0 0
  %396 = vmatprep.mubr.bf16.mxu0 0
  %397 = vmatmul.mubr.bf16.gmra.mxu0 %v123
  %v398 = vpop.f32.mrf.mxu0
  %v399 = vadd.f32 %v98, %v398
  %v400 = vpop.f32.mrf.mxu0
  %v401 = vadd.f32 %v102, %v400
  %v402 = vpop.f32.mrf.mxu0
  %v403 = vadd.f32 %v98, %v402
  %v404 = vpop.f32.mrf.mxu0
  %v405 = vadd.f32 %v102, %v404
  %406 = vmatprep.mubr.bf16.mxu0 0
  %407 = vmatmul.mubr.bf16.gmra.mxu0 %v124
  %v408 = vpop.f32.mrf.mxu0
  %v409 = vadd.f32 %v98, %v408
  %v410 = vpop.f32.mrf.mxu0
  %v411 = vadd.f32 %v102, %v410
  %v412 = vpop.f32.mrf.mxu0
  %v413 = vadd.f32 %v98, %v412
  %v414 = vpop.f32.mrf.mxu0
  %v415 = vadd.f32 %v102, %v414
  %416 = vmatprep.mubr.bf16.mxu0 0
  %417 = vmatmul.mubr.bf16.gmra.mxu0 %v125
  %v418 = vpop.f32.mrf.mxu0
  %v419 = vadd.f32 %v98, %v418
  %v420 = vpop.f32.mrf.mxu0
  %v421 = vadd.f32 %v102, %v420
  %v422 = vpop.f32.mrf.mxu0
  %v423 = vadd.f32 %v98, %v422
  %v424 = vpop.f32.mrf.mxu0
  %v425 = vadd.f32 %v102, %v424
  %426 = vmatprep.mubr.bf16.mxu0 0
  %427 = vmatmul.mubr.bf16.gmra.mxu0 %v126
  %v428 = vpop.f32.mrf.mxu0
  %v429 = vadd.f32 %v98, %v428
  %v430 = vpop.f32.mrf.mxu0
  %v431 = vadd.f32 %v102, %v430
  %v432 = vpop.f32.mrf.mxu0
  %v433 = vadd.f32 %v98, %v432
  %v434 = vpop.f32.mrf.mxu0
  %v435 = vadd.f32 %v102, %v434
  %436 = vdwg.mxu0
  %437 = vst [vmem:[#allocation2] sm:$0xff] %v326
  %438 = vst [vmem:[#allocation2 + $0x8] sm:$0xff] %v328
  %439 = vst [vmem:[#allocation2 + $0x10] sm:$0xff] %v399
  %440 = vst [vmem:[#allocation2 + $0x18] sm:$0xff] %v401
  %441 = vst [vmem:[#allocation2 + $0x20] sm:$0xff] %v330
  %442 = vst [vmem:[#allocation2 + $0x28] sm:$0xff] %v332
  %443 = vst [vmem:[#allocation2 + $0x30] sm:$0xff] %v403
  %444 = vst [vmem:[#allocation2 + $0x38] sm:$0xff] %v405
  %445 = vst [vmem:[#allocation2 + $0x40] sm:$0xff] %v336
  %446 = vst [vmem:[#allocation2 + $0x48] sm:$0xff] %v338
  %447 = vst [vmem:[#allocation2 + $0x50] sm:$0xff] %v409
  %448 = vst [vmem:[#allocation2 + $0x58] sm:$0xff] %v411
  %449 = vst [vmem:[#allocation2 + $0x60] sm:$0xff] %v340
  %450 = vst [vmem:[#allocation2 + $0x68] sm:$0xff] %v342
  %451 = vst [vmem:[#allocation2 + $0x70] sm:$0xff] %v413
  %452 = vst [vmem:[#allocation2 + $0x78] sm:$0xff] %v415
  %453 = vst [vmem:[#allocation2 + $0x80] sm:$0xff] %v346
  %454 = vst [vmem:[#allocation2 + $0x88] sm:$0xff] %v348
  %455 = vst [vmem:[#allocation2 + $0x90] sm:$0xff] %v419
  %456 = vst [vmem:[#allocation2 + $0x98] sm:$0xff] %v421
  %457 = vst [vmem:[#allocation2 + $0xa0] sm:$0xff] %v350
  %458 = vst [vmem:[#allocation2 + $0xa8] sm:$0xff] %v352
  %459 = vst [vmem:[#allocation2 + $0xb0] sm:$0xff] %v423
  %460 = vst [vmem:[#allocation2 + $0xb8] sm:$0xff] %v425
  %461 = vst [vmem:[#allocation2 + $0xc0] sm:$0xff] %v356
  %462 = vst [vmem:[#allocation2 + $0xc8] sm:$0xff] %v358
  %463 = vst [vmem:[#allocation2 + $0xd0] sm:$0xff] %v429
  %464 = vst [vmem:[#allocation2 + $0xd8] sm:$0xff] %v431
  %465 = vst [vmem:[#allocation2 + $0xe0] sm:$0xff] %v360
  %466 = vst [vmem:[#allocation2 + $0xe8] sm:$0xff] %v362
  %467 = vst [vmem:[#allocation2 + $0xf0] sm:$0xff] %v433
  %468 = vst [vmem:[#allocation2 + $0xf8] sm:$0xff] %v435
  %v469 = vld [vmem:[%s2] sm:$0xff]
  %v470 = vld [vmem:[%s2 + $0x8] sm:$0xff]
  %v471 = vld [vmem:[%s2 + $0x10] sm:$0xff]
  %v472 = vld [vmem:[%s2 + $0x18] sm:$0xff]
  %v473 = vld [vmem:[%s2 + $0x20] sm:$0xff]
  %v474 = vld [vmem:[%s2 + $0x28] sm:$0xff]
  %v475 = vld [vmem:[%s2 + $0x30] sm:$0xff]
  %v476 = vld [vmem:[%s2 + $0x38] sm:$0xff]
  %v477 = vld [vmem:[%s2 + $0x40] sm:$0xff]
  %v478 = vld [vmem:[%s2 + $0x48] sm:$0xff]
  %v479 = vld [vmem:[%s2 + $0x50] sm:$0xff]
  %v480 = vld [vmem:[%s2 + $0x58] sm:$0xff]
  %v481 = vld [vmem:[%s2 + $0x60] sm:$0xff]
  %v482 = vld [vmem:[%s2 + $0x68] sm:$0xff]
  %v483 = vld [vmem:[%s2 + $0x70] sm:$0xff]
  %v484 = vld [vmem:[%s2 + $0x78] sm:$0xff]
  %v485 = vld [vmem:[%s2 + $0x80] sm:$0xff]
  %v486 = vld [vmem:[%s2 + $0x88] sm:$0xff]
  %v487 = vld [vmem:[%s2 + $0x90] sm:$0xff]
  %v488 = vld [vmem:[%s2 + $0x98] sm:$0xff]
  %v489 = vld [vmem:[%s2 + $0xa0] sm:$0xff]
  %v490 = vld [vmem:[%s2 + $0xa8] sm:$0xff]
  %v491 = vld [vmem:[%s2 + $0xb0] sm:$0xff]
  %v492 = vld [vmem:[%s2 + $0xb8] sm:$0xff]
  %v493 = vld [vmem:[%s2 + $0xc0] sm:$0xff]
  %v494 = vld [vmem:[%s2 + $0xc8] sm:$0xff]
  %v495 = vld [vmem:[%s2 + $0xd0] sm:$0xff]
  %v496 = vld [vmem:[%s2 + $0xd8] sm:$0xff]
  %v497 = vld [vmem:[%s2 + $0xe0] sm:$0xff]
  %v498 = vld [vmem:[%s2 + $0xe8] sm:$0xff]
  %v499 = vld [vmem:[%s2 + $0xf0] sm:$0xff]
  %v500 = vld [vmem:[%s2 + $0xf8] sm:$0xff]
  %v501 = vld [vmem:[#allocation2] sm:$0xff]
  %v502 = vld [vmem:[#allocation2 + $0x8] sm:$0xff]
  %v503 = vld [vmem:[#allocation2 + $0x10] sm:$0xff]
  %v504 = vld [vmem:[#allocation2 + $0x18] sm:$0xff]
  %v537 = vunpack.c.l.b16 %v469
  %v538 = vunpack.c.h.b16 %v469
  %v539 = vunpack.c.l.b16 %v470
  %v540 = vunpack.c.h.b16 %v470
  %v541 = vunpack.c.l.b16 %v471
  %v542 = vunpack.c.h.b16 %v471
  %v543 = vunpack.c.l.b16 %v472
  %v544 = vunpack.c.h.b16 %v472
  %v545 = vunpack.c.l.b16 %v473
  %v546 = vunpack.c.h.b16 %v473
  %v547 = vunpack.c.l.b16 %v474
  %v548 = vunpack.c.h.b16 %v474
  %v549 = vunpack.c.l.b16 %v475
  %v550 = vunpack.c.h.b16 %v475
  %v551 = vunpack.c.l.b16 %v476
  %v552 = vunpack.c.h.b16 %v476
  %v553 = vunpack.c.l.b16 %v477
  %v554 = vunpack.c.h.b16 %v477
  %v555 = vunpack.c.l.b16 %v478
  %v556 = vunpack.c.h.b16 %v478
  %v557 = vunpack.c.l.b16 %v479
  %v558 = vunpack.c.h.b16 %v479
  %v559 = vunpack.c.l.b16 %v480
  %v560 = vunpack.c.h.b16 %v480
  %v561 = vunpack.c.l.b16 %v481
  %v562 = vunpack.c.h.b16 %v481
  %v563 = vunpack.c.l.b16 %v482
  %v564 = vunpack.c.h.b16 %v482
  %v565 = vunpack.c.l.b16 %v483
  %v566 = vunpack.c.h.b16 %v483
  %v567 = vunpack.c.l.b16 %v484
  %v568 = vunpack.c.h.b16 %v484
  %v569 = vunpack.c.l.b16 %v485
  %v570 = vunpack.c.h.b16 %v485
  %v571 = vunpack.c.l.b16 %v486
  %v572 = vunpack.c.h.b16 %v486
  %v573 = vunpack.c.l.b16 %v487
  %v574 = vunpack.c.h.b16 %v487
  %v575 = vunpack.c.l.b16 %v488
  %v576 = vunpack.c.h.b16 %v488
  %v577 = vunpack.c.l.b16 %v489
  %v578 = vunpack.c.h.b16 %v489
  %v579 = vunpack.c.l.b16 %v490
  %v580 = vunpack.c.h.b16 %v490
  %v581 = vunpack.c.l.b16 %v491
  %v582 = vunpack.c.h.b16 %v491
  %v583 = vunpack.c.l.b16 %v492
  %v584 = vunpack.c.h.b16 %v492
  %v585 = vunpack.c.l.b16 %v493
  %v586 = vunpack.c.h.b16 %v493
  %v587 = vunpack.c.l.b16 %v494
  %v588 = vunpack.c.h.b16 %v494
  %v589 = vunpack.c.l.b16 %v495
  %v590 = vunpack.c.h.b16 %v495
  %v591 = vunpack.c.l.b16 %v496
  %v592 = vunpack.c.h.b16 %v496
  %v593 = vunpack.c.l.b16 %v497
  %v594 = vunpack.c.h.b16 %v497
  %v595 = vunpack.c.l.b16 %v498
  %v596 = vunpack.c.h.b16 %v498
  %v597 = vunpack.c.l.b16 %v499
  %v598 = vunpack.c.h.b16 %v499
  %v599 = vunpack.c.l.b16 %v500
  %v600 = vunpack.c.h.b16 %v500
  %v601 = vpack.c.b16 %v541, %v537
  %v602 = vpack.c.b16 %v542, %v538
  %v603 = vpack.c.b16 %v543, %v539
  %v604 = vpack.c.b16 %v544, %v540
  %v605 = vpack.c.b16 %v549, %v545
  %v606 = vpack.c.b16 %v550, %v546
  %v607 = vpack.c.b16 %v551, %v547
  %v608 = vpack.c.b16 %v552, %v548
  %v609 = vpack.c.b16 %v557, %v553
  %v610 = vpack.c.b16 %v558, %v554
  %v611 = vpack.c.b16 %v559, %v555
  %v612 = vpack.c.b16 %v560, %v556
  %v613 = vpack.c.b16 %v565, %v561
  %v614 = vpack.c.b16 %v566, %v562
  %v615 = vpack.c.b16 %v567, %v563
  %v616 = vpack.c.b16 %v568, %v564
  %v617 = vpack.c.b16 %v573, %v569
  %v618 = vpack.c.b16 %v574, %v570
  %v619 = vpack.c.b16 %v575, %v571
  %v620 = vpack.c.b16 %v576, %v572
  %v621 = vpack.c.b16 %v581, %v577
  %v622 = vpack.c.b16 %v582, %v578
  %v623 = vpack.c.b16 %v583, %v579
  %v624 = vpack.c.b16 %v584, %v580
  %v625 = vpack.c.b16 %v589, %v585
  %v626 = vpack.c.b16 %v590, %v586
  %v627 = vpack.c.b16 %v591, %v587
  %v628 = vpack.c.b16 %v592, %v588
  %v629 = vpack.c.b16 %v597, %v593
  %v630 = vpack.c.b16 %v598, %v594
  %v631 = vpack.c.b16 %v599, %v595
  %v632 = vpack.c.b16 %v600, %v596
  %665 = vmatprep.subr.bf16.mxu0 %v630
  %666 = vmatpush1.bf16.msra.mxu0 %v629
  %667 = vmatprep.subr.bf16.mxu0 %v626
  %668 = vmatpush1.bf16.msra.mxu0 %v625
  %669 = vmatprep.subr.bf16.mxu0 %v622
  %670 = vmatpush1.bf16.msra.mxu0 %v621
  %671 = vmatprep.subr.bf16.mxu0 %v618
  %672 = vmatpush1.bf16.msra.mxu0 %v617
  %673 = vmatprep.subr.bf16.mxu0 %v614
  %674 = vmatpush1.bf16.msra.mxu0 %v613
  %675 = vmatprep.subr.bf16.mxu0 %v610
  %676 = vmatpush1.bf16.msra.mxu0 %v609
  %677 = vmatprep.subr.bf16.mxu0 %v606
  %678 = vmatpush1.bf16.msra.mxu0 %v605
  %679 = vmatprep.subr.bf16.mxu0 %v602
  %680 = vmatpush1.bf16.msra.mxu0 %v601
  %681 = vmatprep.subr.bf16.mxu0 0
  %682 = vmatpush2.bf16.msra.mxu0 0
  %683 = vmatprep.subr.bf16.mxu0 0
  %684 = vmatpush2.bf16.msra.mxu0 0
  %685 = vmatprep.subr.bf16.mxu0 0
  %686 = vmatpush2.bf16.msra.mxu0 0
  %687 = vmatprep.subr.bf16.mxu0 0
  %688 = vmatpush2.bf16.msra.mxu0 0
  %689 = vmatprep.subr.bf16.mxu0 0
  %690 = vmatpush2.bf16.msra.mxu0 0
  %691 = vmatprep.subr.bf16.mxu0 0
  %692 = vmatpush2.bf16.msra.mxu0 0
  %693 = vmatprep.subr.bf16.mxu0 0
  %694 = vmatpush2.bf16.msra.mxu0 0
  %695 = vmatprep.subr.bf16.mxu0 0
  %696 = vmatpush2.bf16.msra.mxu0 0
  %697 = vmatprep.mubr.bf16.mxu0 0
  %698 = vmatmul.mubr.bf16.gmra.mxu0 0
  %v699 = vpop.f32.mrf.mxu0
  %v700 = vadd.f32 0.0, %v699
  %v701 = vpop.f32.mrf.mxu0
  %v702 = vadd.f32 0.0, %v701
  %v703 = vpop.f32.mrf.mxu0
  %v704 = vpop.f32.mrf.mxu0
  %705 = vdwg.mxu0
  %706 = vmatprep.subr.bf16.mxu0 %v632
  %707 = vmatpush1.bf16.msra.mxu0 %v631
  %708 = vmatprep.subr.bf16.mxu0 %v628
  %709 = vmatpush1.bf16.msra.mxu0 %v627
  %710 = vmatprep.subr.bf16.mxu0 %v624
  %711 = vmatpush1.bf16.msra.mxu0 %v623
  %712 = vmatprep.subr.bf16.mxu0 %v620
  %713 = vmatpush1.bf16.msra.mxu0 %v619
  %714 = vmatprep.subr.bf16.mxu0 %v616
  %715 = vmatpush1.bf16.msra.mxu0 %v615
  %716 = vmatprep.subr.bf16.mxu0 %v612
  %717 = vmatpush1.bf16.msra.mxu0 %v611
  %718 = vmatprep.subr.bf16.mxu0 %v608
  %719 = vmatpush1.bf16.msra.mxu0 %v607
  %720 = vmatprep.subr.bf16.mxu0 %v604
  %721 = vmatpush1.bf16.msra.mxu0 %v603
  %722 = vmatprep.subr.bf16.mxu0 0
  %723 = vmatpush2.bf16.msra.mxu0 0
  %724 = vmatprep.subr.bf16.mxu0 0
  %725 = vmatpush2.bf16.msra.mxu0 0
  %726 = vmatprep.subr.bf16.mxu0 0
  %727 = vmatpush2.bf16.msra.mxu0 0
  %728 = vmatprep.subr.bf16.mxu0 0
  %729 = vmatpush2.bf16.msra.mxu0 0
  %730 = vmatprep.subr.bf16.mxu0 0
  %731 = vmatpush2.bf16.msra.mxu0 0
  %732 = vmatprep.subr.bf16.mxu0 0
  %733 = vmatpush2.bf16.msra.mxu0 0
  %734 = vmatprep.subr.bf16.mxu0 0
  %735 = vmatpush2.bf16.msra.mxu0 0
  %736 = vmatprep.subr.bf16.mxu0 0
  %737 = vmatpush2.bf16.msra.mxu0 0
  %738 = vmatprep.mubr.bf16.mxu0 0
  %739 = vmatmul.mubr.bf16.gmra.mxu0 0
  %v740 = vpop.f32.mrf.mxu0
  %v741 = vadd.f32 0.0, %v740
  %v742 = vpop.f32.mrf.mxu0
  %v743 = vadd.f32 0.0, %v742
  %v744 = vpop.f32.mrf.mxu0
  %v745 = vpop.f32.mrf.mxu0
  %746 = vdwg.mxu0
  %v747 = vadd.f32 %v501, %v700
  %v748 = vadd.f32 %v502, %v702
  %v749 = vadd.f32 %v503, %v741
  %v750 = vadd.f32 %v504, %v743
  %v751 = vxor.u32 %v747, 2147483648
  %v752 = vxor.u32 %v748, 2147483648
  %v753 = vxor.u32 %v749, 2147483648
  %v754 = vmul.f32 %v751, 1.442695
  %v755 = vpow.pop %v754
  %v756 = vmul.f32 %v752, 1.442695
  %v757 = vpow.pop %v756
  %v758 = vmul.f32 %v753, 1.442695
  %v759 = vpow.pop %v758
  %v760 = vadd.f32 %v755, 1.0
  %v761 = vadd.f32 %v757, 1.0
  %v762 = vadd.f32 %v759, 1.0
  %v763 = vrcp.pop %v760
  %v764 = vmul.f32 1.0, %v763
  %v765 = vrcp.pop %v761
  %v766 = vmul.f32 1.0, %v765
  %v767 = vrcp.pop %v762
  %v768 = vmul.f32 1.0, %v767
  %v769 = vtanh.pop %v750
  %v770 = vmul.f32 %v766, 0.0
  %v771 = vmul.f32 %v764, %v769
  %v772 = vadd.f32 %v770, %v771
  %v773 = vtanh.pop %v772
  %v774 = vmul.f32 %v768, %v773
  %v775 = vpack.c.bf16 %v774, %v774
  %776 = vst [vmem:[#allocation3] sm:$0xf] %v775
  %s777 = scalar_lea.vmem [#allocation2], 32
  %v778 = vld [vmem:[%s777] sm:$0xff]
  %v779 = vld [vmem:[%s777 + $0x8] sm:$0xff]
  %v780 = vld [vmem:[%s777 + $0x10] sm:$0xff]
  %v781 = vld [vmem:[%s777 + $0x18] sm:$0xff]
  %782 = vmatprep.subr.bf16.mxu0 %v630
  %783 = vmatpush1.bf16.msra.mxu0 %v629
  %784 = vmatprep.subr.bf16.mxu0 %v626
  %785 = vmatpush1.bf16.msra.mxu0 %v625
  %786 = vmatprep.subr.bf16.mxu0 %v622
  %787 = vmatpush1.bf16.msra.mxu0 %v621
  %788 = vmatprep.subr.bf16.mxu0 %v618
  %789 = vmatpush1.bf16.msra.mxu0 %v617
  %790 = vmatprep.subr.bf16.mxu0 %v614
  %791 = vmatpush1.bf16.msra.mxu0 %v613
  %792 = vmatprep.subr.bf16.mxu0 %v610
  %793 = vmatpush1.bf16.msra.mxu0 %v609
  %794 = vmatprep.subr.bf16.mxu0 %v606
  %795 = vmatpush1.bf16.msra.mxu0 %v605
  %796 = vmatprep.subr.bf16.mxu0 %v602
  %797 = vmatpush1.bf16.msra.mxu0 %v601
  %798 = vmatprep.subr.bf16.mxu0 0
  %799 = vmatpush2.bf16.msra.mxu0 0
  %800 = vmatprep.subr.bf16.mxu0 0
  %801 = vmatpush2.bf16.msra.mxu0 0
  %802 = vmatprep.subr.bf16.mxu0 0
  %803 = vmatpush2.bf16.msra.mxu0 0
  %804 = vmatprep.subr.bf16.mxu0 0
  %805 = vmatpush2.bf16.msra.mxu0 0
  %806 = vmatprep.subr.bf16.mxu0 0
  %807 = vmatpush2.bf16.msra.mxu0 0
  %808 = vmatprep.subr.bf16.mxu0 0
  %809 = vmatpush2.bf16.msra.mxu0 0
  %810 = vmatprep.subr.bf16.mxu0 0
  %811 = vmatpush2.bf16.msra.mxu0 0
  %812 = vmatprep.subr.bf16.mxu0 0
  %813 = vmatpush2.bf16.msra.mxu0 0
  %814 = vmatprep.mubr.bf16.mxu0 0
  %815 = vmatmul.mubr.bf16.gmra.mxu0 %v775
  %v816 = vpop.f32.mrf.mxu0
  %v817 = vadd.f32 0.0, %v816
  %v818 = vpop.f32.mrf.mxu0
  %v819 = vadd.f32 0.0, %v818
  %v820 = vpop.f32.mrf.mxu0
  %v821 = vpop.f32.mrf.mxu0
  %822 = vdwg.mxu0
  %823 = vmatprep.subr.bf16.mxu0 %v632
  %824 = vmatpush1.bf16.msra.mxu0 %v631
  %825 = vmatprep.subr.bf16.mxu0 %v628
  %826 = vmatpush1.bf16.msra.mxu0 %v627
  %827 = vmatprep.subr.bf16.mxu0 %v624
  %828 = vmatpush1.bf16.msra.mxu0 %v623
  %829 = vmatprep.subr.bf16.mxu0 %v620
  %830 = vmatpush1.bf16.msra.mxu0 %v619
  %831 = vmatprep.subr.bf16.mxu0 %v616
  %832 = vmatpush1.bf16.msra.mxu0 %v615
  %833 = vmatprep.subr.bf16.mxu0 %v612
  %834 = vmatpush1.bf16.msra.mxu0 %v611
  %835 = vmatprep.subr.bf16.mxu0 %v608
  %836 = vmatpush1.bf16.msra.mxu0 %v607
  %837 = vmatprep.subr.bf16.mxu0 %v604
  %838 = vmatpush1.bf16.msra.mxu0 %v603
  %839 = vmatprep.subr.bf16.mxu0 0
  %840 = vmatpush2.bf16.msra.mxu0 0
  %841 = vmatprep.subr.bf16.mxu0 0
  %842 = vmatpush2.bf16.msra.mxu0 0
  %843 = vmatprep.subr.bf16.mxu0 0
  %844 = vmatpush2.bf16.msra.mxu0 0
  %845 = vmatprep.subr.bf16.mxu0 0
  %846 = vmatpush2.bf16.msra.mxu0 0
  %847 = vmatprep.subr.bf16.mxu0 0
  %848 = vmatpush2.bf16.msra.mxu0 0
  %849 = vmatprep.subr.bf16.mxu0 0
  %850 = vmatpush2.bf16.msra.mxu0 0
  %851 = vmatprep.subr.bf16.mxu0 0
  %852 = vmatpush2.bf16.msra.mxu0 0
  %853 = vmatprep.subr.bf16.mxu0 0
  %854 = vmatpush2.bf16.msra.mxu0 0
  %855 = vmatprep.mubr.bf16.mxu0 0
  %856 = vmatmul.mubr.bf16.gmra.mxu0 %v775
  %v857 = vpop.f32.mrf.mxu0
  %v858 = vadd.f32 0.0, %v857
  %v859 = vpop.f32.mrf.mxu0
  %v860 = vadd.f32 0.0, %v859
  %v861 = vpop.f32.mrf.mxu0
  %v862 = vpop.f32.mrf.mxu0
  %863 = vdwg.mxu0
  %v864 = vadd.f32 %v778, %v817
  %v865 = vadd.f32 %v779, %v819
  %v866 = vadd.f32 %v780, %v858
  %v867 = vadd.f32 %v781, %v860
  %v868 = vxor.u32 %v864, 2147483648
  %v869 = vxor.u32 %v865, 2147483648
  %v870 = vxor.u32 %v866, 2147483648
  %v871 = vmul.f32 %v868, 1.442695
  %v872 = vpow.pop %v871
  %v873 = vmul.f32 %v869, 1.442695
  %v874 = vpow.pop %v873
  %v875 = vmul.f32 %v870, 1.442695
  %v876 = vpow.pop %v875
  %v877 = vadd.f32 %v872, 1.0
  %v878 = vadd.f32 %v874, 1.0
  %v879 = vadd.f32 %v876, 1.0
  %v880 = vrcp.pop %v877
  %v881 = vmul.f32 1.0, %v880
  %v882 = vrcp.pop %v878
  %v883 = vmul.f32 1.0, %v882
  %v884 = vrcp.pop %v879
  %v885 = vmul.f32 1.0, %v884
  %v886 = vtanh.pop %v867
  %v887 = vmul.f32 %v883, %v772
  %v888 = vmul.f32 %v881, %v886
  %v889 = vadd.f32 %v887, %v888
  %v890 = vtanh.pop %v889
  %v891 = vmul.f32 %v885, %v890
  %v892 = vpack.c.bf16 %v891, %v891
  %s893 = scalar_lea.vmem [#allocation3], 4
  %894 = vst [vmem:[%s893] sm:$0xf] %v892
  %s895 = scalar_lea.vmem [#allocation2], 64
  %v896 = vld [vmem:[%s895] sm:$0xff]
  %v897 = vld [vmem:[%s895 + $0x8] sm:$0xff]
  %v898 = vld [vmem:[%s895 + $0x10] sm:$0xff]
  %v899 = vld [vmem:[%s895 + $0x18] sm:$0xff]
  %900 = vmatprep.subr.bf16.mxu0 %v630
  %901 = vmatpush1.bf16.msra.mxu0 %v629
  %902 = vmatprep.subr.bf16.mxu0 %v626
  %903 = vmatpush1.bf16.msra.mxu0 %v625
  %904 = vmatprep.subr.bf16.mxu0 %v622
  %905 = vmatpush1.bf16.msra.mxu0 %v621
  %906 = vmatprep.subr.bf16.mxu0 %v618
  %907 = vmatpush1.bf16.msra.mxu0 %v617
  %908 = vmatprep.subr.bf16.mxu0 %v614
  %909 = vmatpush1.bf16.msra.mxu0 %v613
  %910 = vmatprep.subr.bf16.mxu0 %v610
  %911 = vmatpush1.bf16.msra.mxu0 %v609
  %912 = vmatprep.subr.bf16.mxu0 %v606
  %913 = vmatpush1.bf16.msra.mxu0 %v605
  %914 = vmatprep.subr.bf16.mxu0 %v602
  %915 = vmatpush1.bf16.msra.mxu0 %v601
  %916 = vmatprep.subr.bf16.mxu0 0
  %917 = vmatpush2.bf16.msra.mxu0 0
  %918 = vmatprep.subr.bf16.mxu0 0
  %919 = vmatpush2.bf16.msra.mxu0 0
  %920 = vmatprep.subr.bf16.mxu0 0
  %921 = vmatpush2.bf16.msra.mxu0 0
  %922 = vmatprep.subr.bf16.mxu0 0
  %923 = vmatpush2.bf16.msra.mxu0 0
  %924 = vmatprep.subr.bf16.mxu0 0
  %925 = vmatpush2.bf16.msra.mxu0 0
  %926 = vmatprep.subr.bf16.mxu0 0
  %927 = vmatpush2.bf16.msra.mxu0 0
  %928 = vmatprep.subr.bf16.mxu0 0
  %929 = vmatpush2.bf16.msra.mxu0 0
  %930 = vmatprep.subr.bf16.mxu0 0
  %931 = vmatpush2.bf16.msra.mxu0 0
  %932 = vmatprep.mubr.bf16.mxu0 0
  %933 = vmatmul.mubr.bf16.gmra.mxu0 %v892
  %v934 = vpop.f32.mrf.mxu0
  %v935 = vadd.f32 0.0, %v934
  %v936 = vpop.f32.mrf.mxu0
  %v937 = vadd.f32 0.0, %v936
  %v938 = vpop.f32.mrf.mxu0
  %v939 = vpop.f32.mrf.mxu0
  %940 = vdwg.mxu0
  %941 = vmatprep.subr.bf16.mxu0 %v632
  %942 = vmatpush1.bf16.msra.mxu0 %v631
  %943 = vmatprep.subr.bf16.mxu0 %v628
  %944 = vmatpush1.bf16.msra.mxu0 %v627
  %945 = vmatprep.subr.bf16.mxu0 %v624
  %946 = vmatpush1.bf16.msra.mxu0 %v623
  %947 = vmatprep.subr.bf16.mxu0 %v620
  %948 = vmatpush1.bf16.msra.mxu0 %v619
  %949 = vmatprep.subr.bf16.mxu0 %v616
  %950 = vmatpush1.bf16.msra.mxu0 %v615
  %951 = vmatprep.subr.bf16.mxu0 %v612
  %952 = vmatpush1.bf16.msra.mxu0 %v611
  %953 = vmatprep.subr.bf16.mxu0 %v608
  %954 = vmatpush1.bf16.msra.mxu0 %v607
  %955 = vmatprep.subr.bf16.mxu0 %v604
  %956 = vmatpush1.bf16.msra.mxu0 %v603
  %957 = vmatprep.subr.bf16.mxu0 0
  %958 = vmatpush2.bf16.msra.mxu0 0
  %959 = vmatprep.subr.bf16.mxu0 0
  %960 = vmatpush2.bf16.msra.mxu0 0
  %961 = vmatprep.subr.bf16.mxu0 0
  %962 = vmatpush2.bf16.msra.mxu0 0
  %963 = vmatprep.subr.bf16.mxu0 0
  %964 = vmatpush2.bf16.msra.mxu0 0
  %965 = vmatprep.subr.bf16.mxu0 0
  %966 = vmatpush2.bf16.msra.mxu0 0
  %967 = vmatprep.subr.bf16.mxu0 0
  %968 = vmatpush2.bf16.msra.mxu0 0
  %969 = vmatprep.subr.bf16.mxu0 0
  %970 = vmatpush2.bf16.msra.mxu0 0
  %971 = vmatprep.subr.bf16.mxu0 0
  %972 = vmatpush2.bf16.msra.mxu0 0
  %973 = vmatprep.mubr.bf16.mxu0 0
  %974 = vmatmul.mubr.bf16.gmra.mxu0 %v892
  %v975 = vpop.f32.mrf.mxu0
  %v976 = vadd.f32 0.0, %v975
  %v977 = vpop.f32.mrf.mxu0
  %v978 = vadd.f32 0.0, %v977
  %v979 = vpop.f32.mrf.mxu0
  %v980 = vpop.f32.mrf.mxu0
  %981 = vdwg.mxu0
  %v982 = vadd.f32 %v896, %v935
  %v983 = vadd.f32 %v897, %v937
  %v984 = vadd.f32 %v898, %v976
  %v985 = vadd.f32 %v899, %v978
  %v986 = vxor.u32 %v982, 2147483648
  %v987 = vxor.u32 %v983, 2147483648
  %v988 = vxor.u32 %v984, 2147483648
  %v989 = vmul.f32 %v986, 1.442695
  %v990 = vpow.pop %v989
  %v991 = vmul.f32 %v987, 1.442695
  %v992 = vpow.pop %v991
  %v993 = vmul.f32 %v988, 1.442695
  %v994 = vpow.pop %v993
  %v995 = vadd.f32 %v990, 1.0
  %v996 = vadd.f32 %v992, 1.0
  %v997 = vadd.f32 %v994, 1.0
  %v998 = vrcp.pop %v995
  %v999 = vmul.f32 1.0, %v998
  %v1000 = vrcp.pop %v996
  %v1001 = vmul.f32 1.0, %v1000
  %v1002 = vrcp.pop %v997
  %v1003 = vmul.f32 1.0, %v1002
  %v1004 = vtanh.pop %v985
  %v1005 = vmul.f32 %v1001, %v889
  %v1006 = vmul.f32 %v999, %v1004
  %v1007 = vadd.f32 %v1005, %v1006
  %v1008 = vtanh.pop %v1007
  %v1009 = vmul.f32 %v1003, %v1008
  %v1010 = vpack.c.bf16 %v1009, %v1009
  %s1011 = scalar_lea.vmem [#allocation3], 8
  %1012 = vst [vmem:[%s1011] sm:$0xf] %v1010
  %s1013 = scalar_lea.vmem [#allocation2], 96
  %v1014 = vld [vmem:[%s1013] sm:$0xff]
  %v1015 = vld [vmem:[%s1013 + $0x8] sm:$0xff]
  %v1016 = vld [vmem:[%s1013 + $0x10] sm:$0xff]
  %v1017 = vld [vmem:[%s1013 + $0x18] sm:$0xff]
  %1018 = vmatprep.subr.bf16.mxu0 %v630
  %1019 = vmatpush1.bf16.msra.mxu0 %v629
  %1020 = vmatprep.subr.bf16.mxu0 %v626
  %1021 = vmatpush1.bf16.msra.mxu0 %v625
  %1022 = vmatprep.subr.bf16.mxu0 %v622
  %1023 = vmatpush1.bf16.msra.mxu0 %v621
  %1024 = vmatprep.subr.bf16.mxu0 %v618
  %1025 = vmatpush1.bf16.msra.mxu0 %v617
  %1026 = vmatprep.subr.bf16.mxu0 %v614
  %1027 = vmatpush1.bf16.msra.mxu0 %v613
  %1028 = vmatprep.subr.bf16.mxu0 %v610
  %1029 = vmatpush1.bf16.msra.mxu0 %v609
  %1030 = vmatprep.subr.bf16.mxu0 %v606
  %1031 = vmatpush1.bf16.msra.mxu0 %v605
  %1032 = vmatprep.subr.bf16.mxu0 %v602
  %1033 = vmatpush1.bf16.msra.mxu0 %v601
  %1034 = vmatprep.subr.bf16.mxu0 0
  %1035 = vmatpush2.bf16.msra.mxu0 0
  %1036 = vmatprep.subr.bf16.mxu0 0
  %1037 = vmatpush2.bf16.msra.mxu0 0
  %1038 = vmatprep.subr.bf16.mxu0 0
  %1039 = vmatpush2.bf16.msra.mxu0 0
  %1040 = vmatprep.subr.bf16.mxu0 0
  %1041 = vmatpush2.bf16.msra.mxu0 0
  %1042 = vmatprep.subr.bf16.mxu0 0
  %1043 = vmatpush2.bf16.msra.mxu0 0
  %1044 = vmatprep.subr.bf16.mxu0 0
  %1045 = vmatpush2.bf16.msra.mxu0 0
  %1046 = vmatprep.subr.bf16.mxu0 0
  %1047 = vmatpush2.bf16.msra.mxu0 0
  %1048 = vmatprep.subr.bf16.mxu0 0
  %1049 = vmatpush2.bf16.msra.mxu0 0
  %1050 = vmatprep.mubr.bf16.mxu0 0
  %1051 = vmatmul.mubr.bf16.gmra.mxu0 %v1010
  %v1052 = vpop.f32.mrf.mxu0
  %v1053 = vadd.f32 0.0, %v1052
  %v1054 = vpop.f32.mrf.mxu0
  %v1055 = vadd.f32 0.0, %v1054
  %v1056 = vpop.f32.mrf.mxu0
  %v1057 = vpop.f32.mrf.mxu0
  %1058 = vdwg.mxu0
  %1059 = vmatprep.subr.bf16.mxu0 %v632
  %1060 = vmatpush1.bf16.msra.mxu0 %v631
  %1061 = vmatprep.subr.bf16.mxu0 %v628
  %1062 = vmatpush1.bf16.msra.mxu0 %v627
  %1063 = vmatprep.subr.bf16.mxu0 %v624
  %1064 = vmatpush1.bf16.msra.mxu0 %v623
  %1065 = vmatprep.subr.bf16.mxu0 %v620
  %1066 = vmatpush1.bf16.msra.mxu0 %v619
  %1067 = vmatprep.subr.bf16.mxu0 %v616
  %1068 = vmatpush1.bf16.msra.mxu0 %v615
  %1069 = vmatprep.subr.bf16.mxu0 %v612
  %1070 = vmatpush1.bf16.msra.mxu0 %v611
  %1071 = vmatprep.subr.bf16.mxu0 %v608
  %1072 = vmatpush1.bf16.msra.mxu0 %v607
  %1073 = vmatprep.subr.bf16.mxu0 %v604
  %1074 = vmatpush1.bf16.msra.mxu0 %v603
  %1075 = vmatprep.subr.bf16.mxu0 0
  %1076 = vmatpush2.bf16.msra.mxu0 0
  %1077 = vmatprep.subr.bf16.mxu0 0
  %1078 = vmatpush2.bf16.msra.mxu0 0
  %1079 = vmatprep.subr.bf16.mxu0 0
  %1080 = vmatpush2.bf16.msra.mxu0 0
  %1081 = vmatprep.subr.bf16.mxu0 0
  %1082 = vmatpush2.bf16.msra.mxu0 0
  %1083 = vmatprep.subr.bf16.mxu0 0
  %1084 = vmatpush2.bf16.msra.mxu0 0
  %1085 = vmatprep.subr.bf16.mxu0 0
  %1086 = vmatpush2.bf16.msra.mxu0 0
  %1087 = vmatprep.subr.bf16.mxu0 0
  %1088 = vmatpush2.bf16.msra.mxu0 0
  %1089 = vmatprep.subr.bf16.mxu0 0
  %1090 = vmatpush2.bf16.msra.mxu0 0
  %1091 = vmatprep.mubr.bf16.mxu0 0
  %1092 = vmatmul.mubr.bf16.gmra.mxu0 %v1010
  %v1093 = vpop.f32.mrf.mxu0
  %v1094 = vadd.f32 0.0, %v1093
  %v1095 = vpop.f32.mrf.mxu0
  %v1096 = vadd.f32 0.0, %v1095
  %v1097 = vpop.f32.mrf.mxu0
  %v1098 = vpop.f32.mrf.mxu0
  %1099 = vdwg.mxu0
  %v1100 = vadd.f32 %v1014, %v1053
  %v1101 = vadd.f32 %v1015, %v1055
  %v1102 = vadd.f32 %v1016, %v1094
  %v1103 = vadd.f32 %v1017, %v1096
  %v1104 = vxor.u32 %v1100, 2147483648
  %v1105 = vxor.u32 %v1101, 2147483648
  %v1106 = vxor.u32 %v1102, 2147483648
  %v1107 = vmul.f32 %v1104, 1.442695
  %v1108 = vpow.pop %v1107
  %v1109 = vmul.f32 %v1105, 1.442695
  %v1110 = vpow.pop %v1109
  %v1111 = vmul.f32 %v1106, 1.442695
  %v1112 = vpow.pop %v1111
  %v1113 = vadd.f32 %v1108, 1.0
  %v1114 = vadd.f32 %v1110, 1.0
  %v1115 = vadd.f32 %v1112, 1.0
  %v1116 = vrcp.pop %v1113
  %v1117 = vmul.f32 1.0, %v1116
  %v1118 = vrcp.pop %v1114
  %v1119 = vmul.f32 1.0, %v1118
  %v1120 = vrcp.pop %v1115
  %v1121 = vmul.f32 1.0, %v1120
  %v1122 = vtanh.pop %v1103
  %v1123 = vmul.f32 %v1119, %v1007
  %v1124 = vmul.f32 %v1117, %v1122
  %v1125 = vadd.f32 %v1123, %v1124
  %v1126 = vtanh.pop %v1125
  %v1127 = vmul.f32 %v1121, %v1126
  %v1128 = vpack.c.bf16 %v1127, %v1127
  %s1129 = scalar_lea.vmem [#allocation3], 12
  %1130 = vst [vmem:[%s1129] sm:$0xf] %v1128
  %s1131 = scalar_lea.vmem [#allocation2], 128
  %v1132 = vld [vmem:[%s1131] sm:$0xff]
  %v1133 = vld [vmem:[%s1131 + $0x8] sm:$0xff]
  %v1134 = vld [vmem:[%s1131 + $0x10] sm:$0xff]
  %v1135 = vld [vmem:[%s1131 + $0x18] sm:$0xff]
  %1136 = vmatprep.subr.bf16.mxu0 %v630
  %1137 = vmatpush1.bf16.msra.mxu0 %v629
  %1138 = vmatprep.subr.bf16.mxu0 %v626
  %1139 = vmatpush1.bf16.msra.mxu0 %v625
  %1140 = vmatprep.subr.bf16.mxu0 %v622
  %1141 = vmatpush1.bf16.msra.mxu0 %v621
  %1142 = vmatprep.subr.bf16.mxu0 %v618
  %1143 = vmatpush1.bf16.msra.mxu0 %v617
  %1144 = vmatprep.subr.bf16.mxu0 %v614
  %1145 = vmatpush1.bf16.msra.mxu0 %v613
  %1146 = vmatprep.subr.bf16.mxu0 %v610
  %1147 = vmatpush1.bf16.msra.mxu0 %v609
  %1148 = vmatprep.subr.bf16.mxu0 %v606
  %1149 = vmatpush1.bf16.msra.mxu0 %v605
  %1150 = vmatprep.subr.bf16.mxu0 %v602
  %1151 = vmatpush1.bf16.msra.mxu0 %v601
  %1152 = vmatprep.subr.bf16.mxu0 0
  %1153 = vmatpush2.bf16.msra.mxu0 0
  %1154 = vmatprep.subr.bf16.mxu0 0
  %1155 = vmatpush2.bf16.msra.mxu0 0
  %1156 = vmatprep.subr.bf16.mxu0 0
  %1157 = vmatpush2.bf16.msra.mxu0 0
  %1158 = vmatprep.subr.bf16.mxu0 0
  %1159 = vmatpush2.bf16.msra.mxu0 0
  %1160 = vmatprep.subr.bf16.mxu0 0
  %1161 = vmatpush2.bf16.msra.mxu0 0
  %1162 = vmatprep.subr.bf16.mxu0 0
  %1163 = vmatpush2.bf16.msra.mxu0 0
  %1164 = vmatprep.subr.bf16.mxu0 0
  %1165 = vmatpush2.bf16.msra.mxu0 0
  %1166 = vmatprep.subr.bf16.mxu0 0
  %1167 = vmatpush2.bf16.msra.mxu0 0
  %1168 = vmatprep.mubr.bf16.mxu0 0
  %1169 = vmatmul.mubr.bf16.gmra.mxu0 %v1128
  %v1170 = vpop.f32.mrf.mxu0
  %v1171 = vadd.f32 0.0, %v1170
  %v1172 = vpop.f32.mrf.mxu0
  %v1173 = vadd.f32 0.0, %v1172
  %v1174 = vpop.f32.mrf.mxu0
  %v1175 = vpop.f32.mrf.mxu0
  %1176 = vdwg.mxu0
  %1177 = vmatprep.subr.bf16.mxu0 %v632
  %1178 = vmatpush1.bf16.msra.mxu0 %v631
  %1179 = vmatprep.subr.bf16.mxu0 %v628
  %1180 = vmatpush1.bf16.msra.mxu0 %v627
  %1181 = vmatprep.subr.bf16.mxu0 %v624
  %1182 = vmatpush1.bf16.msra.mxu0 %v623
  %1183 = vmatprep.subr.bf16.mxu0 %v620
  %1184 = vmatpush1.bf16.msra.mxu0 %v619
  %1185 = vmatprep.subr.bf16.mxu0 %v616
  %1186 = vmatpush1.bf16.msra.mxu0 %v615
  %1187 = vmatprep.subr.bf16.mxu0 %v612
  %1188 = vmatpush1.bf16.msra.mxu0 %v611
  %1189 = vmatprep.subr.bf16.mxu0 %v608
  %1190 = vmatpush1.bf16.msra.mxu0 %v607
  %1191 = vmatprep.subr.bf16.mxu0 %v604
  %1192 = vmatpush1.bf16.msra.mxu0 %v603
  %1193 = vmatprep.subr.bf16.mxu0 0
  %1194 = vmatpush2.bf16.msra.mxu0 0
  %1195 = vmatprep.subr.bf16.mxu0 0
  %1196 = vmatpush2.bf16.msra.mxu0 0
  %1197 = vmatprep.subr.bf16.mxu0 0
  %1198 = vmatpush2.bf16.msra.mxu0 0
  %1199 = vmatprep.subr.bf16.mxu0 0
  %1200 = vmatpush2.bf16.msra.mxu0 0
  %1201 = vmatprep.subr.bf16.mxu0 0
  %1202 = vmatpush2.bf16.msra.mxu0 0
  %1203 = vmatprep.subr.bf16.mxu0 0
  %1204 = vmatpush2.bf16.msra.mxu0 0
  %1205 = vmatprep.subr.bf16.mxu0 0
  %1206 = vmatpush2.bf16.msra.mxu0 0
  %1207 = vmatprep.subr.bf16.mxu0 0
  %1208 = vmatpush2.bf16.msra.mxu0 0
  %1209 = vmatprep.mubr.bf16.mxu0 0
  %1210 = vmatmul.mubr.bf16.gmra.mxu0 %v1128
  %v1211 = vpop.f32.mrf.mxu0
  %v1212 = vadd.f32 0.0, %v1211
  %v1213 = vpop.f32.mrf.mxu0
  %v1214 = vadd.f32 0.0, %v1213
  %v1215 = vpop.f32.mrf.mxu0
  %v1216 = vpop.f32.mrf.mxu0
  %1217 = vdwg.mxu0
  %v1218 = vadd.f32 %v1132, %v1171
  %v1219 = vadd.f32 %v1133, %v1173
  %v1220 = vadd.f32 %v1134, %v1212
  %v1221 = vadd.f32 %v1135, %v1214
  %v1222 = vxor.u32 %v1218, 2147483648
  %v1223 = vxor.u32 %v1219, 2147483648
  %v1224 = vxor.u32 %v1220, 2147483648
  %v1225 = vmul.f32 %v1222, 1.442695
  %v1226 = vpow.pop %v1225
  %v1227 = vmul.f32 %v1223, 1.442695
  %v1228 = vpow.pop %v1227
  %v1229 = vmul.f32 %v1224, 1.442695
  %v1230 = vpow.pop %v1229
  %v1231 = vadd.f32 %v1226, 1.0
  %v1232 = vadd.f32 %v1228, 1.0
  %v1233 = vadd.f32 %v1230, 1.0
  %v1234 = vrcp.pop %v1231
  %v1235 = vmul.f32 1.0, %v1234
  %v1236 = vrcp.pop %v1232
  %v1237 = vmul.f32 1.0, %v1236
  %v1238 = vrcp.pop %v1233
  %v1239 = vmul.f32 1.0, %v1238
  %v1240 = vtanh.pop %v1221
  %v1241 = vmul.f32 %v1237, %v1125
  %v1242 = vmul.f32 %v1235, %v1240
  %v1243 = vadd.f32 %v1241, %v1242
  %v1244 = vtanh.pop %v1243
  %v1245 = vmul.f32 %v1239, %v1244
  %v1246 = vpack.c.bf16 %v1245, %v1245
  %s1247 = scalar_lea.vmem [#allocation3], 16
  %1248 = vst [vmem:[%s1247] sm:$0xf] %v1246
  %s1249 = scalar_lea.vmem [#allocation2], 160
  %v1250 = vld [vmem:[%s1249] sm:$0xff]
  %v1251 = vld [vmem:[%s1249 + $0x8] sm:$0xff]
  %v1252 = vld [vmem:[%s1249 + $0x10] sm:$0xff]
  %v1253 = vld [vmem:[%s1249 + $0x18] sm:$0xff]
  %1254 = vmatprep.subr.bf16.mxu0 %v630
  %1255 = vmatpush1.bf16.msra.mxu0 %v629
  %1256 = vmatprep.subr.bf16.mxu0 %v626
  %1257 = vmatpush1.bf16.msra.mxu0 %v625
  %1258 = vmatprep.subr.bf16.mxu0 %v622
  %1259 = vmatpush1.bf16.msra.mxu0 %v621
  %1260 = vmatprep.subr.bf16.mxu0 %v618
  %1261 = vmatpush1.bf16.msra.mxu0 %v617
  %1262 = vmatprep.subr.bf16.mxu0 %v614
  %1263 = vmatpush1.bf16.msra.mxu0 %v613
  %1264 = vmatprep.subr.bf16.mxu0 %v610
  %1265 = vmatpush1.bf16.msra.mxu0 %v609
  %1266 = vmatprep.subr.bf16.mxu0 %v606
  %1267 = vmatpush1.bf16.msra.mxu0 %v605
  %1268 = vmatprep.subr.bf16.mxu0 %v602
  %1269 = vmatpush1.bf16.msra.mxu0 %v601
  %1270 = vmatprep.subr.bf16.mxu0 0
  %1271 = vmatpush2.bf16.msra.mxu0 0
  %1272 = vmatprep.subr.bf16.mxu0 0
  %1273 = vmatpush2.bf16.msra.mxu0 0
  %1274 = vmatprep.subr.bf16.mxu0 0
  %1275 = vmatpush2.bf16.msra.mxu0 0
  %1276 = vmatprep.subr.bf16.mxu0 0
  %1277 = vmatpush2.bf16.msra.mxu0 0
  %1278 = vmatprep.subr.bf16.mxu0 0
  %1279 = vmatpush2.bf16.msra.mxu0 0
  %1280 = vmatprep.subr.bf16.mxu0 0
  %1281 = vmatpush2.bf16.msra.mxu0 0
  %1282 = vmatprep.subr.bf16.mxu0 0
  %1283 = vmatpush2.bf16.msra.mxu0 0
  %1284 = vmatprep.subr.bf16.mxu0 0
  %1285 = vmatpush2.bf16.msra.mxu0 0
  %1286 = vmatprep.mubr.bf16.mxu0 0
  %1287 = vmatmul.mubr.bf16.gmra.mxu0 %v1246
  %v1288 = vpop.f32.mrf.mxu0
  %v1289 = vadd.f32 0.0, %v1288
  %v1290 = vpop.f32.mrf.mxu0
  %v1291 = vadd.f32 0.0, %v1290
  %v1292 = vpop.f32.mrf.mxu0
  %v1293 = vpop.f32.mrf.mxu0
  %1294 = vdwg.mxu0
  %1295 = vmatprep.subr.bf16.mxu0 %v632
  %1296 = vmatpush1.bf16.msra.mxu0 %v631
  %1297 = vmatprep.subr.bf16.mxu0 %v628
  %1298 = vmatpush1.bf16.msra.mxu0 %v627
  %1299 = vmatprep.subr.bf16.mxu0 %v624
  %1300 = vmatpush1.bf16.msra.mxu0 %v623
  %1301 = vmatprep.subr.bf16.mxu0 %v620
  %1302 = vmatpush1.bf16.msra.mxu0 %v619
  %1303 = vmatprep.subr.bf16.mxu0 %v616
  %1304 = vmatpush1.bf16.msra.mxu0 %v615
  %1305 = vmatprep.subr.bf16.mxu0 %v612
  %1306 = vmatpush1.bf16.msra.mxu0 %v611
  %1307 = vmatprep.subr.bf16.mxu0 %v608
  %1308 = vmatpush1.bf16.msra.mxu0 %v607
  %1309 = vmatprep.subr.bf16.mxu0 %v604
  %1310 = vmatpush1.bf16.msra.mxu0 %v603
  %1311 = vmatprep.subr.bf16.mxu0 0
  %1312 = vmatpush2.bf16.msra.mxu0 0
  %1313 = vmatprep.subr.bf16.mxu0 0
  %1314 = vmatpush2.bf16.msra.mxu0 0
  %1315 = vmatprep.subr.bf16.mxu0 0
  %1316 = vmatpush2.bf16.msra.mxu0 0
  %1317 = vmatprep.subr.bf16.mxu0 0
  %1318 = vmatpush2.bf16.msra.mxu0 0
  %1319 = vmatprep.subr.bf16.mxu0 0
  %1320 = vmatpush2.bf16.msra.mxu0 0
  %1321 = vmatprep.subr.bf16.mxu0 0
  %1322 = vmatpush2.bf16.msra.mxu0 0
  %1323 = vmatprep.subr.bf16.mxu0 0
  %1324 = vmatpush2.bf16.msra.mxu0 0
  %1325 = vmatprep.subr.bf16.mxu0 0
  %1326 = vmatpush2.bf16.msra.mxu0 0
  %1327 = vmatprep.mubr.bf16.mxu0 0
  %1328 = vmatmul.mubr.bf16.gmra.mxu0 %v1246
  %v1329 = vpop.f32.mrf.mxu0
  %v1330 = vadd.f32 0.0, %v1329
  %v1331 = vpop.f32.mrf.mxu0
  %v1332 = vadd.f32 0.0, %v1331
  %v1333 = vpop.f32.mrf.mxu0
  %v1334 = vpop.f32.mrf.mxu0
  %1335 = vdwg.mxu0
  %v1336 = vadd.f32 %v1250, %v1289
  %v1337 = vadd.f32 %v1251, %v1291
  %v1338 = vadd.f32 %v1252, %v1330
  %v1339 = vadd.f32 %v1253, %v1332
  %v1340 = vxor.u32 %v1336, 2147483648
  %v1341 = vxor.u32 %v1337, 2147483648
  %v1342 = vxor.u32 %v1338, 2147483648
  %v1343 = vmul.f32 %v1340, 1.442695
  %v1344 = vpow.pop %v1343
  %v1345 = vmul.f32 %v1341, 1.442695
  %v1346 = vpow.pop %v1345
  %v1347 = vmul.f32 %v1342, 1.442695
  %v1348 = vpow.pop %v1347
  %v1349 = vadd.f32 %v1344, 1.0
  %v1350 = vadd.f32 %v1346, 1.0
  %v1351 = vadd.f32 %v1348, 1.0
  %v1352 = vrcp.pop %v1349
  %v1353 = vmul.f32 1.0, %v1352
  %v1354 = vrcp.pop %v1350
  %v1355 = vmul.f32 1.0, %v1354
  %v1356 = vrcp.pop %v1351
  %v1357 = vmul.f32 1.0, %v1356
  %v1358 = vtanh.pop %v1339
  %v1359 = vmul.f32 %v1355, %v1243
  %v1360 = vmul.f32 %v1353, %v1358
  %v1361 = vadd.f32 %v1359, %v1360
  %v1362 = vtanh.pop %v1361
  %v1363 = vmul.f32 %v1357, %v1362
  %v1364 = vpack.c.bf16 %v1363, %v1363
  %s1365 = scalar_lea.vmem [#allocation3], 20
  %1366 = vst [vmem:[%s1365] sm:$0xf] %v1364
  %s1367 = scalar_lea.vmem [#allocation2], 192
  %v1368 = vld [vmem:[%s1367] sm:$0xff]
  %v1369 = vld [vmem:[%s1367 + $0x8] sm:$0xff]
  %v1370 = vld [vmem:[%s1367 + $0x10] sm:$0xff]
  %v1371 = vld [vmem:[%s1367 + $0x18] sm:$0xff]
  %1372 = vmatprep.subr.bf16.mxu0 %v630
  %1373 = vmatpush1.bf16.msra.mxu0 %v629
  %1374 = vmatprep.subr.bf16.mxu0 %v626
  %1375 = vmatpush1.bf16.msra.mxu0 %v625
  %1376 = vmatprep.subr.bf16.mxu0 %v622
  %1377 = vmatpush1.bf16.msra.mxu0 %v621
  %1378 = vmatprep.subr.bf16.mxu0 %v618
  %1379 = vmatpush1.bf16.msra.mxu0 %v617
  %1380 = vmatprep.subr.bf16.mxu0 %v614
  %1381 = vmatpush1.bf16.msra.mxu0 %v613
  %1382 = vmatprep.subr.bf16.mxu0 %v610
  %1383 = vmatpush1.bf16.msra.mxu0 %v609
  %1384 = vmatprep.subr.bf16.mxu0 %v606
  %1385 = vmatpush1.bf16.msra.mxu0 %v605
  %1386 = vmatprep.subr.bf16.mxu0 %v602
  %1387 = vmatpush1.bf16.msra.mxu0 %v601
  %1388 = vmatprep.subr.bf16.mxu0 0
  %1389 = vmatpush2.bf16.msra.mxu0 0
  %1390 = vmatprep.subr.bf16.mxu0 0
  %1391 = vmatpush2.bf16.msra.mxu0 0
  %1392 = vmatprep.subr.bf16.mxu0 0
  %1393 = vmatpush2.bf16.msra.mxu0 0
  %1394 = vmatprep.subr.bf16.mxu0 0
  %1395 = vmatpush2.bf16.msra.mxu0 0
  %1396 = vmatprep.subr.bf16.mxu0 0
  %1397 = vmatpush2.bf16.msra.mxu0 0
  %1398 = vmatprep.subr.bf16.mxu0 0
  %1399 = vmatpush2.bf16.msra.mxu0 0
  %1400 = vmatprep.subr.bf16.mxu0 0
  %1401 = vmatpush2.bf16.msra.mxu0 0
  %1402 = vmatprep.subr.bf16.mxu0 0
  %1403 = vmatpush2.bf16.msra.mxu0 0
  %1404 = vmatprep.mubr.bf16.mxu0 0
  %1405 = vmatmul.mubr.bf16.gmra.mxu0 %v1364
  %v1406 = vpop.f32.mrf.mxu0
  %v1407 = vadd.f32 0.0, %v1406
  %v1408 = vpop.f32.mrf.mxu0
  %v1409 = vadd.f32 0.0, %v1408
  %v1410 = vpop.f32.mrf.mxu0
  %v1411 = vpop.f32.mrf.mxu0
  %1412 = vdwg.mxu0
  %1413 = vmatprep.subr.bf16.mxu0 %v632
  %1414 = vmatpush1.bf16.msra.mxu0 %v631
  %1415 = vmatprep.subr.bf16.mxu0 %v628
  %1416 = vmatpush1.bf16.msra.mxu0 %v627
  %1417 = vmatprep.subr.bf16.mxu0 %v624
  %1418 = vmatpush1.bf16.msra.mxu0 %v623
  %1419 = vmatprep.subr.bf16.mxu0 %v620
  %1420 = vmatpush1.bf16.msra.mxu0 %v619
  %1421 = vmatprep.subr.bf16.mxu0 %v616
  %1422 = vmatpush1.bf16.msra.mxu0 %v615
  %1423 = vmatprep.subr.bf16.mxu0 %v612
  %1424 = vmatpush1.bf16.msra.mxu0 %v611
  %1425 = vmatprep.subr.bf16.mxu0 %v608
  %1426 = vmatpush1.bf16.msra.mxu0 %v607
  %1427 = vmatprep.subr.bf16.mxu0 %v604
  %1428 = vmatpush1.bf16.msra.mxu0 %v603
  %1429 = vmatprep.subr.bf16.mxu0 0
  %1430 = vmatpush2.bf16.msra.mxu0 0
  %1431 = vmatprep.subr.bf16.mxu0 0
  %1432 = vmatpush2.bf16.msra.mxu0 0
  %1433 = vmatprep.subr.bf16.mxu0 0
  %1434 = vmatpush2.bf16.msra.mxu0 0
  %1435 = vmatprep.subr.bf16.mxu0 0
  %1436 = vmatpush2.bf16.msra.mxu0 0
  %1437 = vmatprep.subr.bf16.mxu0 0
  %1438 = vmatpush2.bf16.msra.mxu0 0
  %1439 = vmatprep.subr.bf16.mxu0 0
  %1440 = vmatpush2.bf16.msra.mxu0 0
  %1441 = vmatprep.subr.bf16.mxu0 0
  %1442 = vmatpush2.bf16.msra.mxu0 0
  %1443 = vmatprep.subr.bf16.mxu0 0
  %1444 = vmatpush2.bf16.msra.mxu0 0
  %1445 = vmatprep.mubr.bf16.mxu0 0
  %1446 = vmatmul.mubr.bf16.gmra.mxu0 %v1364
  %v1447 = vpop.f32.mrf.mxu0
  %v1448 = vadd.f32 0.0, %v1447
  %v1449 = vpop.f32.mrf.mxu0
  %v1450 = vadd.f32 0.0, %v1449
  %v1451 = vpop.f32.mrf.mxu0
  %v1452 = vpop.f32.mrf.mxu0
  %1453 = vdwg.mxu0
  %v1454 = vadd.f32 %v1368, %v1407
  %v1455 = vadd.f32 %v1369, %v1409
  %v1456 = vadd.f32 %v1370, %v1448
  %v1457 = vadd.f32 %v1371, %v1450
  %v1458 = vxor.u32 %v1454, 2147483648
  %v1459 = vxor.u32 %v1455, 2147483648
  %v1460 = vxor.u32 %v1456, 2147483648
  %v1461 = vmul.f32 %v1458, 1.442695
  %v1462 = vpow.pop %v1461
  %v1463 = vmul.f32 %v1459, 1.442695
  %v1464 = vpow.pop %v1463
  %v1465 = vmul.f32 %v1460, 1.442695
  %v1466 = vpow.pop %v1465
  %v1467 = vadd.f32 %v1462, 1.0
  %v1468 = vadd.f32 %v1464, 1.0
  %v1469 = vadd.f32 %v1466, 1.0
  %v1470 = vrcp.pop %v1467
  %v1471 = vmul.f32 1.0, %v1470
  %v1472 = vrcp.pop %v1468
  %v1473 = vmul.f32 1.0, %v1472
  %v1474 = vrcp.pop %v1469
  %v1475 = vmul.f32 1.0, %v1474
  %v1476 = vtanh.pop %v1457
  %v1477 = vmul.f32 %v1473, %v1361
  %v1478 = vmul.f32 %v1471, %v1476
  %v1479 = vadd.f32 %v1477, %v1478
  %v1480 = vtanh.pop %v1479
  %v1481 = vmul.f32 %v1475, %v1480
  %v1482 = vpack.c.bf16 %v1481, %v1481
  %s1483 = scalar_lea.vmem [#allocation3], 24
  %1484 = vst [vmem:[%s1483] sm:$0xf] %v1482
  %s1485 = scalar_lea.vmem [#allocation2], 224
  %v1486 = vld [vmem:[%s1485] sm:$0xff]
  %v1487 = vld [vmem:[%s1485 + $0x8] sm:$0xff]
  %v1488 = vld [vmem:[%s1485 + $0x10] sm:$0xff]
  %v1489 = vld [vmem:[%s1485 + $0x18] sm:$0xff]
  %1490 = vmatprep.subr.bf16.mxu0 %v630
  %1491 = vmatpush1.bf16.msra.mxu0 %v629
  %1492 = vmatprep.subr.bf16.mxu0 %v626
  %1493 = vmatpush1.bf16.msra.mxu0 %v625
  %1494 = vmatprep.subr.bf16.mxu0 %v622
  %1495 = vmatpush1.bf16.msra.mxu0 %v621
  %1496 = vmatprep.subr.bf16.mxu0 %v618
  %1497 = vmatpush1.bf16.msra.mxu0 %v617
  %1498 = vmatprep.subr.bf16.mxu0 %v614
  %1499 = vmatpush1.bf16.msra.mxu0 %v613
  %1500 = vmatprep.subr.bf16.mxu0 %v610
  %1501 = vmatpush1.bf16.msra.mxu0 %v609
  %1502 = vmatprep.subr.bf16.mxu0 %v606
  %1503 = vmatpush1.bf16.msra.mxu0 %v605
  %1504 = vmatprep.subr.bf16.mxu0 %v602
  %1505 = vmatpush1.bf16.msra.mxu0 %v601
  %1506 = vmatprep.subr.bf16.mxu0 0
  %1507 = vmatpush2.bf16.msra.mxu0 0
  %1508 = vmatprep.subr.bf16.mxu0 0
  %1509 = vmatpush2.bf16.msra.mxu0 0
  %1510 = vmatprep.subr.bf16.mxu0 0
  %1511 = vmatpush2.bf16.msra.mxu0 0
  %1512 = vmatprep.subr.bf16.mxu0 0
  %1513 = vmatpush2.bf16.msra.mxu0 0
  %1514 = vmatprep.subr.bf16.mxu0 0
  %1515 = vmatpush2.bf16.msra.mxu0 0
  %1516 = vmatprep.subr.bf16.mxu0 0
  %1517 = vmatpush2.bf16.msra.mxu0 0
  %1518 = vmatprep.subr.bf16.mxu0 0
  %1519 = vmatpush2.bf16.msra.mxu0 0
  %1520 = vmatprep.subr.bf16.mxu0 0
  %1521 = vmatpush2.bf16.msra.mxu0 0
  %1522 = vmatprep.mubr.bf16.mxu0 0
  %1523 = vmatmul.mubr.bf16.gmra.mxu0 %v1482
  %v1524 = vpop.f32.mrf.mxu0
  %v1525 = vadd.f32 0.0, %v1524
  %v1526 = vpop.f32.mrf.mxu0
  %v1527 = vadd.f32 0.0, %v1526
  %v1528 = vpop.f32.mrf.mxu0
  %v1529 = vpop.f32.mrf.mxu0
  %1530 = vdwg.mxu0
  %1531 = vmatprep.subr.bf16.mxu0 %v632
  %1532 = vmatpush1.bf16.msra.mxu0 %v631
  %1533 = vmatprep.subr.bf16.mxu0 %v628
  %1534 = vmatpush1.bf16.msra.mxu0 %v627
  %1535 = vmatprep.subr.bf16.mxu0 %v624
  %1536 = vmatpush1.bf16.msra.mxu0 %v623
  %1537 = vmatprep.subr.bf16.mxu0 %v620
  %1538 = vmatpush1.bf16.msra.mxu0 %v619
  %1539 = vmatprep.subr.bf16.mxu0 %v616
  %1540 = vmatpush1.bf16.msra.mxu0 %v615
  %1541 = vmatprep.subr.bf16.mxu0 %v612
  %1542 = vmatpush1.bf16.msra.mxu0 %v611
  %1543 = vmatprep.subr.bf16.mxu0 %v608
  %1544 = vmatpush1.bf16.msra.mxu0 %v607
  %1545 = vmatprep.subr.bf16.mxu0 %v604
  %1546 = vmatpush1.bf16.msra.mxu0 %v603
  %1547 = vmatprep.subr.bf16.mxu0 0
  %1548 = vmatpush2.bf16.msra.mxu0 0
  %1549 = vmatprep.subr.bf16.mxu0 0
  %1550 = vmatpush2.bf16.msra.mxu0 0
  %1551 = vmatprep.subr.bf16.mxu0 0
  %1552 = vmatpush2.bf16.msra.mxu0 0
  %1553 = vmatprep.subr.bf16.mxu0 0
  %1554 = vmatpush2.bf16.msra.mxu0 0
  %1555 = vmatprep.subr.bf16.mxu0 0
  %1556 = vmatpush2.bf16.msra.mxu0 0
  %1557 = vmatprep.subr.bf16.mxu0 0
  %1558 = vmatpush2.bf16.msra.mxu0 0
  %1559 = vmatprep.subr.bf16.mxu0 0
  %1560 = vmatpush2.bf16.msra.mxu0 0
  %1561 = vmatprep.subr.bf16.mxu0 0
  %1562 = vmatpush2.bf16.msra.mxu0 0
  %1563 = vmatprep.mubr.bf16.mxu0 0
  %1564 = vmatmul.mubr.bf16.gmra.mxu0 %v1482
  %v1565 = vpop.f32.mrf.mxu0
  %v1566 = vadd.f32 0.0, %v1565
  %v1567 = vpop.f32.mrf.mxu0
  %v1568 = vadd.f32 0.0, %v1567
  %v1569 = vpop.f32.mrf.mxu0
  %v1570 = vpop.f32.mrf.mxu0
  %1571 = vdwg.mxu0
  %v1572 = vadd.f32 %v1486, %v1525
  %v1573 = vadd.f32 %v1487, %v1527
  %v1574 = vadd.f32 %v1488, %v1566
  %v1575 = vadd.f32 %v1489, %v1568
  %v1576 = vxor.u32 %v1572, 2147483648
  %v1577 = vxor.u32 %v1573, 2147483648
  %v1578 = vxor.u32 %v1574, 2147483648
  %v1579 = vmul.f32 %v1576, 1.442695
  %v1580 = vpow.pop %v1579
  %v1581 = vmul.f32 %v1577, 1.442695
  %v1582 = vpow.pop %v1581
  %v1583 = vmul.f32 %v1578, 1.442695
  %v1584 = vpow.pop %v1583
  %v1585 = vadd.f32 %v1580, 1.0
  %v1586 = vadd.f32 %v1582, 1.0
  %v1587 = vadd.f32 %v1584, 1.0
  %v1588 = vrcp.pop %v1585
  %v1589 = vmul.f32 1.0, %v1588
  %v1590 = vrcp.pop %v1586
  %v1591 = vmul.f32 1.0, %v1590
  %v1592 = vrcp.pop %v1587
  %v1593 = vmul.f32 1.0, %v1592
  %v1594 = vtanh.pop %v1575
  %v1595 = vmul.f32 %v1591, %v1479
  %v1596 = vmul.f32 %v1589, %v1594
  %v1597 = vadd.f32 %v1595, %v1596
  %v1598 = vtanh.pop %v1597
  %v1599 = vmul.f32 %v1593, %v1598
  %v1600 = vpack.c.bf16 %v1599, %v1599
  %s1601 = scalar_lea.vmem [#allocation3], 28
  %1602 = vst [vmem:[%s1601] sm:$0xf] %v1600
  %v1603 = vld [vmem:[#allocation3] sm:$0xf]
  %v1604 = vld [vmem:[#allocation3 + $0x4] sm:$0xf]
  %v1605 = vld [vmem:[#allocation3 + $0x8] sm:$0xf]
  %v1606 = vld [vmem:[#allocation3 + $0xc] sm:$0xf]
  %v1607 = vld [vmem:[#allocation3 + $0x10] sm:$0xf]
  %v1608 = vld [vmem:[#allocation3 + $0x14] sm:$0xf]
  %v1609 = vld [vmem:[#allocation3 + $0x18] sm:$0xf]
  %v1610 = vld [vmem:[#allocation3 + $0x1c] sm:$0xf]
  %v1611 = vld [vmem:[%s4] sm:$0xff]
  %v1612 = vld [vmem:[%s4 + $0x8] sm:$0xff]
  %v1613 = vld [vmem:[%s4 + $0x10] sm:$0xff]
  %v1614 = vld [vmem:[%s4 + $0x18] sm:$0xff]
  %v1615 = vld [vmem:[%s4 + $0x20] sm:$0xff]
  %v1616 = vld [vmem:[%s4 + $0x28] sm:$0xff]
  %v1617 = vld [vmem:[%s4 + $0x30] sm:$0xff]
  %v1618 = vld [vmem:[%s4 + $0x38] sm:$0xff]
  %v1619 = vld [vmem:[%s4 + $0x40] sm:$0xff]
  %v1620 = vld [vmem:[%s4 + $0x48] sm:$0xff]
  %v1621 = vld [vmem:[%s4 + $0x50] sm:$0xff]
  %v1622 = vld [vmem:[%s4 + $0x58] sm:$0xff]
  %v1623 = vld [vmem:[%s4 + $0x60] sm:$0xff]
  %v1624 = vld [vmem:[%s4 + $0x68] sm:$0xff]
  %v1625 = vld [vmem:[%s4 + $0x70] sm:$0xff]
  %v1626 = vld [vmem:[%s4 + $0x78] sm:$0xff]
  %v1627 = vld [vmem:[%s4 + $0x80] sm:$0xff]
  %v1628 = vld [vmem:[%s4 + $0x88] sm:$0xff]
  %v1629 = vld [vmem:[%s4 + $0x90] sm:$0xff]
  %v1630 = vld [vmem:[%s4 + $0x98] sm:$0xff]
  %v1631 = vld [vmem:[%s4 + $0xa0] sm:$0xff]
  %v1632 = vld [vmem:[%s4 + $0xa8] sm:$0xff]
  %v1633 = vld [vmem:[%s4 + $0xb0] sm:$0xff]
  %v1634 = vld [vmem:[%s4 + $0xb8] sm:$0xff]
  %v1635 = vld [vmem:[%s4 + $0xc0] sm:$0xff]
  %v1636 = vld [vmem:[%s4 + $0xc8] sm:$0xff]
  %v1637 = vld [vmem:[%s4 + $0xd0] sm:$0xff]
  %v1638 = vld [vmem:[%s4 + $0xd8] sm:$0xff]
  %v1639 = vld [vmem:[%s4 + $0xe0] sm:$0xff]
  %v1640 = vld [vmem:[%s4 + $0xe8] sm:$0xff]
  %v1641 = vld [vmem:[%s4 + $0xf0] sm:$0xff]
  %v1642 = vld [vmem:[%s4 + $0xf8] sm:$0xff]
  %v1643 = vld [vmem:[%s6] sm:$0xf]
  %v1645 = vlaneseq
  %v1646 = vshrl.u32 %v1645, 7
  %v1647 = vsub.s32 0, %v1646
  %v1648 = vrot.slane %v1643, %v1647
  %v1649 = vlaneseq
  %v1650 = vshrl.u32 %v1649, 7
  %v1651 = vsub.s32 1, %v1650
  %v1652 = vrot.slane %v1643, %v1651
  %v1653 = vlaneseq
  %v1654 = vshrl.u32 %v1653, 7
  %v1655 = vsub.s32 2, %v1654
  %v1656 = vrot.slane %v1643, %v1655
  %v1657 = vlaneseq
  %v1658 = vshrl.u32 %v1657, 7
  %v1659 = vsub.s32 3, %v1658
  %v1660 = vrot.slane %v1643, %v1659
  %v1673 = vunpack.c.l.b16 %v1603
  %v1674 = vunpack.c.l.b16 %v1604
  %v1675 = vunpack.c.l.b16 %v1605
  %v1676 = vunpack.c.l.b16 %v1606
  %v1677 = vunpack.c.l.b16 %v1607
  %v1678 = vunpack.c.l.b16 %v1608
  %v1679 = vunpack.c.l.b16 %v1609
  %v1680 = vunpack.c.l.b16 %v1610
  %v1681 = vpack.c.b16 %v1674, %v1673
  %v1682 = vpack.c.b16 %v1676, %v1675
  %v1683 = vpack.c.b16 %v1678, %v1677
  %v1684 = vpack.c.b16 %v1680, %v1679
  %v1721 = vunpack.c.l.b16 %v1611
  %v1722 = vunpack.c.h.b16 %v1611
  %v1723 = vunpack.c.l.b16 %v1612
  %v1724 = vunpack.c.h.b16 %v1612
  %v1725 = vunpack.c.l.b16 %v1613
  %v1726 = vunpack.c.h.b16 %v1613
  %v1727 = vunpack.c.l.b16 %v1614
  %v1728 = vunpack.c.h.b16 %v1614
  %v1729 = vunpack.c.l.b16 %v1615
  %v1730 = vunpack.c.h.b16 %v1615
  %v1731 = vunpack.c.l.b16 %v1616
  %v1732 = vunpack.c.h.b16 %v1616
  %v1733 = vunpack.c.l.b16 %v1617
  %v1734 = vunpack.c.h.b16 %v1617
  %v1735 = vunpack.c.l.b16 %v1618
  %v1736 = vunpack.c.h.b16 %v1618
  %v1737 = vunpack.c.l.b16 %v1619
  %v1738 = vunpack.c.h.b16 %v1619
  %v1739 = vunpack.c.l.b16 %v1620
  %v1740 = vunpack.c.h.b16 %v1620
  %v1741 = vunpack.c.l.b16 %v1621
  %v1742 = vunpack.c.h.b16 %v1621
  %v1743 = vunpack.c.l.b16 %v1622
  %v1744 = vunpack.c.h.b16 %v1622
  %v1745 = vunpack.c.l.b16 %v1623
  %v1746 = vunpack.c.h.b16 %v1623
  %v1747 = vunpack.c.l.b16 %v1624
  %v1748 = vunpack.c.h.b16 %v1624
  %v1749 = vunpack.c.l.b16 %v1625
  %v1750 = vunpack.c.h.b16 %v1625
  %v1751 = vunpack.c.l.b16 %v1626
  %v1752 = vunpack.c.h.b16 %v1626
  %v1753 = vunpack.c.l.b16 %v1627
  %v1754 = vunpack.c.h.b16 %v1627
  %v1755 = vunpack.c.l.b16 %v1628
  %v1756 = vunpack.c.h.b16 %v1628
  %v1757 = vunpack.c.l.b16 %v1629
  %v1758 = vunpack.c.h.b16 %v1629
  %v1759 = vunpack.c.l.b16 %v1630
  %v1760 = vunpack.c.h.b16 %v1630
  %v1761 = vunpack.c.l.b16 %v1631
  %v1762 = vunpack.c.h.b16 %v1631
  %v1763 = vunpack.c.l.b16 %v1632
  %v1764 = vunpack.c.h.b16 %v1632
  %v1765 = vunpack.c.l.b16 %v1633
  %v1766 = vunpack.c.h.b16 %v1633
  %v1767 = vunpack.c.l.b16 %v1634
  %v1768 = vunpack.c.h.b16 %v1634
  %v1769 = vunpack.c.l.b16 %v1635
  %v1770 = vunpack.c.h.b16 %v1635
  %v1771 = vunpack.c.l.b16 %v1636
  %v1772 = vunpack.c.h.b16 %v1636
  %v1773 = vunpack.c.l.b16 %v1637
  %v1774 = vunpack.c.h.b16 %v1637
  %v1775 = vunpack.c.l.b16 %v1638
  %v1776 = vunpack.c.h.b16 %v1638
  %v1777 = vunpack.c.l.b16 %v1639
  %v1778 = vunpack.c.h.b16 %v1639
  %v1779 = vunpack.c.l.b16 %v1640
  %v1780 = vunpack.c.h.b16 %v1640
  %v1781 = vunpack.c.l.b16 %v1641
  %v1782 = vunpack.c.h.b16 %v1641
  %v1783 = vunpack.c.l.b16 %v1642
  %v1784 = vunpack.c.h.b16 %v1642
  %v1785 = vpack.c.b16 %v1725, %v1721
  %v1786 = vpack.c.b16 %v1726, %v1722
  %v1787 = vpack.c.b16 %v1727, %v1723
  %v1788 = vpack.c.b16 %v1728, %v1724
  %v1789 = vpack.c.b16 %v1733, %v1729
  %v1790 = vpack.c.b16 %v1734, %v1730
  %v1791 = vpack.c.b16 %v1735, %v1731
  %v1792 = vpack.c.b16 %v1736, %v1732
  %v1793 = vpack.c.b16 %v1741, %v1737
  %v1794 = vpack.c.b16 %v1742, %v1738
  %v1795 = vpack.c.b16 %v1743, %v1739
  %v1796 = vpack.c.b16 %v1744, %v1740
  %v1797 = vpack.c.b16 %v1749, %v1745
  %v1798 = vpack.c.b16 %v1750, %v1746
  %v1799 = vpack.c.b16 %v1751, %v1747
  %v1800 = vpack.c.b16 %v1752, %v1748
  %v1801 = vpack.c.b16 %v1757, %v1753
  %v1802 = vpack.c.b16 %v1758, %v1754
  %v1803 = vpack.c.b16 %v1759, %v1755
  %v1804 = vpack.c.b16 %v1760, %v1756
  %v1805 = vpack.c.b16 %v1765, %v1761
  %v1806 = vpack.c.b16 %v1766, %v1762
  %v1807 = vpack.c.b16 %v1767, %v1763
  %v1808 = vpack.c.b16 %v1768, %v1764
  %v1809 = vpack.c.b16 %v1773, %v1769
  %v1810 = vpack.c.b16 %v1774, %v1770
  %v1811 = vpack.c.b16 %v1775, %v1771
  %v1812 = vpack.c.b16 %v1776, %v1772
  %v1813 = vpack.c.b16 %v1781, %v1777
  %v1814 = vpack.c.b16 %v1782, %v1778
  %v1815 = vpack.c.b16 %v1783, %v1779
  %v1816 = vpack.c.b16 %v1784, %v1780
  %1849 = vmatprep.subr.bf16.mxu0 %v1814
  %1850 = vmatpush1.bf16.msra.mxu0 %v1813
  %1851 = vmatprep.subr.bf16.mxu0 %v1810
  %1852 = vmatpush1.bf16.msra.mxu0 %v1809
  %1853 = vmatprep.subr.bf16.mxu0 %v1806
  %1854 = vmatpush1.bf16.msra.mxu0 %v1805
  %1855 = vmatprep.subr.bf16.mxu0 %v1802
  %1856 = vmatpush1.bf16.msra.mxu0 %v1801
  %1857 = vmatprep.subr.bf16.mxu0 %v1798
  %1858 = vmatpush1.bf16.msra.mxu0 %v1797
  %1859 = vmatprep.subr.bf16.mxu0 %v1794
  %1860 = vmatpush1.bf16.msra.mxu0 %v1793
  %1861 = vmatprep.subr.bf16.mxu0 %v1790
  %1862 = vmatpush1.bf16.msra.mxu0 %v1789
  %1863 = vmatprep.subr.bf16.mxu0 %v1786
  %1864 = vmatpush1.bf16.msra.mxu0 %v1785
  %1865 = vmatprep.subr.bf16.mxu0 0
  %1866 = vmatpush2.bf16.msra.mxu0 0
  %1867 = vmatprep.subr.bf16.mxu0 0
  %1868 = vmatpush2.bf16.msra.mxu0 0
  %1869 = vmatprep.subr.bf16.mxu0 0
  %1870 = vmatpush2.bf16.msra.mxu0 0
  %1871 = vmatprep.subr.bf16.mxu0 0
  %1872 = vmatpush2.bf16.msra.mxu0 0
  %1873 = vmatprep.subr.bf16.mxu0 0
  %1874 = vmatpush2.bf16.msra.mxu0 0
  %1875 = vmatprep.subr.bf16.mxu0 0
  %1876 = vmatpush2.bf16.msra.mxu0 0
  %1877 = vmatprep.subr.bf16.mxu0 0
  %1878 = vmatpush2.bf16.msra.mxu0 0
  %1879 = vmatprep.subr.bf16.mxu0 0
  %1880 = vmatpush2.bf16.msra.mxu0 0
  %1881 = vmatprep.mubr.bf16.mxu0 0
  %1882 = vmatmul.mubr.bf16.gmra.mxu0 %v1681
  %v1883 = vpop.f32.mrf.mxu0
  %v1884 = vadd.f32 %v1648, %v1883
  %v1885 = vpop.f32.mrf.mxu0
  %v1886 = vadd.f32 %v1652, %v1885
  %v1887 = vpop.f32.mrf.mxu0
  %v1888 = vadd.f32 %v1648, %v1887
  %v1889 = vpop.f32.mrf.mxu0
  %v1890 = vadd.f32 %v1652, %v1889
  %1891 = vmatprep.mubr.bf16.mxu0 0
  %1892 = vmatmul.mubr.bf16.gmra.mxu0 %v1682
  %v1893 = vpop.f32.mrf.mxu0
  %v1894 = vadd.f32 %v1648, %v1893
  %v1895 = vpop.f32.mrf.mxu0
  %v1896 = vadd.f32 %v1652, %v1895
  %v1897 = vpop.f32.mrf.mxu0
  %v1898 = vadd.f32 %v1648, %v1897
  %v1899 = vpop.f32.mrf.mxu0
  %v1900 = vadd.f32 %v1652, %v1899
  %1901 = vmatprep.mubr.bf16.mxu0 0
  %1902 = vmatmul.mubr.bf16.gmra.mxu0 %v1683
  %v1903 = vpop.f32.mrf.mxu0
  %v1904 = vadd.f32 %v1648, %v1903
  %v1905 = vpop.f32.mrf.mxu0
  %v1906 = vadd.f32 %v1652, %v1905
  %v1907 = vpop.f32.mrf.mxu0
  %v1908 = vadd.f32 %v1648, %v1907
  %v1909 = vpop.f32.mrf.mxu0
  %v1910 = vadd.f32 %v1652, %v1909
  %1911 = vmatprep.mubr.bf16.mxu0 0
  %1912 = vmatmul.mubr.bf16.gmra.mxu0 %v1684
  %v1913 = vpop.f32.mrf.mxu0
  %v1914 = vadd.f32 %v1648, %v1913
  %v1915 = vpop.f32.mrf.mxu0
  %v1916 = vadd.f32 %v1652, %v1915
  %v1917 = vpop.f32.mrf.mxu0
  %v1918 = vadd.f32 %v1648, %v1917
  %v1919 = vpop.f32.mrf.mxu0
  %v1920 = vadd.f32 %v1652, %v1919
  %1921 = vdwg.mxu0
  %1922 = vmatprep.subr.bf16.mxu0 %v1816
  %1923 = vmatpush1.bf16.msra.mxu0 %v1815
  %1924 = vmatprep.subr.bf16.mxu0 %v1812
  %1925 = vmatpush1.bf16.msra.mxu0 %v1811
  %1926 = vmatprep.subr.bf16.mxu0 %v1808
  %1927 = vmatpush1.bf16.msra.mxu0 %v1807
  %1928 = vmatprep.subr.bf16.mxu0 %v1804
  %1929 = vmatpush1.bf16.msra.mxu0 %v1803
  %1930 = vmatprep.subr.bf16.mxu0 %v1800
  %1931 = vmatpush1.bf16.msra.mxu0 %v1799
  %1932 = vmatprep.subr.bf16.mxu0 %v1796
  %1933 = vmatpush1.bf16.msra.mxu0 %v1795
  %1934 = vmatprep.subr.bf16.mxu0 %v1792
  %1935 = vmatpush1.bf16.msra.mxu0 %v1791
  %1936 = vmatprep.subr.bf16.mxu0 %v1788
  %1937 = vmatpush1.bf16.msra.mxu0 %v1787
  %1938 = vmatprep.subr.bf16.mxu0 0
  %1939 = vmatpush2.bf16.msra.mxu0 0
  %1940 = vmatprep.subr.bf16.mxu0 0
  %1941 = vmatpush2.bf16.msra.mxu0 0
  %1942 = vmatprep.subr.bf16.mxu0 0
  %1943 = vmatpush2.bf16.msra.mxu0 0
  %1944 = vmatprep.subr.bf16.mxu0 0
  %1945 = vmatpush2.bf16.msra.mxu0 0
  %1946 = vmatprep.subr.bf16.mxu0 0
  %1947 = vmatpush2.bf16.msra.mxu0 0
  %1948 = vmatprep.subr.bf16.mxu0 0
  %1949 = vmatpush2.bf16.msra.mxu0 0
  %1950 = vmatprep.subr.bf16.mxu0 0
  %1951 = vmatpush2.bf16.msra.mxu0 0
  %1952 = vmatprep.subr.bf16.mxu0 0
  %1953 = vmatpush2.bf16.msra.mxu0 0
  %1954 = vmatprep.mubr.bf16.mxu0 0
  %1955 = vmatmul.mubr.bf16.gmra.mxu0 %v1681
  %v1956 = vpop.f32.mrf.mxu0
  %v1957 = vadd.f32 %v1656, %v1956
  %v1958 = vpop.f32.mrf.mxu0
  %v1959 = vadd.f32 %v1660, %v1958
  %v1960 = vpop.f32.mrf.mxu0
  %v1961 = vadd.f32 %v1656, %v1960
  %v1962 = vpop.f32.mrf.mxu0
  %v1963 = vadd.f32 %v1660, %v1962
  %1964 = vmatprep.mubr.bf16.mxu0 0
  %1965 = vmatmul.mubr.bf16.gmra.mxu0 %v1682
  %v1966 = vpop.f32.mrf.mxu0
  %v1967 = vadd.f32 %v1656, %v1966
  %v1968 = vpop.f32.mrf.mxu0
  %v1969 = vadd.f32 %v1660, %v1968
  %v1970 = vpop.f32.mrf.mxu0
  %v1971 = vadd.f32 %v1656, %v1970
  %v1972 = vpop.f32.mrf.mxu0
  %v1973 = vadd.f32 %v1660, %v1972
  %1974 = vmatprep.mubr.bf16.mxu0 0
  %1975 = vmatmul.mubr.bf16.gmra.mxu0 %v1683
  %v1976 = vpop.f32.mrf.mxu0
  %v1977 = vadd.f32 %v1656, %v1976
  %v1978 = vpop.f32.mrf.mxu0
  %v1979 = vadd.f32 %v1660, %v1978
  %v1980 = vpop.f32.mrf.mxu0
  %v1981 = vadd.f32 %v1656, %v1980
  %v1982 = vpop.f32.mrf.mxu0
  %v1983 = vadd.f32 %v1660, %v1982
  %1984 = vmatprep.mubr.bf16.mxu0 0
  %1985 = vmatmul.mubr.bf16.gmra.mxu0 %v1684
  %v1986 = vpop.f32.mrf.mxu0
  %v1987 = vadd.f32 %v1656, %v1986
  %v1988 = vpop.f32.mrf.mxu0
  %v1989 = vadd.f32 %v1660, %v1988
  %v1990 = vpop.f32.mrf.mxu0
  %v1991 = vadd.f32 %v1656, %v1990
  %v1992 = vpop.f32.mrf.mxu0
  %v1993 = vadd.f32 %v1660, %v1992
  %1994 = vdwg.mxu0
  %1995 = vst [vmem:[#allocation2] sm:$0xff] %v1884
  %1996 = vst [vmem:[#allocation2 + $0x8] sm:$0xff] %v1886
  %1997 = vst [vmem:[#allocation2 + $0x10] sm:$0xff] %v1957
  %1998 = vst [vmem:[#allocation2 + $0x18] sm:$0xff] %v1959
  %1999 = vst [vmem:[#allocation2 + $0x20] sm:$0xff] %v1888
  %2000 = vst [vmem:[#allocation2 + $0x28] sm:$0xff] %v1890
  %2001 = vst [vmem:[#allocation2 + $0x30] sm:$0xff] %v1961
  %2002 = vst [vmem:[#allocation2 + $0x38] sm:$0xff] %v1963
  %2003 = vst [vmem:[#allocation2 + $0x40] sm:$0xff] %v1894
  %2004 = vst [vmem:[#allocation2 + $0x48] sm:$0xff] %v1896
  %2005 = vst [vmem:[#allocation2 + $0x50] sm:$0xff] %v1967
  %2006 = vst [vmem:[#allocation2 + $0x58] sm:$0xff] %v1969
  %2007 = vst [vmem:[#allocation2 + $0x60] sm:$0xff] %v1898
  %2008 = vst [vmem:[#allocation2 + $0x68] sm:$0xff] %v1900
  %2009 = vst [vmem:[#allocation2 + $0x70] sm:$0xff] %v1971
  %2010 = vst [vmem:[#allocation2 + $0x78] sm:$0xff] %v1973
  %2011 = vst [vmem:[#allocation2 + $0x80] sm:$0xff] %v1904
  %2012 = vst [vmem:[#allocation2 + $0x88] sm:$0xff] %v1906
  %2013 = vst [vmem:[#allocation2 + $0x90] sm:$0xff] %v1977
  %2014 = vst [vmem:[#allocation2 + $0x98] sm:$0xff] %v1979
  %2015 = vst [vmem:[#allocation2 + $0xa0] sm:$0xff] %v1908
  %2016 = vst [vmem:[#allocation2 + $0xa8] sm:$0xff] %v1910
  %2017 = vst [vmem:[#allocation2 + $0xb0] sm:$0xff] %v1981
  %2018 = vst [vmem:[#allocation2 + $0xb8] sm:$0xff] %v1983
  %2019 = vst [vmem:[#allocation2 + $0xc0] sm:$0xff] %v1914
  %2020 = vst [vmem:[#allocation2 + $0xc8] sm:$0xff] %v1916
  %2021 = vst [vmem:[#allocation2 + $0xd0] sm:$0xff] %v1987
  %2022 = vst [vmem:[#allocation2 + $0xd8] sm:$0xff] %v1989
  %2023 = vst [vmem:[#allocation2 + $0xe0] sm:$0xff] %v1918
  %2024 = vst [vmem:[#allocation2 + $0xe8] sm:$0xff] %v1920
  %2025 = vst [vmem:[#allocation2 + $0xf0] sm:$0xff] %v1991
  %2026 = vst [vmem:[#allocation2 + $0xf8] sm:$0xff] %v1993
  %v2027 = vld [vmem:[%s5] sm:$0xff]
  %v2028 = vld [vmem:[%s5 + $0x8] sm:$0xff]
  %v2029 = vld [vmem:[%s5 + $0x10] sm:$0xff]
  %v2030 = vld [vmem:[%s5 + $0x18] sm:$0xff]
  %v2031 = vld [vmem:[%s5 + $0x20] sm:$0xff]
  %v2032 = vld [vmem:[%s5 + $0x28] sm:$0xff]
  %v2033 = vld [vmem:[%s5 + $0x30] sm:$0xff]
  %v2034 = vld [vmem:[%s5 + $0x38] sm:$0xff]
  %v2035 = vld [vmem:[%s5 + $0x40] sm:$0xff]
  %v2036 = vld [vmem:[%s5 + $0x48] sm:$0xff]
  %v2037 = vld [vmem:[%s5 + $0x50] sm:$0xff]
  %v2038 = vld [vmem:[%s5 + $0x58] sm:$0xff]
  %v2039 = vld [vmem:[%s5 + $0x60] sm:$0xff]
  %v2040 = vld [vmem:[%s5 + $0x68] sm:$0xff]
  %v2041 = vld [vmem:[%s5 + $0x70] sm:$0xff]
  %v2042 = vld [vmem:[%s5 + $0x78] sm:$0xff]
  %v2043 = vld [vmem:[%s5 + $0x80] sm:$0xff]
  %v2044 = vld [vmem:[%s5 + $0x88] sm:$0xff]
  %v2045 = vld [vmem:[%s5 + $0x90] sm:$0xff]
  %v2046 = vld [vmem:[%s5 + $0x98] sm:$0xff]
  %v2047 = vld [vmem:[%s5 + $0xa0] sm:$0xff]
  %v2048 = vld [vmem:[%s5 + $0xa8] sm:$0xff]
  %v2049 = vld [vmem:[%s5 + $0xb0] sm:$0xff]
  %v2050 = vld [vmem:[%s5 + $0xb8] sm:$0xff]
  %v2051 = vld [vmem:[%s5 + $0xc0] sm:$0xff]
  %v2052 = vld [vmem:[%s5 + $0xc8] sm:$0xff]
  %v2053 = vld [vmem:[%s5 + $0xd0] sm:$0xff]
  %v2054 = vld [vmem:[%s5 + $0xd8] sm:$0xff]
  %v2055 = vld [vmem:[%s5 + $0xe0] sm:$0xff]
  %v2056 = vld [vmem:[%s5 + $0xe8] sm:$0xff]
  %v2057 = vld [vmem:[%s5 + $0xf0] sm:$0xff]
  %v2058 = vld [vmem:[%s5 + $0xf8] sm:$0xff]
  %v2059 = vld [vmem:[#allocation2] sm:$0xff]
  %v2060 = vld [vmem:[#allocation2 + $0x8] sm:$0xff]
  %v2061 = vld [vmem:[#allocation2 + $0x10] sm:$0xff]
  %v2062 = vld [vmem:[#allocation2 + $0x18] sm:$0xff]
  %v2095 = vunpack.c.l.b16 %v2027
  %v2096 = vunpack.c.h.b16 %v2027
  %v2097 = vunpack.c.l.b16 %v2028
  %v2098 = vunpack.c.h.b16 %v2028
  %v2099 = vunpack.c.l.b16 %v2029
  %v2100 = vunpack.c.h.b16 %v2029
  %v2101 = vunpack.c.l.b16 %v2030
  %v2102 = vunpack.c.h.b16 %v2030
  %v2103 = vunpack.c.l.b16 %v2031
  %v2104 = vunpack.c.h.b16 %v2031
  %v2105 = vunpack.c.l.b16 %v2032
  %v2106 = vunpack.c.h.b16 %v2032
  %v2107 = vunpack.c.l.b16 %v2033
  %v2108 = vunpack.c.h.b16 %v2033
  %v2109 = vunpack.c.l.b16 %v2034
  %v2110 = vunpack.c.h.b16 %v2034
  %v2111 = vunpack.c.l.b16 %v2035
  %v2112 = vunpack.c.h.b16 %v2035
  %v2113 = vunpack.c.l.b16 %v2036
  %v2114 = vunpack.c.h.b16 %v2036
  %v2115 = vunpack.c.l.b16 %v2037
  %v2116 = vunpack.c.h.b16 %v2037
  %v2117 = vunpack.c.l.b16 %v2038
  %v2118 = vunpack.c.h.b16 %v2038
  %v2119 = vunpack.c.l.b16 %v2039
  %v2120 = vunpack.c.h.b16 %v2039
  %v2121 = vunpack.c.l.b16 %v2040
  %v2122 = vunpack.c.h.b16 %v2040
  %v2123 = vunpack.c.l.b16 %v2041
  %v2124 = vunpack.c.h.b16 %v2041
  %v2125 = vunpack.c.l.b16 %v2042
  %v2126 = vunpack.c.h.b16 %v2042
  %v2127 = vunpack.c.l.b16 %v2043
  %v2128 = vunpack.c.h.b16 %v2043
  %v2129 = vunpack.c.l.b16 %v2044
  %v2130 = vunpack.c.h.b16 %v2044
  %v2131 = vunpack.c.l.b16 %v2045
  %v2132 = vunpack.c.h.b16 %v2045
  %v2133 = vunpack.c.l.b16 %v2046
  %v2134 = vunpack.c.h.b16 %v2046
  %v2135 = vunpack.c.l.b16 %v2047
  %v2136 = vunpack.c.h.b16 %v2047
  %v2137 = vunpack.c.l.b16 %v2048
  %v2138 = vunpack.c.h.b16 %v2048
  %v2139 = vunpack.c.l.b16 %v2049
  %v2140 = vunpack.c.h.b16 %v2049
  %v2141 = vunpack.c.l.b16 %v2050
  %v2142 = vunpack.c.h.b16 %v2050
  %v2143 = vunpack.c.l.b16 %v2051
  %v2144 = vunpack.c.h.b16 %v2051
  %v2145 = vunpack.c.l.b16 %v2052
  %v2146 = vunpack.c.h.b16 %v2052
  %v2147 = vunpack.c.l.b16 %v2053
  %v2148 = vunpack.c.h.b16 %v2053
  %v2149 = vunpack.c.l.b16 %v2054
  %v2150 = vunpack.c.h.b16 %v2054
  %v2151 = vunpack.c.l.b16 %v2055
  %v2152 = vunpack.c.h.b16 %v2055
  %v2153 = vunpack.c.l.b16 %v2056
  %v2154 = vunpack.c.h.b16 %v2056
  %v2155 = vunpack.c.l.b16 %v2057
  %v2156 = vunpack.c.h.b16 %v2057
  %v2157 = vunpack.c.l.b16 %v2058
  %v2158 = vunpack.c.h.b16 %v2058
  %v2159 = vpack.c.b16 %v2099, %v2095
  %v2160 = vpack.c.b16 %v2100, %v2096
  %v2161 = vpack.c.b16 %v2101, %v2097
  %v2162 = vpack.c.b16 %v2102, %v2098
  %v2163 = vpack.c.b16 %v2107, %v2103
  %v2164 = vpack.c.b16 %v2108, %v2104
  %v2165 = vpack.c.b16 %v2109, %v2105
  %v2166 = vpack.c.b16 %v2110, %v2106
  %v2167 = vpack.c.b16 %v2115, %v2111
  %v2168 = vpack.c.b16 %v2116, %v2112
  %v2169 = vpack.c.b16 %v2117, %v2113
  %v2170 = vpack.c.b16 %v2118, %v2114
  %v2171 = vpack.c.b16 %v2123, %v2119
  %v2172 = vpack.c.b16 %v2124, %v2120
  %v2173 = vpack.c.b16 %v2125, %v2121
  %v2174 = vpack.c.b16 %v2126, %v2122
  %v2175 = vpack.c.b16 %v2131, %v2127
  %v2176 = vpack.c.b16 %v2132, %v2128
  %v2177 = vpack.c.b16 %v2133, %v2129
  %v2178 = vpack.c.b16 %v2134, %v2130
  %v2179 = vpack.c.b16 %v2139, %v2135
  %v2180 = vpack.c.b16 %v2140, %v2136
  %v2181 = vpack.c.b16 %v2141, %v2137
  %v2182 = vpack.c.b16 %v2142, %v2138
  %v2183 = vpack.c.b16 %v2147, %v2143
  %v2184 = vpack.c.b16 %v2148, %v2144
  %v2185 = vpack.c.b16 %v2149, %v2145
  %v2186 = vpack.c.b16 %v2150, %v2146
  %v2187 = vpack.c.b16 %v2155, %v2151
  %v2188 = vpack.c.b16 %v2156, %v2152
  %v2189 = vpack.c.b16 %v2157, %v2153
  %v2190 = vpack.c.b16 %v2158, %v2154
  %2223 = vmatprep.subr.bf16.mxu0 %v2188
  %2224 = vmatpush1.bf16.msra.mxu0 %v2187
  %2225 = vmatprep.subr.bf16.mxu0 %v2184
  %2226 = vmatpush1.bf16.msra.mxu0 %v2183
  %2227 = vmatprep.subr.bf16.mxu0 %v2180
  %2228 = vmatpush1.bf16.msra.mxu0 %v2179
  %2229 = vmatprep.subr.bf16.mxu0 %v2176
  %2230 = vmatpush1.bf16.msra.mxu0 %v2175
  %2231 = vmatprep.subr.bf16.mxu0 %v2172
  %2232 = vmatpush1.bf16.msra.mxu0 %v2171
  %2233 = vmatprep.subr.bf16.mxu0 %v2168
  %2234 = vmatpush1.bf16.msra.mxu0 %v2167
  %2235 = vmatprep.subr.bf16.mxu0 %v2164
  %2236 = vmatpush1.bf16.msra.mxu0 %v2163
  %2237 = vmatprep.subr.bf16.mxu0 %v2160
  %2238 = vmatpush1.bf16.msra.mxu0 %v2159
  %2239 = vmatprep.subr.bf16.mxu0 0
  %2240 = vmatpush2.bf16.msra.mxu0 0
  %2241 = vmatprep.subr.bf16.mxu0 0
  %2242 = vmatpush2.bf16.msra.mxu0 0
  %2243 = vmatprep.subr.bf16.mxu0 0
  %2244 = vmatpush2.bf16.msra.mxu0 0
  %2245 = vmatprep.subr.bf16.mxu0 0
  %2246 = vmatpush2.bf16.msra.mxu0 0
  %2247 = vmatprep.subr.bf16.mxu0 0
  %2248 = vmatpush2.bf16.msra.mxu0 0
  %2249 = vmatprep.subr.bf16.mxu0 0
  %2250 = vmatpush2.bf16.msra.mxu0 0
  %2251 = vmatprep.subr.bf16.mxu0 0
  %2252 = vmatpush2.bf16.msra.mxu0 0
  %2253 = vmatprep.subr.bf16.mxu0 0
  %2254 = vmatpush2.bf16.msra.mxu0 0
  %2255 = vmatprep.mubr.bf16.mxu0 0
  %2256 = vmatmul.mubr.bf16.gmra.mxu0 0
  %v2257 = vpop.f32.mrf.mxu0
  %v2258 = vadd.f32 0.0, %v2257
  %v2259 = vpop.f32.mrf.mxu0
  %v2260 = vadd.f32 0.0, %v2259
  %v2261 = vpop.f32.mrf.mxu0
  %v2262 = vpop.f32.mrf.mxu0
  %2263 = vdwg.mxu0
  %2264 = vmatprep.subr.bf16.mxu0 %v2190
  %2265 = vmatpush1.bf16.msra.mxu0 %v2189
  %2266 = vmatprep.subr.bf16.mxu0 %v2186
  %2267 = vmatpush1.bf16.msra.mxu0 %v2185
  %2268 = vmatprep.subr.bf16.mxu0 %v2182
  %2269 = vmatpush1.bf16.msra.mxu0 %v2181
  %2270 = vmatprep.subr.bf16.mxu0 %v2178
  %2271 = vmatpush1.bf16.msra.mxu0 %v2177
  %2272 = vmatprep.subr.bf16.mxu0 %v2174
  %2273 = vmatpush1.bf16.msra.mxu0 %v2173
  %2274 = vmatprep.subr.bf16.mxu0 %v2170
  %2275 = vmatpush1.bf16.msra.mxu0 %v2169
  %2276 = vmatprep.subr.bf16.mxu0 %v2166
  %2277 = vmatpush1.bf16.msra.mxu0 %v2165
  %2278 = vmatprep.subr.bf16.mxu0 %v2162
  %2279 = vmatpush1.bf16.msra.mxu0 %v2161
  %2280 = vmatprep.subr.bf16.mxu0 0
  %2281 = vmatpush2.bf16.msra.mxu0 0
  %2282 = vmatprep.subr.bf16.mxu0 0
  %2283 = vmatpush2.bf16.msra.mxu0 0
  %2284 = vmatprep.subr.bf16.mxu0 0
  %2285 = vmatpush2.bf16.msra.mxu0 0
  %2286 = vmatprep.subr.bf16.mxu0 0
  %2287 = vmatpush2.bf16.msra.mxu0 0
  %2288 = vmatprep.subr.bf16.mxu0 0
  %2289 = vmatpush2.bf16.msra.mxu0 0
  %2290 = vmatprep.subr.bf16.mxu0 0
  %2291 = vmatpush2.bf16.msra.mxu0 0
  %2292 = vmatprep.subr.bf16.mxu0 0
  %2293 = vmatpush2.bf16.msra.mxu0 0
  %2294 = vmatprep.subr.bf16.mxu0 0
  %2295 = vmatpush2.bf16.msra.mxu0 0
  %2296 = vmatprep.mubr.bf16.mxu0 0
  %2297 = vmatmul.mubr.bf16.gmra.mxu0 0
  %v2298 = vpop.f32.mrf.mxu0
  %v2299 = vadd.f32 0.0, %v2298
  %v2300 = vpop.f32.mrf.mxu0
  %v2301 = vadd.f32 0.0, %v2300
  %v2302 = vpop.f32.mrf.mxu0
  %v2303 = vpop.f32.mrf.mxu0
  %2304 = vdwg.mxu0
  %v2305 = vadd.f32 %v2059, %v2258
  %v2306 = vadd.f32 %v2060, %v2260
  %v2307 = vadd.f32 %v2061, %v2299
  %v2308 = vadd.f32 %v2062, %v2301
  %v2309 = vxor.u32 %v2305, 2147483648
  %v2310 = vxor.u32 %v2306, 2147483648
  %v2311 = vxor.u32 %v2307, 2147483648
  %v2312 = vmul.f32 %v2309, 1.442695
  %v2313 = vpow.pop %v2312
  %v2314 = vmul.f32 %v2310, 1.442695
  %v2315 = vpow.pop %v2314
  %v2316 = vmul.f32 %v2311, 1.442695
  %v2317 = vpow.pop %v2316
  %v2318 = vadd.f32 %v2313, 1.0
  %v2319 = vadd.f32 %v2315, 1.0
  %v2320 = vadd.f32 %v2317, 1.0
  %v2321 = vrcp.pop %v2318
  %v2322 = vmul.f32 1.0, %v2321
  %v2323 = vrcp.pop %v2319
  %v2324 = vmul.f32 1.0, %v2323
  %v2325 = vrcp.pop %v2320
  %v2326 = vmul.f32 1.0, %v2325
  %v2327 = vtanh.pop %v2308
  %v2328 = vmul.f32 %v2324, 0.0
  %v2329 = vmul.f32 %v2322, %v2327
  %v2330 = vadd.f32 %v2328, %v2329
  %v2331 = vtanh.pop %v2330
  %v2332 = vmul.f32 %v2326, %v2331
  %v2333 = vld [vmem:[%s777] sm:$0xff]
  %v2334 = vld [vmem:[%s777 + $0x8] sm:$0xff]
  %v2335 = vld [vmem:[%s777 + $0x10] sm:$0xff]
  %v2336 = vld [vmem:[%s777 + $0x18] sm:$0xff]
  %v2337 = vpack.c.bf16 %v2332, %v2332
  %2338 = vmatprep.subr.bf16.mxu0 %v2188
  %2339 = vmatpush1.bf16.msra.mxu0 %v2187
  %2340 = vmatprep.subr.bf16.mxu0 %v2184
  %2341 = vmatpush1.bf16.msra.mxu0 %v2183
  %2342 = vmatprep.subr.bf16.mxu0 %v2180
  %2343 = vmatpush1.bf16.msra.mxu0 %v2179
  %2344 = vmatprep.subr.bf16.mxu0 %v2176
  %2345 = vmatpush1.bf16.msra.mxu0 %v2175
  %2346 = vmatprep.subr.bf16.mxu0 %v2172
  %2347 = vmatpush1.bf16.msra.mxu0 %v2171
  %2348 = vmatprep.subr.bf16.mxu0 %v2168
  %2349 = vmatpush1.bf16.msra.mxu0 %v2167
  %2350 = vmatprep.subr.bf16.mxu0 %v2164
  %2351 = vmatpush1.bf16.msra.mxu0 %v2163
  %2352 = vmatprep.subr.bf16.mxu0 %v2160
  %2353 = vmatpush1.bf16.msra.mxu0 %v2159
  %2354 = vmatprep.subr.bf16.mxu0 0
  %2355 = vmatpush2.bf16.msra.mxu0 0
  %2356 = vmatprep.subr.bf16.mxu0 0
  %2357 = vmatpush2.bf16.msra.mxu0 0
  %2358 = vmatprep.subr.bf16.mxu0 0
  %2359 = vmatpush2.bf16.msra.mxu0 0
  %2360 = vmatprep.subr.bf16.mxu0 0
  %2361 = vmatpush2.bf16.msra.mxu0 0
  %2362 = vmatprep.subr.bf16.mxu0 0
  %2363 = vmatpush2.bf16.msra.mxu0 0
  %2364 = vmatprep.subr.bf16.mxu0 0
  %2365 = vmatpush2.bf16.msra.mxu0 0
  %2366 = vmatprep.subr.bf16.mxu0 0
  %2367 = vmatpush2.bf16.msra.mxu0 0
  %2368 = vmatprep.subr.bf16.mxu0 0
  %2369 = vmatpush2.bf16.msra.mxu0 0
  %2370 = vmatprep.mubr.bf16.mxu0 0
  %2371 = vmatmul.mubr.bf16.gmra.mxu0 %v2337
  %v2372 = vpop.f32.mrf.mxu0
  %v2373 = vadd.f32 0.0, %v2372
  %v2374 = vpop.f32.mrf.mxu0
  %v2375 = vadd.f32 0.0, %v2374
  %v2376 = vpop.f32.mrf.mxu0
  %v2377 = vpop.f32.mrf.mxu0
  %2378 = vdwg.mxu0
  %2379 = vmatprep.subr.bf16.mxu0 %v2190
  %2380 = vmatpush1.bf16.msra.mxu0 %v2189
  %2381 = vmatprep.subr.bf16.mxu0 %v2186
  %2382 = vmatpush1.bf16.msra.mxu0 %v2185
  %2383 = vmatprep.subr.bf16.mxu0 %v2182
  %2384 = vmatpush1.bf16.msra.mxu0 %v2181
  %2385 = vmatprep.subr.bf16.mxu0 %v2178
  %2386 = vmatpush1.bf16.msra.mxu0 %v2177
  %2387 = vmatprep.subr.bf16.mxu0 %v2174
  %2388 = vmatpush1.bf16.msra.mxu0 %v2173
  %2389 = vmatprep.subr.bf16.mxu0 %v2170
  %2390 = vmatpush1.bf16.msra.mxu0 %v2169
  %2391 = vmatprep.subr.bf16.mxu0 %v2166
  %2392 = vmatpush1.bf16.msra.mxu0 %v2165
  %2393 = vmatprep.subr.bf16.mxu0 %v2162
  %2394 = vmatpush1.bf16.msra.mxu0 %v2161
  %2395 = vmatprep.subr.bf16.mxu0 0
  %2396 = vmatpush2.bf16.msra.mxu0 0
  %2397 = vmatprep.subr.bf16.mxu0 0
  %2398 = vmatpush2.bf16.msra.mxu0 0
  %2399 = vmatprep.subr.bf16.mxu0 0
  %2400 = vmatpush2.bf16.msra.mxu0 0
  %2401 = vmatprep.subr.bf16.mxu0 0
  %2402 = vmatpush2.bf16.msra.mxu0 0
  %2403 = vmatprep.subr.bf16.mxu0 0
  %2404 = vmatpush2.bf16.msra.mxu0 0
  %2405 = vmatprep.subr.bf16.mxu0 0
  %2406 = vmatpush2.bf16.msra.mxu0 0
  %2407 = vmatprep.subr.bf16.mxu0 0
  %2408 = vmatpush2.bf16.msra.mxu0 0
  %2409 = vmatprep.subr.bf16.mxu0 0
  %2410 = vmatpush2.bf16.msra.mxu0 0
  %2411 = vmatprep.mubr.bf16.mxu0 0
  %2412 = vmatmul.mubr.bf16.gmra.mxu0 %v2337
  %v2413 = vpop.f32.mrf.mxu0
  %v2414 = vadd.f32 0.0, %v2413
  %v2415 = vpop.f32.mrf.mxu0
  %v2416 = vadd.f32 0.0, %v2415
  %v2417 = vpop.f32.mrf.mxu0
  %v2418 = vpop.f32.mrf.mxu0
  %2419 = vdwg.mxu0
  %v2420 = vadd.f32 %v2333, %v2373
  %v2421 = vadd.f32 %v2334, %v2375
  %v2422 = vadd.f32 %v2335, %v2414
  %v2423 = vadd.f32 %v2336, %v2416
  %v2424 = vxor.u32 %v2420, 2147483648
  %v2425 = vxor.u32 %v2421, 2147483648
  %v2426 = vxor.u32 %v2422, 2147483648
  %v2427 = vmul.f32 %v2424, 1.442695
  %v2428 = vpow.pop %v2427
  %v2429 = vmul.f32 %v2425, 1.442695
  %v2430 = vpow.pop %v2429
  %v2431 = vmul.f32 %v2426, 1.442695
  %v2432 = vpow.pop %v2431
  %v2433 = vadd.f32 %v2428, 1.0
  %v2434 = vadd.f32 %v2430, 1.0
  %v2435 = vadd.f32 %v2432, 1.0
  %v2436 = vrcp.pop %v2433
  %v2437 = vmul.f32 1.0, %v2436
  %v2438 = vrcp.pop %v2434
  %v2439 = vmul.f32 1.0, %v2438
  %v2440 = vrcp.pop %v2435
  %v2441 = vmul.f32 1.0, %v2440
  %v2442 = vtanh.pop %v2423
  %v2443 = vmul.f32 %v2439, %v2330
  %v2444 = vmul.f32 %v2437, %v2442
  %v2445 = vadd.f32 %v2443, %v2444
  %v2446 = vtanh.pop %v2445
  %v2447 = vmul.f32 %v2441, %v2446
  %v2448 = vld [vmem:[%s895] sm:$0xff]
  %v2449 = vld [vmem:[%s895 + $0x8] sm:$0xff]
  %v2450 = vld [vmem:[%s895 + $0x10] sm:$0xff]
  %v2451 = vld [vmem:[%s895 + $0x18] sm:$0xff]
  %v2452 = vpack.c.bf16 %v2447, %v2447
  %2453 = vmatprep.subr.bf16.mxu0 %v2188
  %2454 = vmatpush1.bf16.msra.mxu0 %v2187
  %2455 = vmatprep.subr.bf16.mxu0 %v2184
  %2456 = vmatpush1.bf16.msra.mxu0 %v2183
  %2457 = vmatprep.subr.bf16.mxu0 %v2180
  %2458 = vmatpush1.bf16.msra.mxu0 %v2179
  %2459 = vmatprep.subr.bf16.mxu0 %v2176
  %2460 = vmatpush1.bf16.msra.mxu0 %v2175
  %2461 = vmatprep.subr.bf16.mxu0 %v2172
  %2462 = vmatpush1.bf16.msra.mxu0 %v2171
  %2463 = vmatprep.subr.bf16.mxu0 %v2168
  %2464 = vmatpush1.bf16.msra.mxu0 %v2167
  %2465 = vmatprep.subr.bf16.mxu0 %v2164
  %2466 = vmatpush1.bf16.msra.mxu0 %v2163
  %2467 = vmatprep.subr.bf16.mxu0 %v2160
  %2468 = vmatpush1.bf16.msra.mxu0 %v2159
  %2469 = vmatprep.subr.bf16.mxu0 0
  %2470 = vmatpush2.bf16.msra.mxu0 0
  %2471 = vmatprep.subr.bf16.mxu0 0
  %2472 = vmatpush2.bf16.msra.mxu0 0
  %2473 = vmatprep.subr.bf16.mxu0 0
  %2474 = vmatpush2.bf16.msra.mxu0 0
  %2475 = vmatprep.subr.bf16.mxu0 0
  %2476 = vmatpush2.bf16.msra.mxu0 0
  %2477 = vmatprep.subr.bf16.mxu0 0
  %2478 = vmatpush2.bf16.msra.mxu0 0
  %2479 = vmatprep.subr.bf16.mxu0 0
  %2480 = vmatpush2.bf16.msra.mxu0 0
  %2481 = vmatprep.subr.bf16.mxu0 0
  %2482 = vmatpush2.bf16.msra.mxu0 0
  %2483 = vmatprep.subr.bf16.mxu0 0
  %2484 = vmatpush2.bf16.msra.mxu0 0
  %2485 = vmatprep.mubr.bf16.mxu0 0
  %2486 = vmatmul.mubr.bf16.gmra.mxu0 %v2452
  %v2487 = vpop.f32.mrf.mxu0
  %v2488 = vadd.f32 0.0, %v2487
  %v2489 = vpop.f32.mrf.mxu0
  %v2490 = vadd.f32 0.0, %v2489
  %v2491 = vpop.f32.mrf.mxu0
  %v2492 = vpop.f32.mrf.mxu0
  %2493 = vdwg.mxu0
  %2494 = vmatprep.subr.bf16.mxu0 %v2190
  %2495 = vmatpush1.bf16.msra.mxu0 %v2189
  %2496 = vmatprep.subr.bf16.mxu0 %v2186
  %2497 = vmatpush1.bf16.msra.mxu0 %v2185
  %2498 = vmatprep.subr.bf16.mxu0 %v2182
  %2499 = vmatpush1.bf16.msra.mxu0 %v2181
  %2500 = vmatprep.subr.bf16.mxu0 %v2178
  %2501 = vmatpush1.bf16.msra.mxu0 %v2177
  %2502 = vmatprep.subr.bf16.mxu0 %v2174
  %2503 = vmatpush1.bf16.msra.mxu0 %v2173
  %2504 = vmatprep.subr.bf16.mxu0 %v2170
  %2505 = vmatpush1.bf16.msra.mxu0 %v2169
  %2506 = vmatprep.subr.bf16.mxu0 %v2166
  %2507 = vmatpush1.bf16.msra.mxu0 %v2165
  %2508 = vmatprep.subr.bf16.mxu0 %v2162
  %2509 = vmatpush1.bf16.msra.mxu0 %v2161
  %2510 = vmatprep.subr.bf16.mxu0 0
  %2511 = vmatpush2.bf16.msra.mxu0 0
  %2512 = vmatprep.subr.bf16.mxu0 0
  %2513 = vmatpush2.bf16.msra.mxu0 0
  %2514 = vmatprep.subr.bf16.mxu0 0
  %2515 = vmatpush2.bf16.msra.mxu0 0
  %2516 = vmatprep.subr.bf16.mxu0 0
  %2517 = vmatpush2.bf16.msra.mxu0 0
  %2518 = vmatprep.subr.bf16.mxu0 0
  %2519 = vmatpush2.bf16.msra.mxu0 0
  %2520 = vmatprep.subr.bf16.mxu0 0
  %2521 = vmatpush2.bf16.msra.mxu0 0
  %2522 = vmatprep.subr.bf16.mxu0 0
  %2523 = vmatpush2.bf16.msra.mxu0 0
  %2524 = vmatprep.subr.bf16.mxu0 0
  %2525 = vmatpush2.bf16.msra.mxu0 0
  %2526 = vmatprep.mubr.bf16.mxu0 0
  %2527 = vmatmul.mubr.bf16.gmra.mxu0 %v2452
  %v2528 = vpop.f32.mrf.mxu0
  %v2529 = vadd.f32 0.0, %v2528
  %v2530 = vpop.f32.mrf.mxu0
  %v2531 = vadd.f32 0.0, %v2530
  %v2532 = vpop.f32.mrf.mxu0
  %v2533 = vpop.f32.mrf.mxu0
  %2534 = vdwg.mxu0
  %v2535 = vadd.f32 %v2448, %v2488
  %v2536 = vadd.f32 %v2449, %v2490
  %v2537 = vadd.f32 %v2450, %v2529
  %v2538 = vadd.f32 %v2451, %v2531
  %v2539 = vxor.u32 %v2535, 2147483648
  %v2540 = vxor.u32 %v2536, 2147483648
  %v2541 = vxor.u32 %v2537, 2147483648
  %v2542 = vmul.f32 %v2539, 1.442695
  %v2543 = vpow.pop %v2542
  %v2544 = vmul.f32 %v2540, 1.442695
  %v2545 = vpow.pop %v2544
  %v2546 = vmul.f32 %v2541, 1.442695
  %v2547 = vpow.pop %v2546
  %v2548 = vadd.f32 %v2543, 1.0
  %v2549 = vadd.f32 %v2545, 1.0
  %v2550 = vadd.f32 %v2547, 1.0
  %v2551 = vrcp.pop %v2548
  %v2552 = vmul.f32 1.0, %v2551
  %v2553 = vrcp.pop %v2549
  %v2554 = vmul.f32 1.0, %v2553
  %v2555 = vrcp.pop %v2550
  %v2556 = vmul.f32 1.0, %v2555
  %v2557 = vtanh.pop %v2538
  %v2558 = vmul.f32 %v2554, %v2445
  %v2559 = vmul.f32 %v2552, %v2557
  %v2560 = vadd.f32 %v2558, %v2559
  %v2561 = vtanh.pop %v2560
  %v2562 = vmul.f32 %v2556, %v2561
  %v2563 = vld [vmem:[%s1013] sm:$0xff]
  %v2564 = vld [vmem:[%s1013 + $0x8] sm:$0xff]
  %v2565 = vld [vmem:[%s1013 + $0x10] sm:$0xff]
  %v2566 = vld [vmem:[%s1013 + $0x18] sm:$0xff]
  %v2567 = vpack.c.bf16 %v2562, %v2562
  %2568 = vmatprep.subr.bf16.mxu0 %v2188
  %2569 = vmatpush1.bf16.msra.mxu0 %v2187
  %2570 = vmatprep.subr.bf16.mxu0 %v2184
  %2571 = vmatpush1.bf16.msra.mxu0 %v2183
  %2572 = vmatprep.subr.bf16.mxu0 %v2180
  %2573 = vmatpush1.bf16.msra.mxu0 %v2179
  %2574 = vmatprep.subr.bf16.mxu0 %v2176
  %2575 = vmatpush1.bf16.msra.mxu0 %v2175
  %2576 = vmatprep.subr.bf16.mxu0 %v2172
  %2577 = vmatpush1.bf16.msra.mxu0 %v2171
  %2578 = vmatprep.subr.bf16.mxu0 %v2168
  %2579 = vmatpush1.bf16.msra.mxu0 %v2167
  %2580 = vmatprep.subr.bf16.mxu0 %v2164
  %2581 = vmatpush1.bf16.msra.mxu0 %v2163
  %2582 = vmatprep.subr.bf16.mxu0 %v2160
  %2583 = vmatpush1.bf16.msra.mxu0 %v2159
  %2584 = vmatprep.subr.bf16.mxu0 0
  %2585 = vmatpush2.bf16.msra.mxu0 0
  %2586 = vmatprep.subr.bf16.mxu0 0
  %2587 = vmatpush2.bf16.msra.mxu0 0
  %2588 = vmatprep.subr.bf16.mxu0 0
  %2589 = vmatpush2.bf16.msra.mxu0 0
  %2590 = vmatprep.subr.bf16.mxu0 0
  %2591 = vmatpush2.bf16.msra.mxu0 0
  %2592 = vmatprep.subr.bf16.mxu0 0
  %2593 = vmatpush2.bf16.msra.mxu0 0
  %2594 = vmatprep.subr.bf16.mxu0 0
  %2595 = vmatpush2.bf16.msra.mxu0 0
  %2596 = vmatprep.subr.bf16.mxu0 0
  %2597 = vmatpush2.bf16.msra.mxu0 0
  %2598 = vmatprep.subr.bf16.mxu0 0
  %2599 = vmatpush2.bf16.msra.mxu0 0
  %2600 = vmatprep.mubr.bf16.mxu0 0
  %2601 = vmatmul.mubr.bf16.gmra.mxu0 %v2567
  %v2602 = vpop.f32.mrf.mxu0
  %v2603 = vadd.f32 0.0, %v2602
  %v2604 = vpop.f32.mrf.mxu0
  %v2605 = vadd.f32 0.0, %v2604
  %v2606 = vpop.f32.mrf.mxu0
  %v2607 = vpop.f32.mrf.mxu0
  %2608 = vdwg.mxu0
  %2609 = vmatprep.subr.bf16.mxu0 %v2190
  %2610 = vmatpush1.bf16.msra.mxu0 %v2189
  %2611 = vmatprep.subr.bf16.mxu0 %v2186
  %2612 = vmatpush1.bf16.msra.mxu0 %v2185
  %2613 = vmatprep.subr.bf16.mxu0 %v2182
  %2614 = vmatpush1.bf16.msra.mxu0 %v2181
  %2615 = vmatprep.subr.bf16.mxu0 %v2178
  %2616 = vmatpush1.bf16.msra.mxu0 %v2177
  %2617 = vmatprep.subr.bf16.mxu0 %v2174
  %2618 = vmatpush1.bf16.msra.mxu0 %v2173
  %2619 = vmatprep.subr.bf16.mxu0 %v2170
  %2620 = vmatpush1.bf16.msra.mxu0 %v2169
  %2621 = vmatprep.subr.bf16.mxu0 %v2166
  %2622 = vmatpush1.bf16.msra.mxu0 %v2165
  %2623 = vmatprep.subr.bf16.mxu0 %v2162
  %2624 = vmatpush1.bf16.msra.mxu0 %v2161
  %2625 = vmatprep.subr.bf16.mxu0 0
  %2626 = vmatpush2.bf16.msra.mxu0 0
  %2627 = vmatprep.subr.bf16.mxu0 0
  %2628 = vmatpush2.bf16.msra.mxu0 0
  %2629 = vmatprep.subr.bf16.mxu0 0
  %2630 = vmatpush2.bf16.msra.mxu0 0
  %2631 = vmatprep.subr.bf16.mxu0 0
  %2632 = vmatpush2.bf16.msra.mxu0 0
  %2633 = vmatprep.subr.bf16.mxu0 0
  %2634 = vmatpush2.bf16.msra.mxu0 0
  %2635 = vmatprep.subr.bf16.mxu0 0
  %2636 = vmatpush2.bf16.msra.mxu0 0
  %2637 = vmatprep.subr.bf16.mxu0 0
  %2638 = vmatpush2.bf16.msra.mxu0 0
  %2639 = vmatprep.subr.bf16.mxu0 0
  %2640 = vmatpush2.bf16.msra.mxu0 0
  %2641 = vmatprep.mubr.bf16.mxu0 0
  %2642 = vmatmul.mubr.bf16.gmra.mxu0 %v2567
  %v2643 = vpop.f32.mrf.mxu0
  %v2644 = vadd.f32 0.0, %v2643
  %v2645 = vpop.f32.mrf.mxu0
  %v2646 = vadd.f32 0.0, %v2645
  %v2647 = vpop.f32.mrf.mxu0
  %v2648 = vpop.f32.mrf.mxu0
  %2649 = vdwg.mxu0
  %v2650 = vadd.f32 %v2563, %v2603
  %v2651 = vadd.f32 %v2564, %v2605
  %v2652 = vadd.f32 %v2565, %v2644
  %v2653 = vadd.f32 %v2566, %v2646
  %v2654 = vxor.u32 %v2650, 2147483648
  %v2655 = vxor.u32 %v2651, 2147483648
  %v2656 = vxor.u32 %v2652, 2147483648
  %v2657 = vmul.f32 %v2654, 1.442695
  %v2658 = vpow.pop %v2657
  %v2659 = vmul.f32 %v2655, 1.442695
  %v2660 = vpow.pop %v2659
  %v2661 = vmul.f32 %v2656, 1.442695
  %v2662 = vpow.pop %v2661
  %v2663 = vadd.f32 %v2658, 1.0
  %v2664 = vadd.f32 %v2660, 1.0
  %v2665 = vadd.f32 %v2662, 1.0
  %v2666 = vrcp.pop %v2663
  %v2667 = vmul.f32 1.0, %v2666
  %v2668 = vrcp.pop %v2664
  %v2669 = vmul.f32 1.0, %v2668
  %v2670 = vrcp.pop %v2665
  %v2671 = vmul.f32 1.0, %v2670
  %v2672 = vtanh.pop %v2653
  %v2673 = vmul.f32 %v2669, %v2560
  %v2674 = vmul.f32 %v2667, %v2672
  %v2675 = vadd.f32 %v2673, %v2674
  %v2676 = vtanh.pop %v2675
  %v2677 = vmul.f32 %v2671, %v2676
  %v2678 = vld [vmem:[%s1131] sm:$0xff]
  %v2679 = vld [vmem:[%s1131 + $0x8] sm:$0xff]
  %v2680 = vld [vmem:[%s1131 + $0x10] sm:$0xff]
  %v2681 = vld [vmem:[%s1131 + $0x18] sm:$0xff]
  %v2682 = vpack.c.bf16 %v2677, %v2677
  %2683 = vmatprep.subr.bf16.mxu0 %v2188
  %2684 = vmatpush1.bf16.msra.mxu0 %v2187
  %2685 = vmatprep.subr.bf16.mxu0 %v2184
  %2686 = vmatpush1.bf16.msra.mxu0 %v2183
  %2687 = vmatprep.subr.bf16.mxu0 %v2180
  %2688 = vmatpush1.bf16.msra.mxu0 %v2179
  %2689 = vmatprep.subr.bf16.mxu0 %v2176
  %2690 = vmatpush1.bf16.msra.mxu0 %v2175
  %2691 = vmatprep.subr.bf16.mxu0 %v2172
  %2692 = vmatpush1.bf16.msra.mxu0 %v2171
  %2693 = vmatprep.subr.bf16.mxu0 %v2168
  %2694 = vmatpush1.bf16.msra.mxu0 %v2167
  %2695 = vmatprep.subr.bf16.mxu0 %v2164
  %2696 = vmatpush1.bf16.msra.mxu0 %v2163
  %2697 = vmatprep.subr.bf16.mxu0 %v2160
  %2698 = vmatpush1.bf16.msra.mxu0 %v2159
  %2699 = vmatprep.subr.bf16.mxu0 0
  %2700 = vmatpush2.bf16.msra.mxu0 0
  %2701 = vmatprep.subr.bf16.mxu0 0
  %2702 = vmatpush2.bf16.msra.mxu0 0
  %2703 = vmatprep.subr.bf16.mxu0 0
  %2704 = vmatpush2.bf16.msra.mxu0 0
  %2705 = vmatprep.subr.bf16.mxu0 0
  %2706 = vmatpush2.bf16.msra.mxu0 0
  %2707 = vmatprep.subr.bf16.mxu0 0
  %2708 = vmatpush2.bf16.msra.mxu0 0
  %2709 = vmatprep.subr.bf16.mxu0 0
  %2710 = vmatpush2.bf16.msra.mxu0 0
  %2711 = vmatprep.subr.bf16.mxu0 0
  %2712 = vmatpush2.bf16.msra.mxu0 0
  %2713 = vmatprep.subr.bf16.mxu0 0
  %2714 = vmatpush2.bf16.msra.mxu0 0
  %2715 = vmatprep.mubr.bf16.mxu0 0
  %2716 = vmatmul.mubr.bf16.gmra.mxu0 %v2682
  %v2717 = vpop.f32.mrf.mxu0
  %v2718 = vadd.f32 0.0, %v2717
  %v2719 = vpop.f32.mrf.mxu0
  %v2720 = vadd.f32 0.0, %v2719
  %v2721 = vpop.f32.mrf.mxu0
  %v2722 = vpop.f32.mrf.mxu0
  %2723 = vdwg.mxu0
  %2724 = vmatprep.subr.bf16.mxu0 %v2190
  %2725 = vmatpush1.bf16.msra.mxu0 %v2189
  %2726 = vmatprep.subr.bf16.mxu0 %v2186
  %2727 = vmatpush1.bf16.msra.mxu0 %v2185
  %2728 = vmatprep.subr.bf16.mxu0 %v2182
  %2729 = vmatpush1.bf16.msra.mxu0 %v2181
  %2730 = vmatprep.subr.bf16.mxu0 %v2178
  %2731 = vmatpush1.bf16.msra.mxu0 %v2177
  %2732 = vmatprep.subr.bf16.mxu0 %v2174
  %2733 = vmatpush1.bf16.msra.mxu0 %v2173
  %2734 = vmatprep.subr.bf16.mxu0 %v2170
  %2735 = vmatpush1.bf16.msra.mxu0 %v2169
  %2736 = vmatprep.subr.bf16.mxu0 %v2166
  %2737 = vmatpush1.bf16.msra.mxu0 %v2165
  %2738 = vmatprep.subr.bf16.mxu0 %v2162
  %2739 = vmatpush1.bf16.msra.mxu0 %v2161
  %2740 = vmatprep.subr.bf16.mxu0 0
  %2741 = vmatpush2.bf16.msra.mxu0 0
  %2742 = vmatprep.subr.bf16.mxu0 0
  %2743 = vmatpush2.bf16.msra.mxu0 0
  %2744 = vmatprep.subr.bf16.mxu0 0
  %2745 = vmatpush2.bf16.msra.mxu0 0
  %2746 = vmatprep.subr.bf16.mxu0 0
  %2747 = vmatpush2.bf16.msra.mxu0 0
  %2748 = vmatprep.subr.bf16.mxu0 0
  %2749 = vmatpush2.bf16.msra.mxu0 0
  %2750 = vmatprep.subr.bf16.mxu0 0
  %2751 = vmatpush2.bf16.msra.mxu0 0
  %2752 = vmatprep.subr.bf16.mxu0 0
  %2753 = vmatpush2.bf16.msra.mxu0 0
  %2754 = vmatprep.subr.bf16.mxu0 0
  %2755 = vmatpush2.bf16.msra.mxu0 0
  %2756 = vmatprep.mubr.bf16.mxu0 0
  %2757 = vmatmul.mubr.bf16.gmra.mxu0 %v2682
  %v2758 = vpop.f32.mrf.mxu0
  %v2759 = vadd.f32 0.0, %v2758
  %v2760 = vpop.f32.mrf.mxu0
  %v2761 = vadd.f32 0.0, %v2760
  %v2762 = vpop.f32.mrf.mxu0
  %v2763 = vpop.f32.mrf.mxu0
  %2764 = vdwg.mxu0
  %v2765 = vadd.f32 %v2678, %v2718
  %v2766 = vadd.f32 %v2679, %v2720
  %v2767 = vadd.f32 %v2680, %v2759
  %v2768 = vadd.f32 %v2681, %v2761
  %v2769 = vxor.u32 %v2765, 2147483648
  %v2770 = vxor.u32 %v2766, 2147483648
  %v2771 = vxor.u32 %v2767, 2147483648
  %v2772 = vmul.f32 %v2769, 1.442695
  %v2773 = vpow.pop %v2772
  %v2774 = vmul.f32 %v2770, 1.442695
  %v2775 = vpow.pop %v2774
  %v2776 = vmul.f32 %v2771, 1.442695
  %v2777 = vpow.pop %v2776
  %v2778 = vadd.f32 %v2773, 1.0
  %v2779 = vadd.f32 %v2775, 1.0
  %v2780 = vadd.f32 %v2777, 1.0
  %v2781 = vrcp.pop %v2778
  %v2782 = vmul.f32 1.0, %v2781
  %v2783 = vrcp.pop %v2779
  %v2784 = vmul.f32 1.0, %v2783
  %v2785 = vrcp.pop %v2780
  %v2786 = vmul.f32 1.0, %v2785
  %v2787 = vtanh.pop %v2768
  %v2788 = vmul.f32 %v2784, %v2675
  %v2789 = vmul.f32 %v2782, %v2787
  %v2790 = vadd.f32 %v2788, %v2789
  %v2791 = vtanh.pop %v2790
  %v2792 = vmul.f32 %v2786, %v2791
  %v2793 = vld [vmem:[%s1249] sm:$0xff]
  %v2794 = vld [vmem:[%s1249 + $0x8] sm:$0xff]
  %v2795 = vld [vmem:[%s1249 + $0x10] sm:$0xff]
  %v2796 = vld [vmem:[%s1249 + $0x18] sm:$0xff]
  %v2797 = vpack.c.bf16 %v2792, %v2792
  %2798 = vmatprep.subr.bf16.mxu0 %v2188
  %2799 = vmatpush1.bf16.msra.mxu0 %v2187
  %2800 = vmatprep.subr.bf16.mxu0 %v2184
  %2801 = vmatpush1.bf16.msra.mxu0 %v2183
  %2802 = vmatprep.subr.bf16.mxu0 %v2180
  %2803 = vmatpush1.bf16.msra.mxu0 %v2179
  %2804 = vmatprep.subr.bf16.mxu0 %v2176
  %2805 = vmatpush1.bf16.msra.mxu0 %v2175
  %2806 = vmatprep.subr.bf16.mxu0 %v2172
  %2807 = vmatpush1.bf16.msra.mxu0 %v2171
  %2808 = vmatprep.subr.bf16.mxu0 %v2168
  %2809 = vmatpush1.bf16.msra.mxu0 %v2167
  %2810 = vmatprep.subr.bf16.mxu0 %v2164
  %2811 = vmatpush1.bf16.msra.mxu0 %v2163
  %2812 = vmatprep.subr.bf16.mxu0 %v2160
  %2813 = vmatpush1.bf16.msra.mxu0 %v2159
  %2814 = vmatprep.subr.bf16.mxu0 0
  %2815 = vmatpush2.bf16.msra.mxu0 0
  %2816 = vmatprep.subr.bf16.mxu0 0
  %2817 = vmatpush2.bf16.msra.mxu0 0
  %2818 = vmatprep.subr.bf16.mxu0 0
  %2819 = vmatpush2.bf16.msra.mxu0 0
  %2820 = vmatprep.subr.bf16.mxu0 0
  %2821 = vmatpush2.bf16.msra.mxu0 0
  %2822 = vmatprep.subr.bf16.mxu0 0
  %2823 = vmatpush2.bf16.msra.mxu0 0
  %2824 = vmatprep.subr.bf16.mxu0 0
  %2825 = vmatpush2.bf16.msra.mxu0 0
  %2826 = vmatprep.subr.bf16.mxu0 0
  %2827 = vmatpush2.bf16.msra.mxu0 0
  %2828 = vmatprep.subr.bf16.mxu0 0
  %2829 = vmatpush2.bf16.msra.mxu0 0
  %2830 = vmatprep.mubr.bf16.mxu0 0
  %2831 = vmatmul.mubr.bf16.gmra.mxu0 %v2797
  %v2832 = vpop.f32.mrf.mxu0
  %v2833 = vadd.f32 0.0, %v2832
  %v2834 = vpop.f32.mrf.mxu0
  %v2835 = vadd.f32 0.0, %v2834
  %v2836 = vpop.f32.mrf.mxu0
  %v2837 = vpop.f32.mrf.mxu0
  %2838 = vdwg.mxu0
  %2839 = vmatprep.subr.bf16.mxu0 %v2190
  %2840 = vmatpush1.bf16.msra.mxu0 %v2189
  %2841 = vmatprep.subr.bf16.mxu0 %v2186
  %2842 = vmatpush1.bf16.msra.mxu0 %v2185
  %2843 = vmatprep.subr.bf16.mxu0 %v2182
  %2844 = vmatpush1.bf16.msra.mxu0 %v2181
  %2845 = vmatprep.subr.bf16.mxu0 %v2178
  %2846 = vmatpush1.bf16.msra.mxu0 %v2177
  %2847 = vmatprep.subr.bf16.mxu0 %v2174
  %2848 = vmatpush1.bf16.msra.mxu0 %v2173
  %2849 = vmatprep.subr.bf16.mxu0 %v2170
  %2850 = vmatpush1.bf16.msra.mxu0 %v2169
  %2851 = vmatprep.subr.bf16.mxu0 %v2166
  %2852 = vmatpush1.bf16.msra.mxu0 %v2165
  %2853 = vmatprep.subr.bf16.mxu0 %v2162
  %2854 = vmatpush1.bf16.msra.mxu0 %v2161
  %2855 = vmatprep.subr.bf16.mxu0 0
  %2856 = vmatpush2.bf16.msra.mxu0 0
  %2857 = vmatprep.subr.bf16.mxu0 0
  %2858 = vmatpush2.bf16.msra.mxu0 0
  %2859 = vmatprep.subr.bf16.mxu0 0
  %2860 = vmatpush2.bf16.msra.mxu0 0
  %2861 = vmatprep.subr.bf16.mxu0 0
  %2862 = vmatpush2.bf16.msra.mxu0 0
  %2863 = vmatprep.subr.bf16.mxu0 0
  %2864 = vmatpush2.bf16.msra.mxu0 0
  %2865 = vmatprep.subr.bf16.mxu0 0
  %2866 = vmatpush2.bf16.msra.mxu0 0
  %2867 = vmatprep.subr.bf16.mxu0 0
  %2868 = vmatpush2.bf16.msra.mxu0 0
  %2869 = vmatprep.subr.bf16.mxu0 0
  %2870 = vmatpush2.bf16.msra.mxu0 0
  %2871 = vmatprep.mubr.bf16.mxu0 0
  %2872 = vmatmul.mubr.bf16.gmra.mxu0 %v2797
  %v2873 = vpop.f32.mrf.mxu0
  %v2874 = vadd.f32 0.0, %v2873
  %v2875 = vpop.f32.mrf.mxu0
  %v2876 = vadd.f32 0.0, %v2875
  %v2877 = vpop.f32.mrf.mxu0
  %v2878 = vpop.f32.mrf.mxu0
  %2879 = vdwg.mxu0
  %v2880 = vadd.f32 %v2793, %v2833
  %v2881 = vadd.f32 %v2794, %v2835
  %v2882 = vadd.f32 %v2795, %v2874
  %v2883 = vadd.f32 %v2796, %v2876
  %v2884 = vxor.u32 %v2880, 2147483648
  %v2885 = vxor.u32 %v2881, 2147483648
  %v2886 = vxor.u32 %v2882, 2147483648
  %v2887 = vmul.f32 %v2884, 1.442695
  %v2888 = vpow.pop %v2887
  %v2889 = vmul.f32 %v2885, 1.442695
  %v2890 = vpow.pop %v2889
  %v2891 = vmul.f32 %v2886, 1.442695
  %v2892 = vpow.pop %v2891
  %v2893 = vadd.f32 %v2888, 1.0
  %v2894 = vadd.f32 %v2890, 1.0
  %v2895 = vadd.f32 %v2892, 1.0
  %v2896 = vrcp.pop %v2893
  %v2897 = vmul.f32 1.0, %v2896
  %v2898 = vrcp.pop %v2894
  %v2899 = vmul.f32 1.0, %v2898
  %v2900 = vrcp.pop %v2895
  %v2901 = vmul.f32 1.0, %v2900
  %v2902 = vtanh.pop %v2883
  %v2903 = vmul.f32 %v2899, %v2790
  %v2904 = vmul.f32 %v2897, %v2902
  %v2905 = vadd.f32 %v2903, %v2904
  %v2906 = vtanh.pop %v2905
  %v2907 = vmul.f32 %v2901, %v2906
  %v2908 = vld [vmem:[%s1367] sm:$0xff]
  %v2909 = vld [vmem:[%s1367 + $0x8] sm:$0xff]
  %v2910 = vld [vmem:[%s1367 + $0x10] sm:$0xff]
  %v2911 = vld [vmem:[%s1367 + $0x18] sm:$0xff]
  %v2912 = vpack.c.bf16 %v2907, %v2907
  %2913 = vmatprep.subr.bf16.mxu0 %v2188
  %2914 = vmatpush1.bf16.msra.mxu0 %v2187
  %2915 = vmatprep.subr.bf16.mxu0 %v2184
  %2916 = vmatpush1.bf16.msra.mxu0 %v2183
  %2917 = vmatprep.subr.bf16.mxu0 %v2180
  %2918 = vmatpush1.bf16.msra.mxu0 %v2179
  %2919 = vmatprep.subr.bf16.mxu0 %v2176
  %2920 = vmatpush1.bf16.msra.mxu0 %v2175
  %2921 = vmatprep.subr.bf16.mxu0 %v2172
  %2922 = vmatpush1.bf16.msra.mxu0 %v2171
  %2923 = vmatprep.subr.bf16.mxu0 %v2168
  %2924 = vmatpush1.bf16.msra.mxu0 %v2167
  %2925 = vmatprep.subr.bf16.mxu0 %v2164
  %2926 = vmatpush1.bf16.msra.mxu0 %v2163
  %2927 = vmatprep.subr.bf16.mxu0 %v2160
  %2928 = vmatpush1.bf16.msra.mxu0 %v2159
  %2929 = vmatprep.subr.bf16.mxu0 0
  %2930 = vmatpush2.bf16.msra.mxu0 0
  %2931 = vmatprep.subr.bf16.mxu0 0
  %2932 = vmatpush2.bf16.msra.mxu0 0
  %2933 = vmatprep.subr.bf16.mxu0 0
  %2934 = vmatpush2.bf16.msra.mxu0 0
  %2935 = vmatprep.subr.bf16.mxu0 0
  %2936 = vmatpush2.bf16.msra.mxu0 0
  %2937 = vmatprep.subr.bf16.mxu0 0
  %2938 = vmatpush2.bf16.msra.mxu0 0
  %2939 = vmatprep.subr.bf16.mxu0 0
  %2940 = vmatpush2.bf16.msra.mxu0 0
  %2941 = vmatprep.subr.bf16.mxu0 0
  %2942 = vmatpush2.bf16.msra.mxu0 0
  %2943 = vmatprep.subr.bf16.mxu0 0
  %2944 = vmatpush2.bf16.msra.mxu0 0
  %2945 = vmatprep.mubr.bf16.mxu0 0
  %2946 = vmatmul.mubr.bf16.gmra.mxu0 %v2912
  %v2947 = vpop.f32.mrf.mxu0
  %v2948 = vadd.f32 0.0, %v2947
  %v2949 = vpop.f32.mrf.mxu0
  %v2950 = vadd.f32 0.0, %v2949
  %v2951 = vpop.f32.mrf.mxu0
  %v2952 = vpop.f32.mrf.mxu0
  %2953 = vdwg.mxu0
  %2954 = vmatprep.subr.bf16.mxu0 %v2190
  %2955 = vmatpush1.bf16.msra.mxu0 %v2189
  %2956 = vmatprep.subr.bf16.mxu0 %v2186
  %2957 = vmatpush1.bf16.msra.mxu0 %v2185
  %2958 = vmatprep.subr.bf16.mxu0 %v2182
  %2959 = vmatpush1.bf16.msra.mxu0 %v2181
  %2960 = vmatprep.subr.bf16.mxu0 %v2178
  %2961 = vmatpush1.bf16.msra.mxu0 %v2177
  %2962 = vmatprep.subr.bf16.mxu0 %v2174
  %2963 = vmatpush1.bf16.msra.mxu0 %v2173
  %2964 = vmatprep.subr.bf16.mxu0 %v2170
  %2965 = vmatpush1.bf16.msra.mxu0 %v2169
  %2966 = vmatprep.subr.bf16.mxu0 %v2166
  %2967 = vmatpush1.bf16.msra.mxu0 %v2165
  %2968 = vmatprep.subr.bf16.mxu0 %v2162
  %2969 = vmatpush1.bf16.msra.mxu0 %v2161
  %2970 = vmatprep.subr.bf16.mxu0 0
  %2971 = vmatpush2.bf16.msra.mxu0 0
  %2972 = vmatprep.subr.bf16.mxu0 0
  %2973 = vmatpush2.bf16.msra.mxu0 0
  %2974 = vmatprep.subr.bf16.mxu0 0
  %2975 = vmatpush2.bf16.msra.mxu0 0
  %2976 = vmatprep.subr.bf16.mxu0 0
  %2977 = vmatpush2.bf16.msra.mxu0 0
  %2978 = vmatprep.subr.bf16.mxu0 0
  %2979 = vmatpush2.bf16.msra.mxu0 0
  %2980 = vmatprep.subr.bf16.mxu0 0
  %2981 = vmatpush2.bf16.msra.mxu0 0
  %2982 = vmatprep.subr.bf16.mxu0 0
  %2983 = vmatpush2.bf16.msra.mxu0 0
  %2984 = vmatprep.subr.bf16.mxu0 0
  %2985 = vmatpush2.bf16.msra.mxu0 0
  %2986 = vmatprep.mubr.bf16.mxu0 0
  %2987 = vmatmul.mubr.bf16.gmra.mxu0 %v2912
  %v2988 = vpop.f32.mrf.mxu0
  %v2989 = vadd.f32 0.0, %v2988
  %v2990 = vpop.f32.mrf.mxu0
  %v2991 = vadd.f32 0.0, %v2990
  %v2992 = vpop.f32.mrf.mxu0
  %v2993 = vpop.f32.mrf.mxu0
  %2994 = vdwg.mxu0
  %v2995 = vadd.f32 %v2908, %v2948
  %v2996 = vadd.f32 %v2909, %v2950
  %v2997 = vadd.f32 %v2910, %v2989
  %v2998 = vadd.f32 %v2911, %v2991
  %v2999 = vxor.u32 %v2995, 2147483648
  %v3000 = vxor.u32 %v2996, 2147483648
  %v3001 = vxor.u32 %v2997, 2147483648
  %v3002 = vmul.f32 %v2999, 1.442695
  %v3003 = vpow.pop %v3002
  %v3004 = vmul.f32 %v3000, 1.442695
  %v3005 = vpow.pop %v3004
  %v3006 = vmul.f32 %v3001, 1.442695
  %v3007 = vpow.pop %v3006
  %v3008 = vadd.f32 %v3003, 1.0
  %v3009 = vadd.f32 %v3005, 1.0
  %v3010 = vadd.f32 %v3007, 1.0
  %v3011 = vrcp.pop %v3008
  %v3012 = vmul.f32 1.0, %v3011
  %v3013 = vrcp.pop %v3009
  %v3014 = vmul.f32 1.0, %v3013
  %v3015 = vrcp.pop %v3010
  %v3016 = vmul.f32 1.0, %v3015
  %v3017 = vtanh.pop %v2998
  %v3018 = vmul.f32 %v3014, %v2905
  %v3019 = vmul.f32 %v3012, %v3017
  %v3020 = vadd.f32 %v3018, %v3019
  %v3021 = vtanh.pop %v3020
  %v3022 = vmul.f32 %v3016, %v3021
  %v3023 = vld [vmem:[%s1485] sm:$0xff]
  %v3024 = vld [vmem:[%s1485 + $0x8] sm:$0xff]
  %v3025 = vld [vmem:[%s1485 + $0x10] sm:$0xff]
  %v3026 = vld [vmem:[%s1485 + $0x18] sm:$0xff]
  %v3027 = vpack.c.bf16 %v3022, %v3022
  %3028 = vmatprep.subr.bf16.mxu0 %v2188
  %3029 = vmatpush1.bf16.msra.mxu0 %v2187
  %3030 = vmatprep.subr.bf16.mxu0 %v2184
  %3031 = vmatpush1.bf16.msra.mxu0 %v2183
  %3032 = vmatprep.subr.bf16.mxu0 %v2180
  %3033 = vmatpush1.bf16.msra.mxu0 %v2179
  %3034 = vmatprep.subr.bf16.mxu0 %v2176
  %3035 = vmatpush1.bf16.msra.mxu0 %v2175
  %3036 = vmatprep.subr.bf16.mxu0 %v2172
  %3037 = vmatpush1.bf16.msra.mxu0 %v2171
  %3038 = vmatprep.subr.bf16.mxu0 %v2168
  %3039 = vmatpush1.bf16.msra.mxu0 %v2167
  %3040 = vmatprep.subr.bf16.mxu0 %v2164
  %3041 = vmatpush1.bf16.msra.mxu0 %v2163
  %3042 = vmatprep.subr.bf16.mxu0 %v2160
  %3043 = vmatpush1.bf16.msra.mxu0 %v2159
  %3044 = vmatprep.subr.bf16.mxu0 0
  %3045 = vmatpush2.bf16.msra.mxu0 0
  %3046 = vmatprep.subr.bf16.mxu0 0
  %3047 = vmatpush2.bf16.msra.mxu0 0
  %3048 = vmatprep.subr.bf16.mxu0 0
  %3049 = vmatpush2.bf16.msra.mxu0 0
  %3050 = vmatprep.subr.bf16.mxu0 0
  %3051 = vmatpush2.bf16.msra.mxu0 0
  %3052 = vmatprep.subr.bf16.mxu0 0
  %3053 = vmatpush2.bf16.msra.mxu0 0
  %3054 = vmatprep.subr.bf16.mxu0 0
  %3055 = vmatpush2.bf16.msra.mxu0 0
  %3056 = vmatprep.subr.bf16.mxu0 0
  %3057 = vmatpush2.bf16.msra.mxu0 0
  %3058 = vmatprep.subr.bf16.mxu0 0
  %3059 = vmatpush2.bf16.msra.mxu0 0
  %3060 = vmatprep.mubr.bf16.mxu0 0
  %3061 = vmatmul.mubr.bf16.gmra.mxu0 %v3027
  %v3062 = vpop.f32.mrf.mxu0
  %v3063 = vadd.f32 0.0, %v3062
  %v3064 = vpop.f32.mrf.mxu0
  %v3065 = vadd.f32 0.0, %v3064
  %v3066 = vpop.f32.mrf.mxu0
  %v3067 = vpop.f32.mrf.mxu0
  %3068 = vdwg.mxu0
  %3069 = vmatprep.subr.bf16.mxu0 %v2190
  %3070 = vmatpush1.bf16.msra.mxu0 %v2189
  %3071 = vmatprep.subr.bf16.mxu0 %v2186
  %3072 = vmatpush1.bf16.msra.mxu0 %v2185
  %3073 = vmatprep.subr.bf16.mxu0 %v2182
  %3074 = vmatpush1.bf16.msra.mxu0 %v2181
  %3075 = vmatprep.subr.bf16.mxu0 %v2178
  %3076 = vmatpush1.bf16.msra.mxu0 %v2177
  %3077 = vmatprep.subr.bf16.mxu0 %v2174
  %3078 = vmatpush1.bf16.msra.mxu0 %v2173
  %3079 = vmatprep.subr.bf16.mxu0 %v2170
  %3080 = vmatpush1.bf16.msra.mxu0 %v2169
  %3081 = vmatprep.subr.bf16.mxu0 %v2166
  %3082 = vmatpush1.bf16.msra.mxu0 %v2165
  %3083 = vmatprep.subr.bf16.mxu0 %v2162
  %3084 = vmatpush1.bf16.msra.mxu0 %v2161
  %3085 = vmatprep.subr.bf16.mxu0 0
  %3086 = vmatpush2.bf16.msra.mxu0 0
  %3087 = vmatprep.subr.bf16.mxu0 0
  %3088 = vmatpush2.bf16.msra.mxu0 0
  %3089 = vmatprep.subr.bf16.mxu0 0
  %3090 = vmatpush2.bf16.msra.mxu0 0
  %3091 = vmatprep.subr.bf16.mxu0 0
  %3092 = vmatpush2.bf16.msra.mxu0 0
  %3093 = vmatprep.subr.bf16.mxu0 0
  %3094 = vmatpush2.bf16.msra.mxu0 0
  %3095 = vmatprep.subr.bf16.mxu0 0
  %3096 = vmatpush2.bf16.msra.mxu0 0
  %3097 = vmatprep.subr.bf16.mxu0 0
  %3098 = vmatpush2.bf16.msra.mxu0 0
  %3099 = vmatprep.subr.bf16.mxu0 0
  %3100 = vmatpush2.bf16.msra.mxu0 0
  %3101 = vmatprep.mubr.bf16.mxu0 0
  %3102 = vmatmul.mubr.bf16.gmra.mxu0 %v3027
  %v3103 = vpop.f32.mrf.mxu0
  %v3104 = vadd.f32 0.0, %v3103
  %v3105 = vpop.f32.mrf.mxu0
  %v3106 = vadd.f32 0.0, %v3105
  %v3107 = vpop.f32.mrf.mxu0
  %v3108 = vpop.f32.mrf.mxu0
  %3109 = vdwg.mxu0
  %v3110 = vadd.f32 %v3023, %v3063
  %v3111 = vadd.f32 %v3024, %v3065
  %v3112 = vadd.f32 %v3025, %v3104
  %v3113 = vadd.f32 %v3026, %v3106
  %v3114 = vxor.u32 %v3110, 2147483648
  %v3115 = vxor.u32 %v3111, 2147483648
  %v3116 = vxor.u32 %v3112, 2147483648
  %v3117 = vmul.f32 %v3114, 1.442695
  %v3118 = vpow.pop %v3117
  %v3119 = vmul.f32 %v3115, 1.442695
  %v3120 = vpow.pop %v3119
  %v3121 = vmul.f32 %v3116, 1.442695
  %v3122 = vpow.pop %v3121
  %v3123 = vadd.f32 %v3118, 1.0
  %v3124 = vadd.f32 %v3120, 1.0
  %v3125 = vadd.f32 %v3122, 1.0
  %v3126 = vrcp.pop %v3123
  %v3127 = vmul.f32 1.0, %v3126
  %v3128 = vrcp.pop %v3124
  %v3129 = vmul.f32 1.0, %v3128
  %v3130 = vrcp.pop %v3125
  %v3131 = vmul.f32 1.0, %v3130
  %v3132 = vtanh.pop %v3113
  %v3133 = vmul.f32 %v3129, %v3020
  %v3134 = vmul.f32 %v3127, %v3132
  %v3135 = vadd.f32 %v3133, %v3134
  %v3136 = vtanh.pop %v3135
  %v3137 = vmul.f32 %v3131, %v3136
  %v3138 = vpack.c.bf16 %v3137, %v3137
  %v3139 = vld [vmem:[%s8] sm:$0xf]
  %v3140 = vld [vmem:[%s8 + $0x4] sm:$0xf]
  %v3141 = vld [vmem:[%s8 + $0x8] sm:$0xf]
  %v3142 = vld [vmem:[%s8 + $0xc] sm:$0xf]
  %v3143 = vld [vmem:[%s8 + $0x10] sm:$0xf]
  %v3144 = vld [vmem:[%s8 + $0x14] sm:$0xf]
  %v3145 = vld [vmem:[%s8 + $0x18] sm:$0xf]
  %v3146 = vld [vmem:[%s8 + $0x1c] sm:$0xf]
  %v3147 = vld [vmem:[%s8 + $0x20] sm:$0xf]
  %v3148 = vld [vmem:[%s8 + $0x24] sm:$0xf]
  %v3149 = vld [vmem:[%s8 + $0x28] sm:$0xf]
  %v3150 = vld [vmem:[%s8 + $0x2c] sm:$0xf]
  %v3151 = vld [vmem:[%s8 + $0x30] sm:$0xf]
  %v3152 = vld [vmem:[%s8 + $0x34] sm:$0xf]
  %v3153 = vld [vmem:[%s8 + $0x38] sm:$0xf]
  %v3154 = vld [vmem:[%s8 + $0x3c] sm:$0xf]
  %v3155 = vld [vmem:[%s7] sm:$0xf]
  %v3156 = vld [vmem:[%s9] sm:$0xf]
  %v3157 = vld [vmem:[%s9 + $0x4] sm:$0xf]
  %v3158 = vld [vmem:[%s9 + $0x8] sm:$0xf]
  %v3159 = vld [vmem:[%s9 + $0xc] sm:$0xf]
  %v3160 = vld [vmem:[%s9 + $0x10] sm:$0xf]
  %v3161 = vld [vmem:[%s9 + $0x14] sm:$0xf]
  %v3162 = vld [vmem:[%s9 + $0x18] sm:$0xf]
  %v3163 = vld [vmem:[%s9 + $0x1c] sm:$0xf]
  %v3164 = vld [vmem:[%s9 + $0x20] sm:$0xf]
  %v3165 = vld [vmem:[%s9 + $0x24] sm:$0xf]
  %v3166 = vld [vmem:[%s9 + $0x28] sm:$0xf]
  %v3167 = vld [vmem:[%s9 + $0x2c] sm:$0xf]
  %v3168 = vld [vmem:[%s9 + $0x30] sm:$0xf]
  %v3169 = vld [vmem:[%s9 + $0x34] sm:$0xf]
  %v3170 = vld [vmem:[%s9 + $0x38] sm:$0xf]
  %v3171 = vld [vmem:[%s9 + $0x3c] sm:$0xf]
  %v3188 = vunpack.c.l.b16 %v3156
  %v3189 = vunpack.c.l.b16 %v3157
  %v3190 = vunpack.c.l.b16 %v3158
  %v3191 = vunpack.c.l.b16 %v3159
  %v3192 = vunpack.c.l.b16 %v3160
  %v3193 = vunpack.c.l.b16 %v3161
  %v3194 = vunpack.c.l.b16 %v3162
  %v3195 = vunpack.c.l.b16 %v3163
  %v3196 = vunpack.c.l.b16 %v3164
  %v3197 = vunpack.c.l.b16 %v3165
  %v3198 = vunpack.c.l.b16 %v3166
  %v3199 = vunpack.c.l.b16 %v3167
  %v3200 = vunpack.c.l.b16 %v3168
  %v3201 = vunpack.c.l.b16 %v3169
  %v3202 = vunpack.c.l.b16 %v3170
  %v3203 = vunpack.c.l.b16 %v3171
  %v3204 = vpack.c.b16 %v3189, %v3188
  %v3205 = vpack.c.b16 %v3191, %v3190
  %v3206 = vpack.c.b16 %v3193, %v3192
  %v3207 = vpack.c.b16 %v3195, %v3194
  %v3208 = vpack.c.b16 %v3197, %v3196
  %v3209 = vpack.c.b16 %v3199, %v3198
  %v3210 = vpack.c.b16 %v3201, %v3200
  %v3211 = vpack.c.b16 %v3203, %v3202
  %3220 = vmatprep.subr.bf16.mxu0 0
  %3221 = vmatpush1.bf16.msra.mxu0 %v3211
  %3222 = vmatprep.subr.bf16.mxu0 0
  %3223 = vmatpush1.bf16.msra.mxu0 %v3210
  %3224 = vmatprep.subr.bf16.mxu0 0
  %3225 = vmatpush1.bf16.msra.mxu0 %v3209
  %3226 = vmatprep.subr.bf16.mxu0 0
  %3227 = vmatpush1.bf16.msra.mxu0 %v3208
  %3228 = vmatprep.subr.bf16.mxu0 0
  %3229 = vmatpush1.bf16.msra.mxu0 %v3207
  %3230 = vmatprep.subr.bf16.mxu0 0
  %3231 = vmatpush1.bf16.msra.mxu0 %v3206
  %3232 = vmatprep.subr.bf16.mxu0 0
  %3233 = vmatpush1.bf16.msra.mxu0 %v3205
  %3234 = vmatprep.subr.bf16.mxu0 0
  %3235 = vmatpush1.bf16.msra.mxu0 %v3204
  %3236 = vmatprep.subr.bf16.mxu0 0
  %3237 = vmatpush2.bf16.msra.mxu0 0
  %3238 = vmatprep.subr.bf16.mxu0 0
  %3239 = vmatpush2.bf16.msra.mxu0 0
  %3240 = vmatprep.subr.bf16.mxu0 0
  %3241 = vmatpush2.bf16.msra.mxu0 0
  %3242 = vmatprep.subr.bf16.mxu0 0
  %3243 = vmatpush2.bf16.msra.mxu0 0
  %3244 = vmatprep.subr.bf16.mxu0 0
  %3245 = vmatpush2.bf16.msra.mxu0 0
  %3246 = vmatprep.subr.bf16.mxu0 0
  %3247 = vmatpush2.bf16.msra.mxu0 0
  %3248 = vmatprep.subr.bf16.mxu0 0
  %3249 = vmatpush2.bf16.msra.mxu0 0
  %3250 = vmatprep.subr.bf16.mxu0 0
  %3251 = vmatpush2.bf16.msra.mxu0 0
  %3252 = vmatprep.mubr.bf16.mxu0 0
  %3253 = vmatmul.mubr.bf16.gmra.mxu0 %v3155
  %v3254 = vpop.f32.mrf.mxu0
  %v3255 = vadd.f32 0.0, %v3254
  %v3256 = vpop.f32.mrf.mxu0
  %v3257 = vpop.f32.mrf.mxu0
  %v3258 = vpop.f32.mrf.mxu0
  %3259 = vdwg.mxu0
  %v3276 = vunpack.c.l.b16 %v3139
  %v3277 = vunpack.c.l.b16 %v3140
  %v3278 = vunpack.c.l.b16 %v3141
  %v3279 = vunpack.c.l.b16 %v3142
  %v3280 = vunpack.c.l.b16 %v3143
  %v3281 = vunpack.c.l.b16 %v3144
  %v3282 = vunpack.c.l.b16 %v3145
  %v3283 = vunpack.c.l.b16 %v3146
  %v3284 = vunpack.c.l.b16 %v3147
  %v3285 = vunpack.c.l.b16 %v3148
  %v3286 = vunpack.c.l.b16 %v3149
  %v3287 = vunpack.c.l.b16 %v3150
  %v3288 = vunpack.c.l.b16 %v3151
  %v3289 = vunpack.c.l.b16 %v3152
  %v3290 = vunpack.c.l.b16 %v3153
  %v3291 = vunpack.c.l.b16 %v3154
  %v3292 = vpack.c.b16 %v3277, %v3276
  %v3293 = vpack.c.b16 %v3279, %v3278
  %v3294 = vpack.c.b16 %v3281, %v3280
  %v3295 = vpack.c.b16 %v3283, %v3282
  %v3296 = vpack.c.b16 %v3285, %v3284
  %v3297 = vpack.c.b16 %v3287, %v3286
  %v3298 = vpack.c.b16 %v3289, %v3288
  %v3299 = vpack.c.b16 %v3291, %v3290
  %3308 = vmatprep.subr.bf16.mxu0 0
  %3309 = vmatpush1.bf16.msra.mxu0 %v3299
  %3310 = vmatprep.subr.bf16.mxu0 0
  %3311 = vmatpush1.bf16.msra.mxu0 %v3298
  %3312 = vmatprep.subr.bf16.mxu0 0
  %3313 = vmatpush1.bf16.msra.mxu0 %v3297
  %3314 = vmatprep.subr.bf16.mxu0 0
  %3315 = vmatpush1.bf16.msra.mxu0 %v3296
  %3316 = vmatprep.subr.bf16.mxu0 0
  %3317 = vmatpush1.bf16.msra.mxu0 %v3295
  %3318 = vmatprep.subr.bf16.mxu0 0
  %3319 = vmatpush1.bf16.msra.mxu0 %v3294
  %3320 = vmatprep.subr.bf16.mxu0 0
  %3321 = vmatpush1.bf16.msra.mxu0 %v3293
  %3322 = vmatprep.subr.bf16.mxu0 0
  %3323 = vmatpush1.bf16.msra.mxu0 %v3292
  %3324 = vmatprep.subr.bf16.mxu0 0
  %3325 = vmatpush2.bf16.msra.mxu0 0
  %3326 = vmatprep.subr.bf16.mxu0 0
  %3327 = vmatpush2.bf16.msra.mxu0 0
  %3328 = vmatprep.subr.bf16.mxu0 0
  %3329 = vmatpush2.bf16.msra.mxu0 0
  %3330 = vmatprep.subr.bf16.mxu0 0
  %3331 = vmatpush2.bf16.msra.mxu0 0
  %3332 = vmatprep.subr.bf16.mxu0 0
  %3333 = vmatpush2.bf16.msra.mxu0 0
  %3334 = vmatprep.subr.bf16.mxu0 0
  %3335 = vmatpush2.bf16.msra.mxu0 0
  %3336 = vmatprep.subr.bf16.mxu0 0
  %3337 = vmatpush2.bf16.msra.mxu0 0
  %3338 = vmatprep.subr.bf16.mxu0 0
  %3339 = vmatpush2.bf16.msra.mxu0 0
  %3340 = vmatprep.mubr.bf16.mxu0 0
  %3341 = vmatmul.mubr.bf16.gmra.mxu0 %v3138
  %v3342 = vpop.f32.mrf.mxu0
  %v3343 = vadd.f32 %v3255, %v3342
  %v3344 = vpop.f32.mrf.mxu0
  %v3345 = vpop.f32.mrf.mxu0
  %v3346 = vpop.f32.mrf.mxu0
  %3347 = vdwg.mxu0
  %v3348 = vld [vmem:[%s10] sm:$0x1]
  %v3350 = vlaneseq
  %v3351 = vshrl.u32 %v3350, 7
  %v3352 = vsub.s32 0, %v3351
  %v3353 = vrot.slane %v3348, %v3352
  %v3355 = vadd.f32 %v3343, %v3353
  %v3356 = vmax.f32 %v3355, 0.0
  %v3357 = vpack.c.bf16 %v3356, %v3356
  %v3358 = vld [vmem:[%s11] sm:$0xf]
  %v3359 = vld [vmem:[%s11 + $0x4] sm:$0xf]
  %v3360 = vld [vmem:[%s11 + $0x8] sm:$0xf]
  %v3361 = vld [vmem:[%s11 + $0xc] sm:$0xf]
  %v3362 = vld [vmem:[%s11 + $0x10] sm:$0xf]
  %v3363 = vld [vmem:[%s11 + $0x14] sm:$0xf]
  %v3364 = vld [vmem:[%s11 + $0x18] sm:$0xf]
  %v3365 = vld [vmem:[%s11 + $0x1c] sm:$0xf]
  %v3366 = vld [vmem:[%s11 + $0x20] sm:$0xf]
  %v3367 = vld [vmem:[%s11 + $0x24] sm:$0xf]
  %v3368 = vld [vmem:[%s11 + $0x28] sm:$0xf]
  %v3369 = vld [vmem:[%s11 + $0x2c] sm:$0xf]
  %v3370 = vld [vmem:[%s11 + $0x30] sm:$0xf]
  %v3371 = vld [vmem:[%s11 + $0x34] sm:$0xf]
  %v3372 = vld [vmem:[%s11 + $0x38] sm:$0xf]
  %v3373 = vld [vmem:[%s11 + $0x3c] sm:$0xf]
  %v3374 = vld [vmem:[%s12] sm:$0x1]
  %v3376 = vlaneseq
  %v3377 = vshrl.u32 %v3376, 7
  %v3378 = vsub.s32 0, %v3377
  %v3379 = vrot.slane %v3374, %v3378
  %v3397 = vunpack.c.l.b16 %v3358
  %v3398 = vunpack.c.l.b16 %v3359
  %v3399 = vunpack.c.l.b16 %v3360
  %v3400 = vunpack.c.l.b16 %v3361
  %v3401 = vunpack.c.l.b16 %v3362
  %v3402 = vunpack.c.l.b16 %v3363
  %v3403 = vunpack.c.l.b16 %v3364
  %v3404 = vunpack.c.l.b16 %v3365
  %v3405 = vunpack.c.l.b16 %v3366
  %v3406 = vunpack.c.l.b16 %v3367
  %v3407 = vunpack.c.l.b16 %v3368
  %v3408 = vunpack.c.l.b16 %v3369
  %v3409 = vunpack.c.l.b16 %v3370
  %v3410 = vunpack.c.l.b16 %v3371
  %v3411 = vunpack.c.l.b16 %v3372
  %v3412 = vunpack.c.l.b16 %v3373
  %v3413 = vpack.c.b16 %v3398, %v3397
  %v3414 = vpack.c.b16 %v3400, %v3399
  %v3415 = vpack.c.b16 %v3402, %v3401
  %v3416 = vpack.c.b16 %v3404, %v3403
  %v3417 = vpack.c.b16 %v3406, %v3405
  %v3418 = vpack.c.b16 %v3408, %v3407
  %v3419 = vpack.c.b16 %v3410, %v3409
  %v3420 = vpack.c.b16 %v3412, %v3411
  %3429 = vmatprep.subr.bf16.mxu0 0
  %3430 = vmatpush1.bf16.msra.mxu0 %v3420
  %3431 = vmatprep.subr.bf16.mxu0 0
  %3432 = vmatpush1.bf16.msra.mxu0 %v3419
  %3433 = vmatprep.subr.bf16.mxu0 0
  %3434 = vmatpush1.bf16.msra.mxu0 %v3418
  %3435 = vmatprep.subr.bf16.mxu0 0
  %3436 = vmatpush1.bf16.msra.mxu0 %v3417
  %3437 = vmatprep.subr.bf16.mxu0 0
  %3438 = vmatpush1.bf16.msra.mxu0 %v3416
  %3439 = vmatprep.subr.bf16.mxu0 0
  %3440 = vmatpush1.bf16.msra.mxu0 %v3415
  %3441 = vmatprep.subr.bf16.mxu0 0
  %3442 = vmatpush1.bf16.msra.mxu0 %v3414
  %3443 = vmatprep.subr.bf16.mxu0 0
  %3444 = vmatpush1.bf16.msra.mxu0 %v3413
  %3445 = vmatprep.subr.bf16.mxu0 0
  %3446 = vmatpush2.bf16.msra.mxu0 0
  %3447 = vmatprep.subr.bf16.mxu0 0
  %3448 = vmatpush2.bf16.msra.mxu0 0
  %3449 = vmatprep.subr.bf16.mxu0 0
  %3450 = vmatpush2.bf16.msra.mxu0 0
  %3451 = vmatprep.subr.bf16.mxu0 0
  %3452 = vmatpush2.bf16.msra.mxu0 0
  %3453 = vmatprep.subr.bf16.mxu0 0
  %3454 = vmatpush2.bf16.msra.mxu0 0
  %3455 = vmatprep.subr.bf16.mxu0 0
  %3456 = vmatpush2.bf16.msra.mxu0 0
  %3457 = vmatprep.subr.bf16.mxu0 0
  %3458 = vmatpush2.bf16.msra.mxu0 0
  %3459 = vmatprep.subr.bf16.mxu0 0
  %3460 = vmatpush2.bf16.msra.mxu0 0
  %3461 = vmatprep.mubr.bf16.mxu0 0
  %3462 = vmatmul.mubr.bf16.gmra.mxu0 %v3357
  %v3463 = vpop.f32.mrf.mxu0
  %v3464 = vadd.f32 %v3379, %v3463
  %v3465 = vpop.f32.mrf.mxu0
  %v3466 = vpop.f32.mrf.mxu0
  %v3467 = vpop.f32.mrf.mxu0
  %3468 = vdwg.mxu0
  %3469 = vst [vmem:[%s13] sm:$0xff] %v3464
  // Predicated region
  $region54: #{lstm_classifier_v2_forward.1} parent=0 // pred_check
    _
  $region55: #{lstm_classifier_v2_forward.1} parent=0 // pred_check_branch
    %3471 = sbr.rel (0) target = $region57
  $region56: #{lstm_classifier_v2_forward.1} parent=0 // pred_region
    _
  $region57: #{lstm_classifier_v2_forward.1} parent=0 // pred_fallthru
    _
  // Predicated region
  $region58: #{lstm_classifier_v2_forward.1} parent=0 // pred_check
    _
  $region59: #{lstm_classifier_v2_forward.1} parent=0 // pred_check_branch
    %3473 = sbr.rel (0) target = $region61
  $region60: #{lstm_classifier_v2_forward.1} parent=0 // pred_region
    _
  $region61: #{lstm_classifier_v2_forward.1} parent=0 // pred_fallthru
    _

</llo_original>
